<compile_context>
chip_gen: v7x
topology: tpu7x:2x2x1
jax: 0.10.0
libtpu: 0.0.40
codegen_flags: <defaults>
</compile_context>

<pallas_src>
import math

import jax
import jax.numpy as jnp
from jax.experimental import pallas as pl
from jax.experimental.pallas import tpu as pltpu  # noqa: F401  (TPU backend)

# ---- model hyper-parameters (small, consistent with the module defaults) ----
VOCAB    = 32
D_MODEL  = 64
N_LAYERS = 2
N_HEADS  = 2
D_HEAD   = D_MODEL // N_HEADS
D_FF     = 128
BATCH    = 2
SEQ      = 8
NTOK     = BATCH * SEQ
EPS      = 1e-5
SQRT_D   = math.sqrt(D_MODEL)
_BLK_SHIFT = int(math.log2(SEQ))   # SEQ is a power of two


def _layer_norm(x, g, b):
    mu = jnp.mean(x, axis=-1, keepdims=True)
    var = jnp.mean((x - mu) ** 2, axis=-1, keepdims=True)
    return (x - mu) * jax.lax.rsqrt(var + EPS) * g + b


def encoder_kernel(ids_ref, emb_ref, pos_ref,
                   wqkv_ref, bqkv_ref, wo_ref, vecd_ref,
                   w1_ref, b1_ref, w2_ref,
                   fin_ref, wc_ref, bc_ref,
                   out_ref):
    # ---- embedding gather as a one-hot matmul (MXU), + positional add ----
    ids = ids_ref[...]                                                  # (N, 1) int32
    vocab_iota = jax.lax.broadcasted_iota(jnp.int32, (NTOK, VOCAB), 1)  # (N, V)
    onehot = (ids == vocab_iota).astype(jnp.float32)                    # (N, V)
    x = jnp.dot(onehot, emb_ref[...],
                preferred_element_type=jnp.float32) * SQRT_D            # (N, D)
    x = x + pos_ref[...]                                                # (N, D)

    # Constant block-diagonal mask: tokens only attend within their own batch row.
    r = jax.lax.broadcasted_iota(jnp.int32, (NTOK, NTOK), 0)
    c = jax.lax.broadcasted_iota(jnp.int32, (NTOK, NTOK), 1)
    same_batch = jax.lax.shift_right_logical(r, _BLK_SHIFT) == \
                 jax.lax.shift_right_logical(c, _BLK_SHIFT)
    mask = jnp.where(same_batch, 0.0, -1e30).astype(jnp.float32)        # (N, N)

    for l in range(N_LAYERS):
        # ---- multi-head self-attention (head-major weights; no lane slicing) ----
        attn = None
        for h in range(N_HEADS):
            q = jnp.dot(x, wqkv_ref[l, 0 * N_HEADS + h],
                        preferred_element_type=jnp.float32) + bqkv_ref[l, 0 * N_HEADS + h]
            k = jnp.dot(x, wqkv_ref[l, 1 * N_HEADS + h],
                        preferred_element_type=jnp.float32) + bqkv_ref[l, 1 * N_HEADS + h]
            v = jnp.dot(x, wqkv_ref[l, 2 * N_HEADS + h],
                        preferred_element_type=jnp.float32) + bqkv_ref[l, 2 * N_HEADS + h]
            # 1/sqrt(D_HEAD) already folded into the Q weights/bias at pack time.
            s = jnp.einsum('qd,kd->qk', q, k,
                           preferred_element_type=jnp.float32) + mask    # (N, N)
            s = s - jnp.max(s, axis=-1, keepdims=True)
            p = jnp.exp(s)
            p = p * pl.reciprocal(jnp.sum(p, axis=-1, keepdims=True), approx=True)
            head_out = jnp.dot(p, v, preferred_element_type=jnp.float32)       # (N, Dh)
            proj = jnp.dot(head_out, wo_ref[l, h],
                           preferred_element_type=jnp.float32)                  # (N, D)
            attn = proj if attn is None else attn + proj
        attn = attn + vecd_ref[l, 0]                                     # out-proj bias
        x = _layer_norm(x + attn, vecd_ref[l, 1], vecd_ref[l, 2])        # post-norm 1

        # ---- position-wise FFN (ReLU) ----
        h1 = jnp.maximum(
            jnp.dot(x, w1_ref[l], preferred_element_type=jnp.float32) + b1_ref[l], 0.0)
        ff = jnp.dot(h1, w2_ref[l], preferred_element_type=jnp.float32) + vecd_ref[l, 3]
        x = _layer_norm(x + ff, vecd_ref[l, 4], vecd_ref[l, 5])          # post-norm 2

    # ---- final LayerNorm, per-batch mean-pool over sequence, classifier ----
    x = _layer_norm(x, fin_ref[0], fin_ref[1])                           # (N, D)
    pooled = jnp.concatenate(
        [jnp.mean(x[b * SEQ:(b + 1) * SEQ, :], axis=0, keepdims=True)
         for b in range(BATCH)], axis=0)                                 # (B, D)
    out_ref[...] = jnp.dot(pooled, wc_ref[...],
                           preferred_element_type=jnp.float32) + bc_ref[...]   # (B, V)


@jax.jit
def encoder_forward(token_ids, packed):
    """token_ids: (B, S) int32 -> logits (B, VOCAB) f32.  Single kernel invocation."""
    ids = token_ids.reshape(NTOK, 1).astype(jnp.int32)
    return pl.pallas_call(
        encoder_kernel,
        out_shape=jax.ShapeDtypeStruct((BATCH, VOCAB), jnp.float32),
    )(ids, packed['emb'], packed['pos'],
      packed['wqkv'], packed['bqkv'], packed['wo'], packed['vecd'],
      packed['w1'], packed['b1'], packed['w2'],
      packed['fin'], packed['wc'], packed['bc'])


def sinusoidal_pos_emb(seq_len, d_model):
    pos = jnp.arange(seq_len, dtype=jnp.float32)[:, None]
    div = jnp.exp(jnp.arange(0, d_model, 2, dtype=jnp.float32)
                  * (-math.log(10000.0) / d_model))
    pe = jnp.zeros((seq_len, d_model), dtype=jnp.float32)
    pe = pe.at[:, 0::2].set(jnp.sin(pos * div))
    pe = pe.at[:, 1::2].set(jnp.cos(pos * div))
    return pe


def init_params(key):
    ks = jax.random.split(key, 8)
    std = 0.02

    def nrm(k, shape):
        return jax.random.normal(k, shape, dtype=jnp.float32) * std

    L, D, F, V = N_LAYERS, D_MODEL, D_FF, VOCAB
    return {
        'emb': nrm(ks[0], (V, D)),
        'wq': nrm(ks[1], (L, D, D)), 'bq': jnp.zeros((L, D), jnp.float32),
        'wk': nrm(ks[2], (L, D, D)), 'bk': jnp.zeros((L, D), jnp.float32),
        'wv': nrm(ks[3], (L, D, D)), 'bv': jnp.zeros((L, D), jnp.float32),
        'wo': nrm(ks[4], (L, D, D)), 'bo': jnp.zeros((L, D), jnp.float32),
        'ln1g': jnp.ones((L, D), jnp.float32), 'ln1b': jnp.zeros((L, D), jnp.float32),
        'ln2g': jnp.ones((L, D), jnp.float32), 'ln2b': jnp.zeros((L, D), jnp.float32),
        'w1': nrm(ks[5], (L, D, F)), 'b1': jnp.zeros((L, F), jnp.float32),
        'w2': nrm(ks[6], (L, F, D)), 'b2': jnp.zeros((L, D), jnp.float32),
        'fng': jnp.ones((D,), jnp.float32), 'fnb': jnp.zeros((D,), jnp.float32),
        'wc': nrm(ks[7], (D, V)), 'bc': jnp.zeros((V,), jnp.float32),
    }


def pack_params(p, pos_table):
    """One-time host-side repack: head-major Q/K/V/O weights, fused bias/LN slabs,
    1/sqrt(D_HEAD) folded into the Q projection."""
    L, D, F, V, H, Dh = N_LAYERS, D_MODEL, D_FF, VOCAB, N_HEADS, D_HEAD
    scale = 1.0 / math.sqrt(Dh)

    def per_head_w(w):                      # (L, D, D) -> (L, H, D, Dh)
        return w.reshape(L, D, H, Dh).transpose(0, 2, 1, 3)

    def per_head_b(b):                      # (L, D) -> (L, H, 1, Dh)
        return b.reshape(L, H, 1, Dh)

    wqkv = jnp.concatenate([per_head_w(p['wq']) * scale,
                            per_head_w(p['wk']),
                            per_head_w(p['wv'])], axis=1)       # (L, 3H, D, Dh)
    bqkv = jnp.concatenate([per_head_b(p['bq']) * scale,
                            per_head_b(p['bk']),
                            per_head_b(p['bv'])], axis=1)       # (L, 3H, 1, Dh)
    wo = p['wo'].reshape(L, H, Dh, D)                           # head-major rows of W_O
    vecd = jnp.stack([p['bo'], p['ln1g'], p['ln1b'],
                      p['b2'], p['ln2g'], p['ln2b']], axis=1).reshape(L, 6, 1, D)
    fin = jnp.stack([p['fng'], p['fnb']], axis=0).reshape(2, 1, D)
    return {
        'emb': p['emb'], 'pos': pos_table,
        'wqkv': wqkv, 'bqkv': bqkv, 'wo': wo, 'vecd': vecd,
        'w1': p['w1'], 'b1': p['b1'].reshape(L, 1, F), 'w2': p['w2'],
        'fin': fin, 'wc': p['wc'], 'bc': p['bc'].reshape(1, V),
    }


if __name__ == "__main__":
    key = jax.random.PRNGKey(0)
    k_tok, k_par = jax.random.split(key)

    token_ids = jax.random.randint(k_tok, (BATCH, SEQ), 0, VOCAB)
    params = init_params(k_par)

    # Constant positional table, pre-tiled to (B*S, D) so the kernel adds it directly.
    pos_table = jnp.tile(sinusoidal_pos_emb(SEQ, D_MODEL), (BATCH, 1))
    packed = pack_params(params, pos_table)

    logits = encoder_forward(token_ids, packed)
    logits = jax.block_until_ready(logits)

    assert logits.shape == (BATCH, VOCAB), logits.shape
    assert bool(jnp.all(jnp.isfinite(logits)))
    print("KERNEL_OK")
</pallas_src>

<mosaic_0001>
module attributes {stable_mosaic.version = 11 : i64} {
  func.func @encoder_kernel(%arg0: memref<16x1xi32, #tpu.memory_space<vmem>>, %arg1: memref<32x64xf32, #tpu.memory_space<vmem>>, %arg2: memref<16x64xf32, #tpu.memory_space<vmem>>, %arg3: memref<2x6x64x32xf32, #tpu.memory_space<vmem>>, %arg4: memref<2x6x1x32xf32, #tpu.memory_space<vmem>>, %arg5: memref<2x2x32x64xf32, #tpu.memory_space<vmem>>, %arg6: memref<2x6x1x64xf32, #tpu.memory_space<vmem>>, %arg7: memref<2x64x128xf32, #tpu.memory_space<vmem>>, %arg8: memref<2x1x128xf32, #tpu.memory_space<vmem>>, %arg9: memref<2x128x64xf32, #tpu.memory_space<vmem>>, %arg10: memref<2x1x64xf32, #tpu.memory_space<vmem>>, %arg11: memref<64x32xf32, #tpu.memory_space<vmem>>, %arg12: memref<1x32xf32, #tpu.memory_space<vmem>>, %arg13: memref<2x32xf32, #tpu.memory_space<vmem>>) attributes {dimension_semantics = [], scalar_prefetch = 0 : i64, scratch_operands = 0 : i64, tpu.core_type = #tpu.core_type<tc>} {
    %c0 = arith.constant 0 : index
    %c0_0 = arith.constant 0 : index
    %0 = vector.load %arg0[%c0, %c0_0] : memref<16x1xi32, #tpu.memory_space<vmem>>, vector<16x1xi32>
    %1 = tpu.iota {dimensions = array<i32: 1>} : vector<16x32xi32>
    %2 = vector.broadcast %0 : vector<16x1xi32> to vector<16x32xi32>
    %3 = arith.cmpi eq, %2, %1 : vector<16x32xi32>
    %4 = arith.extui %3 : vector<16x32xi1> to vector<16x32xi32>
    %5 = arith.sitofp %4 : vector<16x32xi32> to vector<16x32xf32>
    %c0_1 = arith.constant 0 : index
    %c0_2 = arith.constant 0 : index
    %6 = vector.load %arg1[%c0_1, %c0_2] : memref<32x64xf32, #tpu.memory_space<vmem>>, vector<32x64xf32>
    %cst = arith.constant dense<0.000000e+00> : vector<16x64xf32>
    %7 = tpu.matmul %5, %6, %cst {dimension_numbers = #tpu.dot_dimension_numbers<[1], [0], [0], [1], [0, 0, 1, 1], [], []>} : vector<16x32xf32>, vector<32x64xf32>, vector<16x64xf32> -> vector<16x64xf32>
    %cst_3 = arith.constant 8.000000e+00 : f32
    %8 = vector.broadcast %cst_3 : f32 to vector<16x64xf32>
    %9 = arith.mulf %7, %8 : vector<16x64xf32>
    %c0_4 = arith.constant 0 : index
    %c0_5 = arith.constant 0 : index
    %10 = vector.load %arg2[%c0_4, %c0_5] : memref<16x64xf32, #tpu.memory_space<vmem>>, vector<16x64xf32>
    %11 = arith.addf %9, %10 : vector<16x64xf32>
    %12 = tpu.iota {dimensions = array<i32: 0>} : vector<16x16xi32>
    %13 = tpu.iota {dimensions = array<i32: 1>} : vector<16x16xi32>
    %c3_i32 = arith.constant 3 : i32
    %14 = vector.broadcast %c3_i32 : i32 to vector<16x16xi32>
    %15 = arith.shrui %12, %14 : vector<16x16xi32>
    %c3_i32_6 = arith.constant 3 : i32
    %16 = vector.broadcast %c3_i32_6 : i32 to vector<16x16xi32>
    %17 = arith.shrui %13, %16 : vector<16x16xi32>
    %18 = arith.cmpi eq, %15, %17 : vector<16x16xi32>
    %cst_7 = arith.constant 0.000000e+00 : f32
    %cst_8 = arith.constant -1.000000e+30 : f32
    %19 = vector.broadcast %cst_7 : f32 to vector<16x16xf32>
    %20 = vector.broadcast %cst_8 : f32 to vector<16x16xf32>
    %21 = arith.select %18, %19, %20 : vector<16x16xi1>, vector<16x16xf32>
    %c0_9 = arith.constant 0 : index
    %c0_10 = arith.constant 0 : index
    %c0_11 = arith.constant 0 : index
    %c0_12 = arith.constant 0 : index
    %22 = vector.load %arg3[%c0_9, %c0_10, %c0_11, %c0_12] : memref<2x6x64x32xf32, #tpu.memory_space<vmem>>, vector<1x1x64x32xf32>
    %23 = vector.shape_cast %22 : vector<1x1x64x32xf32> to vector<64x32xf32>
    %cst_13 = arith.constant dense<0.000000e+00> : vector<16x32xf32>
    %24 = tpu.matmul %11, %23, %cst_13 {dimension_numbers = #tpu.dot_dimension_numbers<[1], [0], [0], [1], [0, 0, 1, 1], [], []>} : vector<16x64xf32>, vector<64x32xf32>, vector<16x32xf32> -> vector<16x32xf32>
    %c0_14 = arith.constant 0 : index
    %c0_15 = arith.constant 0 : index
    %c0_16 = arith.constant 0 : index
    %c0_17 = arith.constant 0 : index
    %25 = vector.load %arg4[%c0_14, %c0_15, %c0_16, %c0_17] : memref<2x6x1x32xf32, #tpu.memory_space<vmem>>, vector<1x1x1x32xf32>
    %26 = vector.shape_cast %25 : vector<1x1x1x32xf32> to vector<1x32xf32>
    %27 = vector.broadcast %26 : vector<1x32xf32> to vector<16x32xf32>
    %28 = arith.addf %24, %27 : vector<16x32xf32>
    %c0_18 = arith.constant 0 : index
    %c2 = arith.constant 2 : index
    %c0_19 = arith.constant 0 : index
    %c0_20 = arith.constant 0 : index
    %29 = vector.load %arg3[%c0_18, %c2, %c0_19, %c0_20] : memref<2x6x64x32xf32, #tpu.memory_space<vmem>>, vector<1x1x64x32xf32>
    %30 = vector.shape_cast %29 : vector<1x1x64x32xf32> to vector<64x32xf32>
    %cst_21 = arith.constant dense<0.000000e+00> : vector<16x32xf32>
    %31 = tpu.matmul %11, %30, %cst_21 {dimension_numbers = #tpu.dot_dimension_numbers<[1], [0], [0], [1], [0, 0, 1, 1], [], []>} : vector<16x64xf32>, vector<64x32xf32>, vector<16x32xf32> -> vector<16x32xf32>
    %c0_22 = arith.constant 0 : index
    %c2_23 = arith.constant 2 : index
    %c0_24 = arith.constant 0 : index
    %c0_25 = arith.constant 0 : index
    %32 = vector.load %arg4[%c0_22, %c2_23, %c0_24, %c0_25] : memref<2x6x1x32xf32, #tpu.memory_space<vmem>>, vector<1x1x1x32xf32>
    %33 = vector.shape_cast %32 : vector<1x1x1x32xf32> to vector<1x32xf32>
    %34 = vector.broadcast %33 : vector<1x32xf32> to vector<16x32xf32>
    %35 = arith.addf %31, %34 : vector<16x32xf32>
    %c0_26 = arith.constant 0 : index
    %c4 = arith.constant 4 : index
    %c0_27 = arith.constant 0 : index
    %c0_28 = arith.constant 0 : index
    %36 = vector.load %arg3[%c0_26, %c4, %c0_27, %c0_28] : memref<2x6x64x32xf32, #tpu.memory_space<vmem>>, vector<1x1x64x32xf32>
    %37 = vector.shape_cast %36 : vector<1x1x64x32xf32> to vector<64x32xf32>
    %cst_29 = arith.constant dense<0.000000e+00> : vector<16x32xf32>
    %38 = tpu.matmul %11, %37, %cst_29 {dimension_numbers = #tpu.dot_dimension_numbers<[1], [0], [0], [1], [0, 0, 1, 1], [], []>} : vector<16x64xf32>, vector<64x32xf32>, vector<16x32xf32> -> vector<16x32xf32>
    %c0_30 = arith.constant 0 : index
    %c4_31 = arith.constant 4 : index
    %c0_32 = arith.constant 0 : index
    %c0_33 = arith.constant 0 : index
    %39 = vector.load %arg4[%c0_30, %c4_31, %c0_32, %c0_33] : memref<2x6x1x32xf32, #tpu.memory_space<vmem>>, vector<1x1x1x32xf32>
    %40 = vector.shape_cast %39 : vector<1x1x1x32xf32> to vector<1x32xf32>
    %41 = vector.broadcast %40 : vector<1x32xf32> to vector<16x32xf32>
    %42 = arith.addf %38, %41 : vector<16x32xf32>
    "tpu.trace_start"() <{level = 10 : i32, message = "qd,kd->qk"}> : () -> ()
    %cst_34 = arith.constant dense<0.000000e+00> : vector<16x16xf32>
    %43 = tpu.matmul %28, %35, %cst_34 {dimension_numbers = #tpu.dot_dimension_numbers<[1], [1], [0], [0], [0, 0, 1, 0], [], []>} : vector<16x32xf32>, vector<16x32xf32>, vector<16x16xf32> -> vector<16x16xf32>
    "tpu.trace_stop"() : () -> ()
    %44 = arith.addf %43, %21 : vector<16x16xf32>
    %cst_35 = arith.constant dense<0xFF800000> : vector<16xf32>
    %45 = vector.multi_reduction <maximumf>, %44, %cst_35 [1] : vector<16x16xf32> to vector<16xf32>
    %46 = vector.shape_cast %45 : vector<16xf32> to vector<16x1xf32>
    %47 = vector.broadcast %46 : vector<16x1xf32> to vector<16x16xf32>
    %48 = arith.subf %44, %47 : vector<16x16xf32>
    %49 = math.exp %48 : vector<16x16xf32>
    %cst_36 = arith.constant dense<0.000000e+00> : vector<16xf32>
    %50 = vector.multi_reduction <add>, %49, %cst_36 [1] : vector<16x16xf32> to vector<16xf32>
    %51 = vector.shape_cast %50 : vector<16xf32> to vector<16x1xf32>
    %52 = tpu.reciprocal %51 {approx = true} : vector<16x1xf32> -> vector<16x1xf32>
    %53 = vector.broadcast %52 : vector<16x1xf32> to vector<16x16xf32>
    %54 = arith.mulf %49, %53 : vector<16x16xf32>
    %cst_37 = arith.constant dense<0.000000e+00> : vector<16x32xf32>
    %55 = tpu.matmul %54, %42, %cst_37 {dimension_numbers = #tpu.dot_dimension_numbers<[1], [0], [0], [1], [0, 0, 1, 1], [], []>} : vector<16x16xf32>, vector<16x32xf32>, vector<16x32xf32> -> vector<16x32xf32>
    %c0_38 = arith.constant 0 : index
    %c0_39 = arith.constant 0 : index
    %c0_40 = arith.constant 0 : index
    %c0_41 = arith.constant 0 : index
    %56 = vector.load %arg5[%c0_38, %c0_39, %c0_40, %c0_41] : memref<2x2x32x64xf32, #tpu.memory_space<vmem>>, vector<1x1x32x64xf32>
    %57 = vector.shape_cast %56 : vector<1x1x32x64xf32> to vector<32x64xf32>
    %cst_42 = arith.constant dense<0.000000e+00> : vector<16x64xf32>
    %58 = tpu.matmul %55, %57, %cst_42 {dimension_numbers = #tpu.dot_dimension_numbers<[1], [0], [0], [1], [0, 0, 1, 1], [], []>} : vector<16x32xf32>, vector<32x64xf32>, vector<16x64xf32> -> vector<16x64xf32>
    %c0_43 = arith.constant 0 : index
    %c1 = arith.constant 1 : index
    %c0_44 = arith.constant 0 : index
    %c0_45 = arith.constant 0 : index
    %59 = vector.load %arg3[%c0_43, %c1, %c0_44, %c0_45] : memref<2x6x64x32xf32, #tpu.memory_space<vmem>>, vector<1x1x64x32xf32>
    %60 = vector.shape_cast %59 : vector<1x1x64x32xf32> to vector<64x32xf32>
    %cst_46 = arith.constant dense<0.000000e+00> : vector<16x32xf32>
    %61 = tpu.matmul %11, %60, %cst_46 {dimension_numbers = #tpu.dot_dimension_numbers<[1], [0], [0], [1], [0, 0, 1, 1], [], []>} : vector<16x64xf32>, vector<64x32xf32>, vector<16x32xf32> -> vector<16x32xf32>
    %c0_47 = arith.constant 0 : index
    %c1_48 = arith.constant 1 : index
    %c0_49 = arith.constant 0 : index
    %c0_50 = arith.constant 0 : index
    %62 = vector.load %arg4[%c0_47, %c1_48, %c0_49, %c0_50] : memref<2x6x1x32xf32, #tpu.memory_space<vmem>>, vector<1x1x1x32xf32>
    %63 = vector.shape_cast %62 : vector<1x1x1x32xf32> to vector<1x32xf32>
    %64 = vector.broadcast %63 : vector<1x32xf32> to vector<16x32xf32>
    %65 = arith.addf %61, %64 : vector<16x32xf32>
    %c0_51 = arith.constant 0 : index
    %c3 = arith.constant 3 : index
    %c0_52 = arith.constant 0 : index
    %c0_53 = arith.constant 0 : index
    %66 = vector.load %arg3[%c0_51, %c3, %c0_52, %c0_53] : memref<2x6x64x32xf32, #tpu.memory_space<vmem>>, vector<1x1x64x32xf32>
    %67 = vector.shape_cast %66 : vector<1x1x64x32xf32> to vector<64x32xf32>
    %cst_54 = arith.constant dense<0.000000e+00> : vector<16x32xf32>
    %68 = tpu.matmul %11, %67, %cst_54 {dimension_numbers = #tpu.dot_dimension_numbers<[1], [0], [0], [1], [0, 0, 1, 1], [], []>} : vector<16x64xf32>, vector<64x32xf32>, vector<16x32xf32> -> vector<16x32xf32>
    %c0_55 = arith.constant 0 : index
    %c3_56 = arith.constant 3 : index
    %c0_57 = arith.constant 0 : index
    %c0_58 = arith.constant 0 : index
    %69 = vector.load %arg4[%c0_55, %c3_56, %c0_57, %c0_58] : memref<2x6x1x32xf32, #tpu.memory_space<vmem>>, vector<1x1x1x32xf32>
    %70 = vector.shape_cast %69 : vector<1x1x1x32xf32> to vector<1x32xf32>
    %71 = vector.broadcast %70 : vector<1x32xf32> to vector<16x32xf32>
    %72 = arith.addf %68, %71 : vector<16x32xf32>
    %c0_59 = arith.constant 0 : index
    %c5 = arith.constant 5 : index
    %c0_60 = arith.constant 0 : index
    %c0_61 = arith.constant 0 : index
    %73 = vector.load %arg3[%c0_59, %c5, %c0_60, %c0_61] : memref<2x6x64x32xf32, #tpu.memory_space<vmem>>, vector<1x1x64x32xf32>
    %74 = vector.shape_cast %73 : vector<1x1x64x32xf32> to vector<64x32xf32>
    %cst_62 = arith.constant dense<0.000000e+00> : vector<16x32xf32>
    %75 = tpu.matmul %11, %74, %cst_62 {dimension_numbers = #tpu.dot_dimension_numbers<[1], [0], [0], [1], [0, 0, 1, 1], [], []>} : vector<16x64xf32>, vector<64x32xf32>, vector<16x32xf32> -> vector<16x32xf32>
    %c0_63 = arith.constant 0 : index
    %c5_64 = arith.constant 5 : index
    %c0_65 = arith.constant 0 : index
    %c0_66 = arith.constant 0 : index
    %76 = vector.load %arg4[%c0_63, %c5_64, %c0_65, %c0_66] : memref<2x6x1x32xf32, #tpu.memory_space<vmem>>, vector<1x1x1x32xf32>
    %77 = vector.shape_cast %76 : vector<1x1x1x32xf32> to vector<1x32xf32>
    %78 = vector.broadcast %77 : vector<1x32xf32> to vector<16x32xf32>
    %79 = arith.addf %75, %78 : vector<16x32xf32>
    "tpu.trace_start"() <{level = 10 : i32, message = "qd,kd->qk"}> : () -> ()
    %cst_67 = arith.constant dense<0.000000e+00> : vector<16x16xf32>
    %80 = tpu.matmul %65, %72, %cst_67 {dimension_numbers = #tpu.dot_dimension_numbers<[1], [1], [0], [0], [0, 0, 1, 0], [], []>} : vector<16x32xf32>, vector<16x32xf32>, vector<16x16xf32> -> vector<16x16xf32>
    "tpu.trace_stop"() : () -> ()
    %81 = arith.addf %80, %21 : vector<16x16xf32>
    %cst_68 = arith.constant dense<0xFF800000> : vector<16xf32>
    %82 = vector.multi_reduction <maximumf>, %81, %cst_68 [1] : vector<16x16xf32> to vector<16xf32>
    %83 = vector.shape_cast %82 : vector<16xf32> to vector<16x1xf32>
    %84 = vector.broadcast %83 : vector<16x1xf32> to vector<16x16xf32>
    %85 = arith.subf %81, %84 : vector<16x16xf32>
    %86 = math.exp %85 : vector<16x16xf32>
    %cst_69 = arith.constant dense<0.000000e+00> : vector<16xf32>
    %87 = vector.multi_reduction <add>, %86, %cst_69 [1] : vector<16x16xf32> to vector<16xf32>
    %88 = vector.shape_cast %87 : vector<16xf32> to vector<16x1xf32>
    %89 = tpu.reciprocal %88 {approx = true} : vector<16x1xf32> -> vector<16x1xf32>
    %90 = vector.broadcast %89 : vector<16x1xf32> to vector<16x16xf32>
    %91 = arith.mulf %86, %90 : vector<16x16xf32>
    %cst_70 = arith.constant dense<0.000000e+00> : vector<16x32xf32>
    %92 = tpu.matmul %91, %79, %cst_70 {dimension_numbers = #tpu.dot_dimension_numbers<[1], [0], [0], [1], [0, 0, 1, 1], [], []>} : vector<16x16xf32>, vector<16x32xf32>, vector<16x32xf32> -> vector<16x32xf32>
    %c0_71 = arith.constant 0 : index
    %c1_72 = arith.constant 1 : index
    %c0_73 = arith.constant 0 : index
    %c0_74 = arith.constant 0 : index
    %93 = vector.load %arg5[%c0_71, %c1_72, %c0_73, %c0_74] : memref<2x2x32x64xf32, #tpu.memory_space<vmem>>, vector<1x1x32x64xf32>
    %94 = vector.shape_cast %93 : vector<1x1x32x64xf32> to vector<32x64xf32>
    %cst_75 = arith.constant dense<0.000000e+00> : vector<16x64xf32>
    %95 = tpu.matmul %92, %94, %cst_75 {dimension_numbers = #tpu.dot_dimension_numbers<[1], [0], [0], [1], [0, 0, 1, 1], [], []>} : vector<16x32xf32>, vector<32x64xf32>, vector<16x64xf32> -> vector<16x64xf32>
    %96 = arith.addf %58, %95 : vector<16x64xf32>
    %c0_76 = arith.constant 0 : index
    %c0_77 = arith.constant 0 : index
    %c0_78 = arith.constant 0 : index
    %c0_79 = arith.constant 0 : index
    %97 = vector.load %arg6[%c0_76, %c0_77, %c0_78, %c0_79] : memref<2x6x1x64xf32, #tpu.memory_space<vmem>>, vector<1x1x1x64xf32>
    %98 = vector.shape_cast %97 : vector<1x1x1x64xf32> to vector<1x64xf32>
    %99 = vector.broadcast %98 : vector<1x64xf32> to vector<16x64xf32>
    %100 = arith.addf %96, %99 : vector<16x64xf32>
    %101 = arith.addf %11, %100 : vector<16x64xf32>
    %c0_80 = arith.constant 0 : index
    %c1_81 = arith.constant 1 : index
    %c0_82 = arith.constant 0 : index
    %c0_83 = arith.constant 0 : index
    %102 = vector.load %arg6[%c0_80, %c1_81, %c0_82, %c0_83] : memref<2x6x1x64xf32, #tpu.memory_space<vmem>>, vector<1x1x1x64xf32>
    %103 = vector.shape_cast %102 : vector<1x1x1x64xf32> to vector<1x64xf32>
    %c0_84 = arith.constant 0 : index
    %c2_85 = arith.constant 2 : index
    %c0_86 = arith.constant 0 : index
    %c0_87 = arith.constant 0 : index
    %104 = vector.load %arg6[%c0_84, %c2_85, %c0_86, %c0_87] : memref<2x6x1x64xf32, #tpu.memory_space<vmem>>, vector<1x1x1x64xf32>
    %105 = vector.shape_cast %104 : vector<1x1x1x64xf32> to vector<1x64xf32>
    %cst_88 = arith.constant dense<0.000000e+00> : vector<16xf32>
    %106 = vector.multi_reduction <add>, %101, %cst_88 [1] : vector<16x64xf32> to vector<16xf32>
    %107 = vector.shape_cast %106 : vector<16xf32> to vector<16x1xf32>
    %cst_89 = arith.constant 6.400000e+01 : f32
    %108 = vector.broadcast %cst_89 : f32 to vector<16x1xf32>
    %109 = arith.divf %107, %108 : vector<16x1xf32>
    %110 = vector.broadcast %109 : vector<16x1xf32> to vector<16x64xf32>
    %111 = arith.subf %101, %110 : vector<16x64xf32>
    %112 = arith.mulf %111, %111 : vector<16x64xf32>
    %cst_90 = arith.constant dense<0.000000e+00> : vector<16xf32>
    %113 = vector.multi_reduction <add>, %112, %cst_90 [1] : vector<16x64xf32> to vector<16xf32>
    %114 = vector.shape_cast %113 : vector<16xf32> to vector<16x1xf32>
    %cst_91 = arith.constant 6.400000e+01 : f32
    %115 = vector.broadcast %cst_91 : f32 to vector<16x1xf32>
    %116 = arith.divf %114, %115 : vector<16x1xf32>
    %117 = vector.broadcast %109 : vector<16x1xf32> to vector<16x64xf32>
    %118 = arith.subf %101, %117 : vector<16x64xf32>
    %cst_92 = arith.constant 9.99999974E-6 : f32
    %119 = vector.broadcast %cst_92 : f32 to vector<16x1xf32>
    %120 = arith.addf %116, %119 : vector<16x1xf32>
    %121 = math.rsqrt %120 : vector<16x1xf32>
    %122 = vector.broadcast %121 : vector<16x1xf32> to vector<16x64xf32>
    %123 = arith.mulf %118, %122 : vector<16x64xf32>
    %124 = vector.broadcast %103 : vector<1x64xf32> to vector<16x64xf32>
    %125 = arith.mulf %123, %124 : vector<16x64xf32>
    %126 = vector.broadcast %105 : vector<1x64xf32> to vector<16x64xf32>
    %127 = arith.addf %125, %126 : vector<16x64xf32>
    %c0_93 = arith.constant 0 : index
    %c0_94 = arith.constant 0 : index
    %c0_95 = arith.constant 0 : index
    %128 = vector.load %arg7[%c0_93, %c0_94, %c0_95] : memref<2x64x128xf32, #tpu.memory_space<vmem>>, vector<1x64x128xf32>
    %129 = vector.shape_cast %128 : vector<1x64x128xf32> to vector<64x128xf32>
    %cst_96 = arith.constant dense<0.000000e+00> : vector<16x128xf32>
    %130 = tpu.matmul %127, %129, %cst_96 {dimension_numbers = #tpu.dot_dimension_numbers<[1], [0], [0], [1], [0, 0, 1, 1], [], []>} : vector<16x64xf32>, vector<64x128xf32>, vector<16x128xf32> -> vector<16x128xf32>
    %c0_97 = arith.constant 0 : index
    %c0_98 = arith.constant 0 : index
    %c0_99 = arith.constant 0 : index
    %131 = vector.load %arg8[%c0_97, %c0_98, %c0_99] : memref<2x1x128xf32, #tpu.memory_space<vmem>>, vector<1x1x128xf32>
    %132 = vector.shape_cast %131 : vector<1x1x128xf32> to vector<1x128xf32>
    %133 = vector.broadcast %132 : vector<1x128xf32> to vector<16x128xf32>
    %134 = arith.addf %130, %133 : vector<16x128xf32>
    %cst_100 = arith.constant 0.000000e+00 : f32
    %135 = vector.broadcast %cst_100 : f32 to vector<16x128xf32>
    %136 = arith.maximumf %134, %135 : vector<16x128xf32>
    %c0_101 = arith.constant 0 : index
    %c0_102 = arith.constant 0 : index
    %c0_103 = arith.constant 0 : index
    %137 = vector.load %arg9[%c0_101, %c0_102, %c0_103] : memref<2x128x64xf32, #tpu.memory_space<vmem>>, vector<1x128x64xf32>
    %138 = vector.shape_cast %137 : vector<1x128x64xf32> to vector<128x64xf32>
    %cst_104 = arith.constant dense<0.000000e+00> : vector<16x64xf32>
    %139 = tpu.matmul %136, %138, %cst_104 {dimension_numbers = #tpu.dot_dimension_numbers<[1], [0], [0], [1], [0, 0, 1, 1], [], []>} : vector<16x128xf32>, vector<128x64xf32>, vector<16x64xf32> -> vector<16x64xf32>
    %c0_105 = arith.constant 0 : index
    %c3_106 = arith.constant 3 : index
    %c0_107 = arith.constant 0 : index
    %c0_108 = arith.constant 0 : index
    %140 = vector.load %arg6[%c0_105, %c3_106, %c0_107, %c0_108] : memref<2x6x1x64xf32, #tpu.memory_space<vmem>>, vector<1x1x1x64xf32>
    %141 = vector.shape_cast %140 : vector<1x1x1x64xf32> to vector<1x64xf32>
    %142 = vector.broadcast %141 : vector<1x64xf32> to vector<16x64xf32>
    %143 = arith.addf %139, %142 : vector<16x64xf32>
    %144 = arith.addf %127, %143 : vector<16x64xf32>
    %c0_109 = arith.constant 0 : index
    %c4_110 = arith.constant 4 : index
    %c0_111 = arith.constant 0 : index
    %c0_112 = arith.constant 0 : index
    %145 = vector.load %arg6[%c0_109, %c4_110, %c0_111, %c0_112] : memref<2x6x1x64xf32, #tpu.memory_space<vmem>>, vector<1x1x1x64xf32>
    %146 = vector.shape_cast %145 : vector<1x1x1x64xf32> to vector<1x64xf32>
    %c0_113 = arith.constant 0 : index
    %c5_114 = arith.constant 5 : index
    %c0_115 = arith.constant 0 : index
    %c0_116 = arith.constant 0 : index
    %147 = vector.load %arg6[%c0_113, %c5_114, %c0_115, %c0_116] : memref<2x6x1x64xf32, #tpu.memory_space<vmem>>, vector<1x1x1x64xf32>
    %148 = vector.shape_cast %147 : vector<1x1x1x64xf32> to vector<1x64xf32>
    %cst_117 = arith.constant dense<0.000000e+00> : vector<16xf32>
    %149 = vector.multi_reduction <add>, %144, %cst_117 [1] : vector<16x64xf32> to vector<16xf32>
    %150 = vector.shape_cast %149 : vector<16xf32> to vector<16x1xf32>
    %cst_118 = arith.constant 6.400000e+01 : f32
    %151 = vector.broadcast %cst_118 : f32 to vector<16x1xf32>
    %152 = arith.divf %150, %151 : vector<16x1xf32>
    %153 = vector.broadcast %152 : vector<16x1xf32> to vector<16x64xf32>
    %154 = arith.subf %144, %153 : vector<16x64xf32>
    %155 = arith.mulf %154, %154 : vector<16x64xf32>
    %cst_119 = arith.constant dense<0.000000e+00> : vector<16xf32>
    %156 = vector.multi_reduction <add>, %155, %cst_119 [1] : vector<16x64xf32> to vector<16xf32>
    %157 = vector.shape_cast %156 : vector<16xf32> to vector<16x1xf32>
    %cst_120 = arith.constant 6.400000e+01 : f32
    %158 = vector.broadcast %cst_120 : f32 to vector<16x1xf32>
    %159 = arith.divf %157, %158 : vector<16x1xf32>
    %160 = vector.broadcast %152 : vector<16x1xf32> to vector<16x64xf32>
    %161 = arith.subf %144, %160 : vector<16x64xf32>
    %cst_121 = arith.constant 9.99999974E-6 : f32
    %162 = vector.broadcast %cst_121 : f32 to vector<16x1xf32>
    %163 = arith.addf %159, %162 : vector<16x1xf32>
    %164 = math.rsqrt %163 : vector<16x1xf32>
    %165 = vector.broadcast %164 : vector<16x1xf32> to vector<16x64xf32>
    %166 = arith.mulf %161, %165 : vector<16x64xf32>
    %167 = vector.broadcast %146 : vector<1x64xf32> to vector<16x64xf32>
    %168 = arith.mulf %166, %167 : vector<16x64xf32>
    %169 = vector.broadcast %148 : vector<1x64xf32> to vector<16x64xf32>
    %170 = arith.addf %168, %169 : vector<16x64xf32>
    %c1_122 = arith.constant 1 : index
    %c0_123 = arith.constant 0 : index
    %c0_124 = arith.constant 0 : index
    %c0_125 = arith.constant 0 : index
    %171 = vector.load %arg3[%c1_122, %c0_123, %c0_124, %c0_125] : memref<2x6x64x32xf32, #tpu.memory_space<vmem>>, vector<1x1x64x32xf32>
    %172 = vector.shape_cast %171 : vector<1x1x64x32xf32> to vector<64x32xf32>
    %cst_126 = arith.constant dense<0.000000e+00> : vector<16x32xf32>
    %173 = tpu.matmul %170, %172, %cst_126 {dimension_numbers = #tpu.dot_dimension_numbers<[1], [0], [0], [1], [0, 0, 1, 1], [], []>} : vector<16x64xf32>, vector<64x32xf32>, vector<16x32xf32> -> vector<16x32xf32>
    %c1_127 = arith.constant 1 : index
    %c0_128 = arith.constant 0 : index
    %c0_129 = arith.constant 0 : index
    %c0_130 = arith.constant 0 : index
    %174 = vector.load %arg4[%c1_127, %c0_128, %c0_129, %c0_130] : memref<2x6x1x32xf32, #tpu.memory_space<vmem>>, vector<1x1x1x32xf32>
    %175 = vector.shape_cast %174 : vector<1x1x1x32xf32> to vector<1x32xf32>
    %176 = vector.broadcast %175 : vector<1x32xf32> to vector<16x32xf32>
    %177 = arith.addf %173, %176 : vector<16x32xf32>
    %c1_131 = arith.constant 1 : index
    %c2_132 = arith.constant 2 : index
    %c0_133 = arith.constant 0 : index
    %c0_134 = arith.constant 0 : index
    %178 = vector.load %arg3[%c1_131, %c2_132, %c0_133, %c0_134] : memref<2x6x64x32xf32, #tpu.memory_space<vmem>>, vector<1x1x64x32xf32>
    %179 = vector.shape_cast %178 : vector<1x1x64x32xf32> to vector<64x32xf32>
    %cst_135 = arith.constant dense<0.000000e+00> : vector<16x32xf32>
    %180 = tpu.matmul %170, %179, %cst_135 {dimension_numbers = #tpu.dot_dimension_numbers<[1], [0], [0], [1], [0, 0, 1, 1], [], []>} : vector<16x64xf32>, vector<64x32xf32>, vector<16x32xf32> -> vector<16x32xf32>
    %c1_136 = arith.constant 1 : index
    %c2_137 = arith.constant 2 : index
    %c0_138 = arith.constant 0 : index
    %c0_139 = arith.constant 0 : index
    %181 = vector.load %arg4[%c1_136, %c2_137, %c0_138, %c0_139] : memref<2x6x1x32xf32, #tpu.memory_space<vmem>>, vector<1x1x1x32xf32>
    %182 = vector.shape_cast %181 : vector<1x1x1x32xf32> to vector<1x32xf32>
    %183 = vector.broadcast %182 : vector<1x32xf32> to vector<16x32xf32>
    %184 = arith.addf %180, %183 : vector<16x32xf32>
    %c1_140 = arith.constant 1 : index
    %c4_141 = arith.constant 4 : index
    %c0_142 = arith.constant 0 : index
    %c0_143 = arith.constant 0 : index
    %185 = vector.load %arg3[%c1_140, %c4_141, %c0_142, %c0_143] : memref<2x6x64x32xf32, #tpu.memory_space<vmem>>, vector<1x1x64x32xf32>
    %186 = vector.shape_cast %185 : vector<1x1x64x32xf32> to vector<64x32xf32>
    %cst_144 = arith.constant dense<0.000000e+00> : vector<16x32xf32>
    %187 = tpu.matmul %170, %186, %cst_144 {dimension_numbers = #tpu.dot_dimension_numbers<[1], [0], [0], [1], [0, 0, 1, 1], [], []>} : vector<16x64xf32>, vector<64x32xf32>, vector<16x32xf32> -> vector<16x32xf32>
    %c1_145 = arith.constant 1 : index
    %c4_146 = arith.constant 4 : index
    %c0_147 = arith.constant 0 : index
    %c0_148 = arith.constant 0 : index
    %188 = vector.load %arg4[%c1_145, %c4_146, %c0_147, %c0_148] : memref<2x6x1x32xf32, #tpu.memory_space<vmem>>, vector<1x1x1x32xf32>
    %189 = vector.shape_cast %188 : vector<1x1x1x32xf32> to vector<1x32xf32>
    %190 = vector.broadcast %189 : vector<1x32xf32> to vector<16x32xf32>
    %191 = arith.addf %187, %190 : vector<16x32xf32>
    "tpu.trace_start"() <{level = 10 : i32, message = "qd,kd->qk"}> : () -> ()
    %cst_149 = arith.constant dense<0.000000e+00> : vector<16x16xf32>
    %192 = tpu.matmul %177, %184, %cst_149 {dimension_numbers = #tpu.dot_dimension_numbers<[1], [1], [0], [0], [0, 0, 1, 0], [], []>} : vector<16x32xf32>, vector<16x32xf32>, vector<16x16xf32> -> vector<16x16xf32>
    "tpu.trace_stop"() : () -> ()
    %193 = arith.addf %192, %21 : vector<16x16xf32>
    %cst_150 = arith.constant dense<0xFF800000> : vector<16xf32>
    %194 = vector.multi_reduction <maximumf>, %193, %cst_150 [1] : vector<16x16xf32> to vector<16xf32>
    %195 = vector.shape_cast %194 : vector<16xf32> to vector<16x1xf32>
    %196 = vector.broadcast %195 : vector<16x1xf32> to vector<16x16xf32>
    %197 = arith.subf %193, %196 : vector<16x16xf32>
    %198 = math.exp %197 : vector<16x16xf32>
    %cst_151 = arith.constant dense<0.000000e+00> : vector<16xf32>
    %199 = vector.multi_reduction <add>, %198, %cst_151 [1] : vector<16x16xf32> to vector<16xf32>
    %200 = vector.shape_cast %199 : vector<16xf32> to vector<16x1xf32>
    %201 = tpu.reciprocal %200 {approx = true} : vector<16x1xf32> -> vector<16x1xf32>
    %202 = vector.broadcast %201 : vector<16x1xf32> to vector<16x16xf32>
    %203 = arith.mulf %198, %202 : vector<16x16xf32>
    %cst_152 = arith.constant dense<0.000000e+00> : vector<16x32xf32>
    %204 = tpu.matmul %203, %191, %cst_152 {dimension_numbers = #tpu.dot_dimension_numbers<[1], [0], [0], [1], [0, 0, 1, 1], [], []>} : vector<16x16xf32>, vector<16x32xf32>, vector<16x32xf32> -> vector<16x32xf32>
    %c1_153 = arith.constant 1 : index
    %c0_154 = arith.constant 0 : index
    %c0_155 = arith.constant 0 : index
    %c0_156 = arith.constant 0 : index
    %205 = vector.load %arg5[%c1_153, %c0_154, %c0_155, %c0_156] : memref<2x2x32x64xf32, #tpu.memory_space<vmem>>, vector<1x1x32x64xf32>
    %206 = vector.shape_cast %205 : vector<1x1x32x64xf32> to vector<32x64xf32>
    %cst_157 = arith.constant dense<0.000000e+00> : vector<16x64xf32>
    %207 = tpu.matmul %204, %206, %cst_157 {dimension_numbers = #tpu.dot_dimension_numbers<[1], [0], [0], [1], [0, 0, 1, 1], [], []>} : vector<16x32xf32>, vector<32x64xf32>, vector<16x64xf32> -> vector<16x64xf32>
    %c1_158 = arith.constant 1 : index
    %c1_159 = arith.constant 1 : index
    %c0_160 = arith.constant 0 : index
    %c0_161 = arith.constant 0 : index
    %208 = vector.load %arg3[%c1_158, %c1_159, %c0_160, %c0_161] : memref<2x6x64x32xf32, #tpu.memory_space<vmem>>, vector<1x1x64x32xf32>
    %209 = vector.shape_cast %208 : vector<1x1x64x32xf32> to vector<64x32xf32>
    %cst_162 = arith.constant dense<0.000000e+00> : vector<16x32xf32>
    %210 = tpu.matmul %170, %209, %cst_162 {dimension_numbers = #tpu.dot_dimension_numbers<[1], [0], [0], [1], [0, 0, 1, 1], [], []>} : vector<16x64xf32>, vector<64x32xf32>, vector<16x32xf32> -> vector<16x32xf32>
    %c1_163 = arith.constant 1 : index
    %c1_164 = arith.constant 1 : index
    %c0_165 = arith.constant 0 : index
    %c0_166 = arith.constant 0 : index
    %211 = vector.load %arg4[%c1_163, %c1_164, %c0_165, %c0_166] : memref<2x6x1x32xf32, #tpu.memory_space<vmem>>, vector<1x1x1x32xf32>
    %212 = vector.shape_cast %211 : vector<1x1x1x32xf32> to vector<1x32xf32>
    %213 = vector.broadcast %212 : vector<1x32xf32> to vector<16x32xf32>
    %214 = arith.addf %210, %213 : vector<16x32xf32>
    %c1_167 = arith.constant 1 : index
    %c3_168 = arith.constant 3 : index
    %c0_169 = arith.constant 0 : index
    %c0_170 = arith.constant 0 : index
    %215 = vector.load %arg3[%c1_167, %c3_168, %c0_169, %c0_170] : memref<2x6x64x32xf32, #tpu.memory_space<vmem>>, vector<1x1x64x32xf32>
    %216 = vector.shape_cast %215 : vector<1x1x64x32xf32> to vector<64x32xf32>
    %cst_171 = arith.constant dense<0.000000e+00> : vector<16x32xf32>
    %217 = tpu.matmul %170, %216, %cst_171 {dimension_numbers = #tpu.dot_dimension_numbers<[1], [0], [0], [1], [0, 0, 1, 1], [], []>} : vector<16x64xf32>, vector<64x32xf32>, vector<16x32xf32> -> vector<16x32xf32>
    %c1_172 = arith.constant 1 : index
    %c3_173 = arith.constant 3 : index
    %c0_174 = arith.constant 0 : index
    %c0_175 = arith.constant 0 : index
    %218 = vector.load %arg4[%c1_172, %c3_173, %c0_174, %c0_175] : memref<2x6x1x32xf32, #tpu.memory_space<vmem>>, vector<1x1x1x32xf32>
    %219 = vector.shape_cast %218 : vector<1x1x1x32xf32> to vector<1x32xf32>
    %220 = vector.broadcast %219 : vector<1x32xf32> to vector<16x32xf32>
    %221 = arith.addf %217, %220 : vector<16x32xf32>
    %c1_176 = arith.constant 1 : index
    %c5_177 = arith.constant 5 : index
    %c0_178 = arith.constant 0 : index
    %c0_179 = arith.constant 0 : index
    %222 = vector.load %arg3[%c1_176, %c5_177, %c0_178, %c0_179] : memref<2x6x64x32xf32, #tpu.memory_space<vmem>>, vector<1x1x64x32xf32>
    %223 = vector.shape_cast %222 : vector<1x1x64x32xf32> to vector<64x32xf32>
    %cst_180 = arith.constant dense<0.000000e+00> : vector<16x32xf32>
    %224 = tpu.matmul %170, %223, %cst_180 {dimension_numbers = #tpu.dot_dimension_numbers<[1], [0], [0], [1], [0, 0, 1, 1], [], []>} : vector<16x64xf32>, vector<64x32xf32>, vector<16x32xf32> -> vector<16x32xf32>
    %c1_181 = arith.constant 1 : index
    %c5_182 = arith.constant 5 : index
    %c0_183 = arith.constant 0 : index
    %c0_184 = arith.constant 0 : index
    %225 = vector.load %arg4[%c1_181, %c5_182, %c0_183, %c0_184] : memref<2x6x1x32xf32, #tpu.memory_space<vmem>>, vector<1x1x1x32xf32>
    %226 = vector.shape_cast %225 : vector<1x1x1x32xf32> to vector<1x32xf32>
    %227 = vector.broadcast %226 : vector<1x32xf32> to vector<16x32xf32>
    %228 = arith.addf %224, %227 : vector<16x32xf32>
    "tpu.trace_start"() <{level = 10 : i32, message = "qd,kd->qk"}> : () -> ()
    %cst_185 = arith.constant dense<0.000000e+00> : vector<16x16xf32>
    %229 = tpu.matmul %214, %221, %cst_185 {dimension_numbers = #tpu.dot_dimension_numbers<[1], [1], [0], [0], [0, 0, 1, 0], [], []>} : vector<16x32xf32>, vector<16x32xf32>, vector<16x16xf32> -> vector<16x16xf32>
    "tpu.trace_stop"() : () -> ()
    %230 = arith.addf %229, %21 : vector<16x16xf32>
    %cst_186 = arith.constant dense<0xFF800000> : vector<16xf32>
    %231 = vector.multi_reduction <maximumf>, %230, %cst_186 [1] : vector<16x16xf32> to vector<16xf32>
    %232 = vector.shape_cast %231 : vector<16xf32> to vector<16x1xf32>
    %233 = vector.broadcast %232 : vector<16x1xf32> to vector<16x16xf32>
    %234 = arith.subf %230, %233 : vector<16x16xf32>
    %235 = math.exp %234 : vector<16x16xf32>
    %cst_187 = arith.constant dense<0.000000e+00> : vector<16xf32>
    %236 = vector.multi_reduction <add>, %235, %cst_187 [1] : vector<16x16xf32> to vector<16xf32>
    %237 = vector.shape_cast %236 : vector<16xf32> to vector<16x1xf32>
    %238 = tpu.reciprocal %237 {approx = true} : vector<16x1xf32> -> vector<16x1xf32>
    %239 = vector.broadcast %238 : vector<16x1xf32> to vector<16x16xf32>
    %240 = arith.mulf %235, %239 : vector<16x16xf32>
    %cst_188 = arith.constant dense<0.000000e+00> : vector<16x32xf32>
    %241 = tpu.matmul %240, %228, %cst_188 {dimension_numbers = #tpu.dot_dimension_numbers<[1], [0], [0], [1], [0, 0, 1, 1], [], []>} : vector<16x16xf32>, vector<16x32xf32>, vector<16x32xf32> -> vector<16x32xf32>
    %c1_189 = arith.constant 1 : index
    %c1_190 = arith.constant 1 : index
    %c0_191 = arith.constant 0 : index
    %c0_192 = arith.constant 0 : index
    %242 = vector.load %arg5[%c1_189, %c1_190, %c0_191, %c0_192] : memref<2x2x32x64xf32, #tpu.memory_space<vmem>>, vector<1x1x32x64xf32>
    %243 = vector.shape_cast %242 : vector<1x1x32x64xf32> to vector<32x64xf32>
    %cst_193 = arith.constant dense<0.000000e+00> : vector<16x64xf32>
    %244 = tpu.matmul %241, %243, %cst_193 {dimension_numbers = #tpu.dot_dimension_numbers<[1], [0], [0], [1], [0, 0, 1, 1], [], []>} : vector<16x32xf32>, vector<32x64xf32>, vector<16x64xf32> -> vector<16x64xf32>
    %245 = arith.addf %207, %244 : vector<16x64xf32>
    %c1_194 = arith.constant 1 : index
    %c0_195 = arith.constant 0 : index
    %c0_196 = arith.constant 0 : index
    %c0_197 = arith.constant 0 : index
    %246 = vector.load %arg6[%c1_194, %c0_195, %c0_196, %c0_197] : memref<2x6x1x64xf32, #tpu.memory_space<vmem>>, vector<1x1x1x64xf32>
    %247 = vector.shape_cast %246 : vector<1x1x1x64xf32> to vector<1x64xf32>
    %248 = vector.broadcast %247 : vector<1x64xf32> to vector<16x64xf32>
    %249 = arith.addf %245, %248 : vector<16x64xf32>
    %250 = arith.addf %170, %249 : vector<16x64xf32>
    %c1_198 = arith.constant 1 : index
    %c1_199 = arith.constant 1 : index
    %c0_200 = arith.constant 0 : index
    %c0_201 = arith.constant 0 : index
    %251 = vector.load %arg6[%c1_198, %c1_199, %c0_200, %c0_201] : memref<2x6x1x64xf32, #tpu.memory_space<vmem>>, vector<1x1x1x64xf32>
    %252 = vector.shape_cast %251 : vector<1x1x1x64xf32> to vector<1x64xf32>
    %c1_202 = arith.constant 1 : index
    %c2_203 = arith.constant 2 : index
    %c0_204 = arith.constant 0 : index
    %c0_205 = arith.constant 0 : index
    %253 = vector.load %arg6[%c1_202, %c2_203, %c0_204, %c0_205] : memref<2x6x1x64xf32, #tpu.memory_space<vmem>>, vector<1x1x1x64xf32>
    %254 = vector.shape_cast %253 : vector<1x1x1x64xf32> to vector<1x64xf32>
    %cst_206 = arith.constant dense<0.000000e+00> : vector<16xf32>
    %255 = vector.multi_reduction <add>, %250, %cst_206 [1] : vector<16x64xf32> to vector<16xf32>
    %256 = vector.shape_cast %255 : vector<16xf32> to vector<16x1xf32>
    %cst_207 = arith.constant 6.400000e+01 : f32
    %257 = vector.broadcast %cst_207 : f32 to vector<16x1xf32>
    %258 = arith.divf %256, %257 : vector<16x1xf32>
    %259 = vector.broadcast %258 : vector<16x1xf32> to vector<16x64xf32>
    %260 = arith.subf %250, %259 : vector<16x64xf32>
    %261 = arith.mulf %260, %260 : vector<16x64xf32>
    %cst_208 = arith.constant dense<0.000000e+00> : vector<16xf32>
    %262 = vector.multi_reduction <add>, %261, %cst_208 [1] : vector<16x64xf32> to vector<16xf32>
    %263 = vector.shape_cast %262 : vector<16xf32> to vector<16x1xf32>
    %cst_209 = arith.constant 6.400000e+01 : f32
    %264 = vector.broadcast %cst_209 : f32 to vector<16x1xf32>
    %265 = arith.divf %263, %264 : vector<16x1xf32>
    %266 = vector.broadcast %258 : vector<16x1xf32> to vector<16x64xf32>
    %267 = arith.subf %250, %266 : vector<16x64xf32>
    %cst_210 = arith.constant 9.99999974E-6 : f32
    %268 = vector.broadcast %cst_210 : f32 to vector<16x1xf32>
    %269 = arith.addf %265, %268 : vector<16x1xf32>
    %270 = math.rsqrt %269 : vector<16x1xf32>
    %271 = vector.broadcast %270 : vector<16x1xf32> to vector<16x64xf32>
    %272 = arith.mulf %267, %271 : vector<16x64xf32>
    %273 = vector.broadcast %252 : vector<1x64xf32> to vector<16x64xf32>
    %274 = arith.mulf %272, %273 : vector<16x64xf32>
    %275 = vector.broadcast %254 : vector<1x64xf32> to vector<16x64xf32>
    %276 = arith.addf %274, %275 : vector<16x64xf32>
    %c1_211 = arith.constant 1 : index
    %c0_212 = arith.constant 0 : index
    %c0_213 = arith.constant 0 : index
    %277 = vector.load %arg7[%c1_211, %c0_212, %c0_213] : memref<2x64x128xf32, #tpu.memory_space<vmem>>, vector<1x64x128xf32>
    %278 = vector.shape_cast %277 : vector<1x64x128xf32> to vector<64x128xf32>
    %cst_214 = arith.constant dense<0.000000e+00> : vector<16x128xf32>
    %279 = tpu.matmul %276, %278, %cst_214 {dimension_numbers = #tpu.dot_dimension_numbers<[1], [0], [0], [1], [0, 0, 1, 1], [], []>} : vector<16x64xf32>, vector<64x128xf32>, vector<16x128xf32> -> vector<16x128xf32>
    %c1_215 = arith.constant 1 : index
    %c0_216 = arith.constant 0 : index
    %c0_217 = arith.constant 0 : index
    %280 = vector.load %arg8[%c1_215, %c0_216, %c0_217] : memref<2x1x128xf32, #tpu.memory_space<vmem>>, vector<1x1x128xf32>
    %281 = vector.shape_cast %280 : vector<1x1x128xf32> to vector<1x128xf32>
    %282 = vector.broadcast %281 : vector<1x128xf32> to vector<16x128xf32>
    %283 = arith.addf %279, %282 : vector<16x128xf32>
    %cst_218 = arith.constant 0.000000e+00 : f32
    %284 = vector.broadcast %cst_218 : f32 to vector<16x128xf32>
    %285 = arith.maximumf %283, %284 : vector<16x128xf32>
    %c1_219 = arith.constant 1 : index
    %c0_220 = arith.constant 0 : index
    %c0_221 = arith.constant 0 : index
    %286 = vector.load %arg9[%c1_219, %c0_220, %c0_221] : memref<2x128x64xf32, #tpu.memory_space<vmem>>, vector<1x128x64xf32>
    %287 = vector.shape_cast %286 : vector<1x128x64xf32> to vector<128x64xf32>
    %cst_222 = arith.constant dense<0.000000e+00> : vector<16x64xf32>
    %288 = tpu.matmul %285, %287, %cst_222 {dimension_numbers = #tpu.dot_dimension_numbers<[1], [0], [0], [1], [0, 0, 1, 1], [], []>} : vector<16x128xf32>, vector<128x64xf32>, vector<16x64xf32> -> vector<16x64xf32>
    %c1_223 = arith.constant 1 : index
    %c3_224 = arith.constant 3 : index
    %c0_225 = arith.constant 0 : index
    %c0_226 = arith.constant 0 : index
    %289 = vector.load %arg6[%c1_223, %c3_224, %c0_225, %c0_226] : memref<2x6x1x64xf32, #tpu.memory_space<vmem>>, vector<1x1x1x64xf32>
    %290 = vector.shape_cast %289 : vector<1x1x1x64xf32> to vector<1x64xf32>
    %291 = vector.broadcast %290 : vector<1x64xf32> to vector<16x64xf32>
    %292 = arith.addf %288, %291 : vector<16x64xf32>
    %293 = arith.addf %276, %292 : vector<16x64xf32>
    %c1_227 = arith.constant 1 : index
    %c4_228 = arith.constant 4 : index
    %c0_229 = arith.constant 0 : index
    %c0_230 = arith.constant 0 : index
    %294 = vector.load %arg6[%c1_227, %c4_228, %c0_229, %c0_230] : memref<2x6x1x64xf32, #tpu.memory_space<vmem>>, vector<1x1x1x64xf32>
    %295 = vector.shape_cast %294 : vector<1x1x1x64xf32> to vector<1x64xf32>
    %c1_231 = arith.constant 1 : index
    %c5_232 = arith.constant 5 : index
    %c0_233 = arith.constant 0 : index
    %c0_234 = arith.constant 0 : index
    %296 = vector.load %arg6[%c1_231, %c5_232, %c0_233, %c0_234] : memref<2x6x1x64xf32, #tpu.memory_space<vmem>>, vector<1x1x1x64xf32>
    %297 = vector.shape_cast %296 : vector<1x1x1x64xf32> to vector<1x64xf32>
    %cst_235 = arith.constant dense<0.000000e+00> : vector<16xf32>
    %298 = vector.multi_reduction <add>, %293, %cst_235 [1] : vector<16x64xf32> to vector<16xf32>
    %299 = vector.shape_cast %298 : vector<16xf32> to vector<16x1xf32>
    %cst_236 = arith.constant 6.400000e+01 : f32
    %300 = vector.broadcast %cst_236 : f32 to vector<16x1xf32>
    %301 = arith.divf %299, %300 : vector<16x1xf32>
    %302 = vector.broadcast %301 : vector<16x1xf32> to vector<16x64xf32>
    %303 = arith.subf %293, %302 : vector<16x64xf32>
    %304 = arith.mulf %303, %303 : vector<16x64xf32>
    %cst_237 = arith.constant dense<0.000000e+00> : vector<16xf32>
    %305 = vector.multi_reduction <add>, %304, %cst_237 [1] : vector<16x64xf32> to vector<16xf32>
    %306 = vector.shape_cast %305 : vector<16xf32> to vector<16x1xf32>
    %cst_238 = arith.constant 6.400000e+01 : f32
    %307 = vector.broadcast %cst_238 : f32 to vector<16x1xf32>
    %308 = arith.divf %306, %307 : vector<16x1xf32>
    %309 = vector.broadcast %301 : vector<16x1xf32> to vector<16x64xf32>
    %310 = arith.subf %293, %309 : vector<16x64xf32>
    %cst_239 = arith.constant 9.99999974E-6 : f32
    %311 = vector.broadcast %cst_239 : f32 to vector<16x1xf32>
    %312 = arith.addf %308, %311 : vector<16x1xf32>
    %313 = math.rsqrt %312 : vector<16x1xf32>
    %314 = vector.broadcast %313 : vector<16x1xf32> to vector<16x64xf32>
    %315 = arith.mulf %310, %314 : vector<16x64xf32>
    %316 = vector.broadcast %295 : vector<1x64xf32> to vector<16x64xf32>
    %317 = arith.mulf %315, %316 : vector<16x64xf32>
    %318 = vector.broadcast %297 : vector<1x64xf32> to vector<16x64xf32>
    %319 = arith.addf %317, %318 : vector<16x64xf32>
    %c0_240 = arith.constant 0 : index
    %c0_241 = arith.constant 0 : index
    %c0_242 = arith.constant 0 : index
    %320 = vector.load %arg10[%c0_240, %c0_241, %c0_242] : memref<2x1x64xf32, #tpu.memory_space<vmem>>, vector<1x1x64xf32>
    %321 = vector.shape_cast %320 : vector<1x1x64xf32> to vector<1x64xf32>
    %c1_243 = arith.constant 1 : index
    %c0_244 = arith.constant 0 : index
    %c0_245 = arith.constant 0 : index
    %322 = vector.load %arg10[%c1_243, %c0_244, %c0_245] : memref<2x1x64xf32, #tpu.memory_space<vmem>>, vector<1x1x64xf32>
    %323 = vector.shape_cast %322 : vector<1x1x64xf32> to vector<1x64xf32>
    %cst_246 = arith.constant dense<0.000000e+00> : vector<16xf32>
    %324 = vector.multi_reduction <add>, %319, %cst_246 [1] : vector<16x64xf32> to vector<16xf32>
    %325 = vector.shape_cast %324 : vector<16xf32> to vector<16x1xf32>
    %cst_247 = arith.constant 6.400000e+01 : f32
    %326 = vector.broadcast %cst_247 : f32 to vector<16x1xf32>
    %327 = arith.divf %325, %326 : vector<16x1xf32>
    %328 = vector.broadcast %327 : vector<16x1xf32> to vector<16x64xf32>
    %329 = arith.subf %319, %328 : vector<16x64xf32>
    %330 = arith.mulf %329, %329 : vector<16x64xf32>
    %cst_248 = arith.constant dense<0.000000e+00> : vector<16xf32>
    %331 = vector.multi_reduction <add>, %330, %cst_248 [1] : vector<16x64xf32> to vector<16xf32>
    %332 = vector.shape_cast %331 : vector<16xf32> to vector<16x1xf32>
    %cst_249 = arith.constant 6.400000e+01 : f32
    %333 = vector.broadcast %cst_249 : f32 to vector<16x1xf32>
    %334 = arith.divf %332, %333 : vector<16x1xf32>
    %335 = vector.broadcast %327 : vector<16x1xf32> to vector<16x64xf32>
    %336 = arith.subf %319, %335 : vector<16x64xf32>
    %cst_250 = arith.constant 9.99999974E-6 : f32
    %337 = vector.broadcast %cst_250 : f32 to vector<16x1xf32>
    %338 = arith.addf %334, %337 : vector<16x1xf32>
    %339 = math.rsqrt %338 : vector<16x1xf32>
    %340 = vector.broadcast %339 : vector<16x1xf32> to vector<16x64xf32>
    %341 = arith.mulf %336, %340 : vector<16x64xf32>
    %342 = vector.broadcast %321 : vector<1x64xf32> to vector<16x64xf32>
    %343 = arith.mulf %341, %342 : vector<16x64xf32>
    %344 = vector.broadcast %323 : vector<1x64xf32> to vector<16x64xf32>
    %345 = arith.addf %343, %344 : vector<16x64xf32>
    %346 = vector.extract_strided_slice %345 {offsets = [0, 0], sizes = [8, 64], strides = [1, 1]} : vector<16x64xf32> to vector<8x64xf32>
    %cst_251 = arith.constant dense<0.000000e+00> : vector<64xf32>
    %347 = vector.multi_reduction <add>, %346, %cst_251 [0] : vector<8x64xf32> to vector<64xf32>
    %348 = vector.shape_cast %347 : vector<64xf32> to vector<1x64xf32>
    %cst_252 = arith.constant 8.000000e+00 : f32
    %349 = vector.broadcast %cst_252 : f32 to vector<1x64xf32>
    %350 = arith.divf %348, %349 : vector<1x64xf32>
    %351 = vector.extract_strided_slice %345 {offsets = [8, 0], sizes = [8, 64], strides = [1, 1]} : vector<16x64xf32> to vector<8x64xf32>
    %cst_253 = arith.constant dense<0.000000e+00> : vector<64xf32>
    %352 = vector.multi_reduction <add>, %351, %cst_253 [0] : vector<8x64xf32> to vector<64xf32>
    %353 = vector.shape_cast %352 : vector<64xf32> to vector<1x64xf32>
    %cst_254 = arith.constant 8.000000e+00 : f32
    %354 = vector.broadcast %cst_254 : f32 to vector<1x64xf32>
    %355 = arith.divf %353, %354 : vector<1x64xf32>
    %356 = tpu.concatenate %350, %355 in 0 : vector<1x64xf32>, vector<1x64xf32> -> vector<2x64xf32>
    %c0_255 = arith.constant 0 : index
    %c0_256 = arith.constant 0 : index
    %357 = vector.load %arg11[%c0_255, %c0_256] : memref<64x32xf32, #tpu.memory_space<vmem>>, vector<64x32xf32>
    %cst_257 = arith.constant dense<0.000000e+00> : vector<2x32xf32>
    %358 = tpu.matmul %356, %357, %cst_257 {dimension_numbers = #tpu.dot_dimension_numbers<[1], [0], [0], [1], [0, 0, 1, 1], [], []>} : vector<2x64xf32>, vector<64x32xf32>, vector<2x32xf32> -> vector<2x32xf32>
    %c0_258 = arith.constant 0 : index
    %c0_259 = arith.constant 0 : index
    %359 = vector.load %arg12[%c0_258, %c0_259] : memref<1x32xf32, #tpu.memory_space<vmem>>, vector<1x32xf32>
    %360 = vector.broadcast %359 : vector<1x32xf32> to vector<2x32xf32>
    %361 = arith.addf %358, %360 : vector<2x32xf32>
    %c0_260 = arith.constant 0 : index
    %c0_261 = arith.constant 0 : index
    %362 = vector.load %arg13[%c0_260, %c0_261] : memref<2x32xf32, #tpu.memory_space<vmem>>, vector<2x32xf32>
    tpu.vector_store %arg13[%c0_260, %c0_261], %361 {strides = array<i32>} : memref<2x32xf32, #tpu.memory_space<vmem>>, vector<2x32xf32>,
    return
  }
}

</mosaic_0001>

<llo_original>
// kernel: encoder_forward.1
$region0: #{encoder_forward.1}
  #allocation0 [shape = 'u32[]', space=smem, size = 0x4, offset = 0x4, fixed_abs, tag = 'smem constant byte address 0x4 - core index']
  #allocation1 [shape = 'u32[144,128]{1,0:T(1,128)}', space=vmem, size = 0x12000, scoped, tag = 'internal scratch']
  %s0 = inlined_call_operand.vmem [shape: s32[16,1], index: 0, kind: input, shape index: {}]
  %s1 = inlined_call_operand.vmem [shape: f32[32,64], index: 1, kind: input, shape index: {}]
  %s2 = inlined_call_operand.vmem [shape: f32[16,64], index: 2, kind: input, shape index: {}]
  %s3 = inlined_call_operand.vmem [shape: f32[2,6,64,32], index: 3, kind: input, shape index: {}]
  %s4 = inlined_call_operand.vmem [shape: f32[2,6,1,32], index: 4, kind: input, shape index: {}]
  %s5 = inlined_call_operand.vmem [shape: f32[2,2,32,64], index: 5, kind: input, shape index: {}]
  %s6 = inlined_call_operand.vmem [shape: f32[2,6,1,64], index: 6, kind: input, shape index: {}]
  %s7 = inlined_call_operand.vmem [shape: f32[2,64,128], index: 7, kind: input, shape index: {}]
  %s8 = inlined_call_operand.vmem [shape: f32[2,1,128], index: 8, kind: input, shape index: {}]
  %s9 = inlined_call_operand.vmem [shape: f32[2,128,64], index: 9, kind: input, shape index: {}]
  %s10 = inlined_call_operand.vmem [shape: f32[2,1,64], index: 10, kind: input, shape index: {}]
  %s11 = inlined_call_operand.vmem [shape: f32[64,32], index: 11, kind: input, shape index: {}]
  %s12 = inlined_call_operand.vmem [shape: f32[1,32], index: 12, kind: input, shape index: {}]
  %s13 = inlined_call_operand.hbm [shape: f32[2,32], index: 13, kind: output, shape index: {}]
  %s14 = sld [smem:[#allocation0]]
  $region62: #{encoder_forward.1} parent=0
    _
  %s16 = ssub.s32 1, %s14
  %s17 = scalar_select 0, %s16, %s14
  $region1: #{encoder_forward.1} parent=0
    #allocation2 [shape = 'u8[1024]{0}', space=vmem, size = 0x400, scoped, tag = 'output window, operand 0, single buffered']
    #allocation3 [shape = 's32[1]{0}', space=sflag, size = 0x4, scoped, tag = 'scoped memory for encoder_forward.1']
    %18 = vsyncpa [#allocation3], 0
    // Predicated region
    $region2: #{encoder_forward.1} parent=1 // pred_check
      _
    $region3: #{encoder_forward.1} parent=1 // pred_check_branch
      %20 = sbr.rel (0) target = $region5
    $region4: #{encoder_forward.1} parent=1 // pred_region
      _
    $region5: #{encoder_forward.1} parent=1 // pred_fallthru
      _
    // Predicated region
    $region6: #{encoder_forward.1} parent=1 // pred_check
      _
    $region7: #{encoder_forward.1} parent=1 // pred_check_branch
      %22 = sbr.rel (0) target = $region9
    $region8: #{encoder_forward.1} parent=1 // pred_region
      _
    $region9: #{encoder_forward.1} parent=1 // pred_fallthru
      _
    // Predicated region
    $region10: #{encoder_forward.1} parent=1 // pred_check
      _
    $region11: #{encoder_forward.1} parent=1 // pred_check_branch
      %24 = sbr.rel (0) target = $region13
    $region12: #{encoder_forward.1} parent=1 // pred_region
      _
    $region13: #{encoder_forward.1} parent=1 // pred_fallthru
      _
    // Predicated region
    $region14: #{encoder_forward.1} parent=1 // pred_check
      _
    $region15: #{encoder_forward.1} parent=1 // pred_check_branch
      %26 = sbr.rel (0) target = $region17
    $region16: #{encoder_forward.1} parent=1 // pred_region
      _
    $region17: #{encoder_forward.1} parent=1 // pred_fallthru
      _
    // Predicated region
    $region18: #{encoder_forward.1} parent=1 // pred_check
      _
    $region19: #{encoder_forward.1} parent=1 // pred_check_branch
      %28 = sbr.rel (0) target = $region21
    $region20: #{encoder_forward.1} parent=1 // pred_region
      _
    $region21: #{encoder_forward.1} parent=1 // pred_fallthru
      _
    // Predicated region
    $region22: #{encoder_forward.1} parent=1 // pred_check
      _
    $region23: #{encoder_forward.1} parent=1 // pred_check_branch
      %30 = sbr.rel (0) target = $region25
    $region24: #{encoder_forward.1} parent=1 // pred_region
      _
    $region25: #{encoder_forward.1} parent=1 // pred_fallthru
      _
    // Predicated region
    $region26: #{encoder_forward.1} parent=1 // pred_check
      _
    $region27: #{encoder_forward.1} parent=1 // pred_check_branch
      %32 = sbr.rel (0) target = $region29
    $region28: #{encoder_forward.1} parent=1 // pred_region
      _
    $region29: #{encoder_forward.1} parent=1 // pred_fallthru
      _
    // Predicated region
    $region30: #{encoder_forward.1} parent=1 // pred_check
      _
    $region31: #{encoder_forward.1} parent=1 // pred_check_branch
      %34 = sbr.rel (0) target = $region33
    $region32: #{encoder_forward.1} parent=1 // pred_region
      _
    $region33: #{encoder_forward.1} parent=1 // pred_fallthru
      _
    // Predicated region
    $region34: #{encoder_forward.1} parent=1 // pred_check
      _
    $region35: #{encoder_forward.1} parent=1 // pred_check_branch
      %36 = sbr.rel (0) target = $region37
    $region36: #{encoder_forward.1} parent=1 // pred_region
      _
    $region37: #{encoder_forward.1} parent=1 // pred_fallthru
      _
    // Predicated region
    $region38: #{encoder_forward.1} parent=1 // pred_check
      _
    $region39: #{encoder_forward.1} parent=1 // pred_check_branch
      %38 = sbr.rel (0) target = $region41
    $region40: #{encoder_forward.1} parent=1 // pred_region
      _
    $region41: #{encoder_forward.1} parent=1 // pred_fallthru
      _
    // Predicated region
    $region42: #{encoder_forward.1} parent=1 // pred_check
      _
    $region43: #{encoder_forward.1} parent=1 // pred_check_branch
      %40 = sbr.rel (0) target = $region45
    $region44: #{encoder_forward.1} parent=1 // pred_region
      _
    $region45: #{encoder_forward.1} parent=1 // pred_fallthru
      _
    // Predicated region
    $region46: #{encoder_forward.1} parent=1 // pred_check
      _
    $region47: #{encoder_forward.1} parent=1 // pred_check_branch
      %42 = sbr.rel (0) target = $region49
    $region48: #{encoder_forward.1} parent=1 // pred_region
      _
    $region49: #{encoder_forward.1} parent=1 // pred_fallthru
      _
    // Predicated region
    $region50: #{encoder_forward.1} parent=1 // pred_check
      _
    $region51: #{encoder_forward.1} parent=1 // pred_check_branch
      %44 = sbr.rel (0) target = $region53
    $region52: #{encoder_forward.1} parent=1 // pred_region
      _
    $region53: #{encoder_forward.1} parent=1 // pred_fallthru
      _
    %v45 = vld [vmem:[%s0] sm:$0xff]
    %v46 = vld [vmem:[%s0 + $0x8] sm:$0xff]
    %v47 = vlaneseq
    %v48 = vand.u32 %v47, 127
    %49 = vset.pattern.permute.xlu0 0
    %50 = vperm.xlu0 %49, %v45
    %v51 = vpop.permute.xlu0 %50
    %52 = vset.pattern.permute.xlu0 0
    %53 = vperm.xlu0 %52, %v46
    %v54 = vpop.permute.xlu0 %53
    %vm55 = vcmp.eq.s32.totalorder %v51, %v48
    %vm56 = vcmp.eq.s32.totalorder %v54, %v48
    %v57 = vsel %vm55, 1, 0
    %v58 = vsel %vm56, 1, 0
    %v59 = vcvt.s32.f32 %v57
    %v60 = vcvt.s32.f32 %v58
    %v61 = vld [vmem:[%s1] sm:$0xff]
    %v62 = vld [vmem:[%s1 + $0x8] sm:$0xff]
    %v63 = vld [vmem:[%s1 + $0x10] sm:$0xff]
    %v64 = vld [vmem:[%s1 + $0x18] sm:$0xff]
    %vm65 = vcmask 261120
    %v67 = vsel %vm65, %v59, 0
    %v70 = vsel %vm65, %v60, 0
    %72 = vmatprep.subr.mxu0 0.0
    %73 = vmatpush1.msra.mxu0 %v61
    %74 = vmatprep.subr.mxu0 0.0
    %75 = vmatpush1.msra.mxu0 %v62
    %76 = vmatprep.subr.mxu0 0.0
    %77 = vmatpush1.msra.mxu0 %v63
    %78 = vmatprep.subr.mxu0 0.0
    %79 = vmatpush1.msra.mxu0 %v64
    %80 = vmatprep.subr.mxu0 0.0
    %81 = vmatpush1.msra.mxu0 0.0
    %82 = vmatprep.subr.mxu0 0.0
    %83 = vmatpush1.msra.mxu0 0.0
    %84 = vmatprep.subr.mxu0 0.0
    %85 = vmatpush1.msra.mxu0 0.0
    %86 = vmatprep.subr.mxu0 0.0
    %87 = vmatpush1.msra.mxu0 0.0
    %88 = vmatprep.subr.mxu0 0.0
    %89 = vmatpush1.msra.mxu0 0.0
    %90 = vmatprep.subr.mxu0 0.0
    %91 = vmatpush1.msra.mxu0 0.0
    %92 = vmatprep.subr.mxu0 0.0
    %93 = vmatpush1.msra.mxu0 0.0
    %94 = vmatprep.subr.mxu0 0.0
    %95 = vmatpush1.msra.mxu0 0.0
    %96 = vmatprep.subr.mxu0 0.0
    %97 = vmatpush1.msra.mxu0 0.0
    %98 = vmatprep.subr.mxu0 0.0
    %99 = vmatpush1.msra.mxu0 0.0
    %100 = vmatprep.subr.mxu0 0.0
    %101 = vmatpush1.msra.mxu0 0.0
    %102 = vmatprep.subr.mxu0 0.0
    %103 = vmatpush1.msra.mxu0 0.0
    %104 = vmatprep.subr.mxu0 0.0
    %105 = vmatpush1.msra.mxu0 0.0
    %106 = vmatprep.subr.mxu0 0.0
    %107 = vmatpush1.msra.mxu0 0.0
    %108 = vmatprep.subr.mxu0 0.0
    %109 = vmatpush1.msra.mxu0 0.0
    %110 = vmatprep.subr.mxu0 0.0
    %111 = vmatpush1.msra.mxu0 0.0
    %112 = vmatprep.subr.mxu0 0.0
    %113 = vmatpush1.msra.mxu0 0.0
    %114 = vmatprep.subr.mxu0 0.0
    %115 = vmatpush1.msra.mxu0 0.0
    %116 = vmatprep.subr.mxu0 0.0
    %117 = vmatpush1.msra.mxu0 0.0
    %118 = vmatprep.subr.mxu0 0.0
    %119 = vmatpush1.msra.mxu0 0.0
    %120 = vmatprep.subr.mxu0 0.0
    %121 = vmatpush1.msra.mxu0 0.0
    %122 = vmatprep.subr.mxu0 0.0
    %123 = vmatpush1.msra.mxu0 0.0
    %124 = vmatprep.subr.mxu0 0.0
    %125 = vmatpush1.msra.mxu0 0.0
    %126 = vmatprep.subr.mxu0 0.0
    %127 = vmatpush1.msra.mxu0 0.0
    %128 = vmatprep.subr.mxu0 0.0
    %129 = vmatpush1.msra.mxu0 0.0
    %130 = vmatprep.subr.mxu0 0.0
    %131 = vmatpush1.msra.mxu0 0.0
    %132 = vmatprep.subr.mxu0 0.0
    %133 = vmatpush1.msra.mxu0 0.0
    %134 = vmatprep.subr.mxu0 0.0
    %135 = vmatpush1.msra.mxu0 0.0
    %136 = vmatprep.mubr.f32.mxu0 0.0
    %137 = vmatmul.mubr.f32.gmra.mrb[0].mxu0 %v67
    %v138 = vpop.f32.mrb[0].mxu0
    %v139 = vadd.f32 0.0, %v138
    %v140 = vpop.f32.mrb[0].mxu0
    %141 = vmatprep.mubr.f32.mxu0 0.0
    %142 = vmatmul.mubr.f32.gmra.mrb[0].mxu0 %v70
    %v143 = vpop.f32.mrb[0].mxu0
    %v144 = vadd.f32 0.0, %v143
    %v145 = vpop.f32.mrb[0].mxu0
    %146 = vdwg.mxu0
    %v147 = vmul.f32 %v139, 8.0
    %v148 = vmul.f32 %v144, 8.0
    %v149 = vld [vmem:[%s2] sm:$0xff]
    %v150 = vld [vmem:[%s2 + $0x8] sm:$0xff]
    %v151 = vadd.f32 %v147, %v149
    %v152 = vadd.f32 %v148, %v150
    %v153 = vlaneseq
    %v154 = vshrl.u32 %v153, 7
    %v155 = vadd.s32 %v154, 8
    %v156 = vshrl.u32 %v154, 3
    %v157 = vshrl.u32 %v155, 3
    %v158 = vshrl.u32 %v48, 3
    %vm159 = vcmp.eq.s32.totalorder %v156, %v158
    %vm160 = vcmp.eq.s32.totalorder %v157, %v158
    %v161 = vsel %vm159, 0.0, -1e+30
    %v162 = vsel %vm160, 0.0, -1e+30
    %v163 = vld [vmem:[%s3] sm:$0xff]
    %v164 = vld [vmem:[%s3 + $0x8] sm:$0xff]
    %v165 = vld [vmem:[%s3 + $0x10] sm:$0xff]
    %v166 = vld [vmem:[%s3 + $0x18] sm:$0xff]
    %v167 = vld [vmem:[%s3 + $0x20] sm:$0xff]
    %v168 = vld [vmem:[%s3 + $0x28] sm:$0xff]
    %v169 = vld [vmem:[%s3 + $0x30] sm:$0xff]
    %v170 = vld [vmem:[%s3 + $0x38] sm:$0xff]
    %v171 = vld [vmem:[%s4] sm:$0x1]
    %v173 = vlaneseq
    %v174 = vshrl.u32 %v173, 7
    %v175 = vsub.s32 0, %v174
    %v176 = vrot.slane %v171, %v175
    %vm178 = vcmask 523264
    %v180 = vsel %vm178, %v151, 0
    %v183 = vsel %vm178, %v152, 0
    %185 = vmatprep.subr.mxu0 0.0
    %186 = vmatpush1.msra.mxu0 %v163
    %187 = vmatprep.subr.mxu0 0.0
    %188 = vmatpush1.msra.mxu0 %v164
    %189 = vmatprep.subr.mxu0 0.0
    %190 = vmatpush1.msra.mxu0 %v165
    %191 = vmatprep.subr.mxu0 0.0
    %192 = vmatpush1.msra.mxu0 %v166
    %193 = vmatprep.subr.mxu0 0.0
    %194 = vmatpush1.msra.mxu0 %v167
    %195 = vmatprep.subr.mxu0 0.0
    %196 = vmatpush1.msra.mxu0 %v168
    %197 = vmatprep.subr.mxu0 0.0
    %198 = vmatpush1.msra.mxu0 %v169
    %199 = vmatprep.subr.mxu0 0.0
    %200 = vmatpush1.msra.mxu0 %v170
    %201 = vmatprep.subr.mxu0 0.0
    %202 = vmatpush1.msra.mxu0 0.0
    %203 = vmatprep.subr.mxu0 0.0
    %204 = vmatpush1.msra.mxu0 0.0
    %205 = vmatprep.subr.mxu0 0.0
    %206 = vmatpush1.msra.mxu0 0.0
    %207 = vmatprep.subr.mxu0 0.0
    %208 = vmatpush1.msra.mxu0 0.0
    %209 = vmatprep.subr.mxu0 0.0
    %210 = vmatpush1.msra.mxu0 0.0
    %211 = vmatprep.subr.mxu0 0.0
    %212 = vmatpush1.msra.mxu0 0.0
    %213 = vmatprep.subr.mxu0 0.0
    %214 = vmatpush1.msra.mxu0 0.0
    %215 = vmatprep.subr.mxu0 0.0
    %216 = vmatpush1.msra.mxu0 0.0
    %217 = vmatprep.subr.mxu0 0.0
    %218 = vmatpush1.msra.mxu0 0.0
    %219 = vmatprep.subr.mxu0 0.0
    %220 = vmatpush1.msra.mxu0 0.0
    %221 = vmatprep.subr.mxu0 0.0
    %222 = vmatpush1.msra.mxu0 0.0
    %223 = vmatprep.subr.mxu0 0.0
    %224 = vmatpush1.msra.mxu0 0.0
    %225 = vmatprep.subr.mxu0 0.0
    %226 = vmatpush1.msra.mxu0 0.0
    %227 = vmatprep.subr.mxu0 0.0
    %228 = vmatpush1.msra.mxu0 0.0
    %229 = vmatprep.subr.mxu0 0.0
    %230 = vmatpush1.msra.mxu0 0.0
    %231 = vmatprep.subr.mxu0 0.0
    %232 = vmatpush1.msra.mxu0 0.0
    %233 = vmatprep.subr.mxu0 0.0
    %234 = vmatpush1.msra.mxu0 0.0
    %235 = vmatprep.subr.mxu0 0.0
    %236 = vmatpush1.msra.mxu0 0.0
    %237 = vmatprep.subr.mxu0 0.0
    %238 = vmatpush1.msra.mxu0 0.0
    %239 = vmatprep.subr.mxu0 0.0
    %240 = vmatpush1.msra.mxu0 0.0
    %241 = vmatprep.subr.mxu0 0.0
    %242 = vmatpush1.msra.mxu0 0.0
    %243 = vmatprep.subr.mxu0 0.0
    %244 = vmatpush1.msra.mxu0 0.0
    %245 = vmatprep.subr.mxu0 0.0
    %246 = vmatpush1.msra.mxu0 0.0
    %247 = vmatprep.subr.mxu0 0.0
    %248 = vmatpush1.msra.mxu0 0.0
    %249 = vmatprep.mubr.f32.mxu0 0.0
    %250 = vmatmul.mubr.f32.gmra.mrb[0].mxu0 %v180
    %v251 = vpop.f32.mrb[0].mxu0
    %v252 = vadd.f32 %v176, %v251
    %v253 = vpop.f32.mrb[0].mxu0
    %254 = vmatprep.mubr.f32.mxu0 0.0
    %255 = vmatmul.mubr.f32.gmra.mrb[0].mxu0 %v183
    %v256 = vpop.f32.mrb[0].mxu0
    %v257 = vadd.f32 %v176, %v256
    %v258 = vpop.f32.mrb[0].mxu0
    %259 = vdwg.mxu0
    %s260 = scalar_lea.vmem %s3, 128
    %v261 = vld [vmem:[%s260] sm:$0xff]
    %v262 = vld [vmem:[%s260 + $0x8] sm:$0xff]
    %v263 = vld [vmem:[%s260 + $0x10] sm:$0xff]
    %v264 = vld [vmem:[%s260 + $0x18] sm:$0xff]
    %v265 = vld [vmem:[%s260 + $0x20] sm:$0xff]
    %v266 = vld [vmem:[%s260 + $0x28] sm:$0xff]
    %v267 = vld [vmem:[%s260 + $0x30] sm:$0xff]
    %v268 = vld [vmem:[%s260 + $0x38] sm:$0xff]
    %s269 = scalar_lea.vmem %s4, 2
    %v270 = vld [vmem:[%s269] sm:$0x1]
    %v272 = vlaneseq
    %v273 = vshrl.u32 %v272, 7
    %v274 = vsub.s32 0, %v273
    %v275 = vrot.slane %v270, %v274
    %277 = vmatprep.subr.mxu0 0.0
    %278 = vmatpush1.msra.mxu0 %v261
    %279 = vmatprep.subr.mxu0 0.0
    %280 = vmatpush1.msra.mxu0 %v262
    %281 = vmatprep.subr.mxu0 0.0
    %282 = vmatpush1.msra.mxu0 %v263
    %283 = vmatprep.subr.mxu0 0.0
    %284 = vmatpush1.msra.mxu0 %v264
    %285 = vmatprep.subr.mxu0 0.0
    %286 = vmatpush1.msra.mxu0 %v265
    %287 = vmatprep.subr.mxu0 0.0
    %288 = vmatpush1.msra.mxu0 %v266
    %289 = vmatprep.subr.mxu0 0.0
    %290 = vmatpush1.msra.mxu0 %v267
    %291 = vmatprep.subr.mxu0 0.0
    %292 = vmatpush1.msra.mxu0 %v268
    %293 = vmatprep.subr.mxu0 0.0
    %294 = vmatpush1.msra.mxu0 0.0
    %295 = vmatprep.subr.mxu0 0.0
    %296 = vmatpush1.msra.mxu0 0.0
    %297 = vmatprep.subr.mxu0 0.0
    %298 = vmatpush1.msra.mxu0 0.0
    %299 = vmatprep.subr.mxu0 0.0
    %300 = vmatpush1.msra.mxu0 0.0
    %301 = vmatprep.subr.mxu0 0.0
    %302 = vmatpush1.msra.mxu0 0.0
    %303 = vmatprep.subr.mxu0 0.0
    %304 = vmatpush1.msra.mxu0 0.0
    %305 = vmatprep.subr.mxu0 0.0
    %306 = vmatpush1.msra.mxu0 0.0
    %307 = vmatprep.subr.mxu0 0.0
    %308 = vmatpush1.msra.mxu0 0.0
    %309 = vmatprep.subr.mxu0 0.0
    %310 = vmatpush1.msra.mxu0 0.0
    %311 = vmatprep.subr.mxu0 0.0
    %312 = vmatpush1.msra.mxu0 0.0
    %313 = vmatprep.subr.mxu0 0.0
    %314 = vmatpush1.msra.mxu0 0.0
    %315 = vmatprep.subr.mxu0 0.0
    %316 = vmatpush1.msra.mxu0 0.0
    %317 = vmatprep.subr.mxu0 0.0
    %318 = vmatpush1.msra.mxu0 0.0
    %319 = vmatprep.subr.mxu0 0.0
    %320 = vmatpush1.msra.mxu0 0.0
    %321 = vmatprep.subr.mxu0 0.0
    %322 = vmatpush1.msra.mxu0 0.0
    %323 = vmatprep.subr.mxu0 0.0
    %324 = vmatpush1.msra.mxu0 0.0
    %325 = vmatprep.subr.mxu0 0.0
    %326 = vmatpush1.msra.mxu0 0.0
    %327 = vmatprep.subr.mxu0 0.0
    %328 = vmatpush1.msra.mxu0 0.0
    %329 = vmatprep.subr.mxu0 0.0
    %330 = vmatpush1.msra.mxu0 0.0
    %331 = vmatprep.subr.mxu0 0.0
    %332 = vmatpush1.msra.mxu0 0.0
    %333 = vmatprep.subr.mxu0 0.0
    %334 = vmatpush1.msra.mxu0 0.0
    %335 = vmatprep.subr.mxu0 0.0
    %336 = vmatpush1.msra.mxu0 0.0
    %337 = vmatprep.subr.mxu0 0.0
    %338 = vmatpush1.msra.mxu0 0.0
    %339 = vmatprep.subr.mxu0 0.0
    %340 = vmatpush1.msra.mxu0 0.0
    %341 = vmatprep.mubr.f32.mxu0 0.0
    %342 = vmatmul.mubr.f32.gmra.mrb[0].mxu0 %v180
    %v343 = vpop.f32.mrb[0].mxu0
    %v344 = vadd.f32 %v275, %v343
    %v345 = vpop.f32.mrb[0].mxu0
    %346 = vmatprep.mubr.f32.mxu0 0.0
    %347 = vmatmul.mubr.f32.gmra.mrb[0].mxu0 %v183
    %v348 = vpop.f32.mrb[0].mxu0
    %v349 = vadd.f32 %v275, %v348
    %v350 = vpop.f32.mrb[0].mxu0
    %351 = vdwg.mxu0
    %s352 = scalar_lea.vmem %s3, 256
    %v353 = vld [vmem:[%s352] sm:$0xff]
    %v354 = vld [vmem:[%s352 + $0x8] sm:$0xff]
    %v355 = vld [vmem:[%s352 + $0x10] sm:$0xff]
    %v356 = vld [vmem:[%s352 + $0x18] sm:$0xff]
    %v357 = vld [vmem:[%s352 + $0x20] sm:$0xff]
    %v358 = vld [vmem:[%s352 + $0x28] sm:$0xff]
    %v359 = vld [vmem:[%s352 + $0x30] sm:$0xff]
    %v360 = vld [vmem:[%s352 + $0x38] sm:$0xff]
    %s361 = scalar_lea.vmem %s4, 4
    %v362 = vld [vmem:[%s361] sm:$0x1]
    %v364 = vlaneseq
    %v365 = vshrl.u32 %v364, 7
    %v366 = vsub.s32 0, %v365
    %v367 = vrot.slane %v362, %v366
    %369 = vmatprep.subr.mxu0 0.0
    %370 = vmatpush1.msra.mxu0 %v353
    %371 = vmatprep.subr.mxu0 0.0
    %372 = vmatpush1.msra.mxu0 %v354
    %373 = vmatprep.subr.mxu0 0.0
    %374 = vmatpush1.msra.mxu0 %v355
    %375 = vmatprep.subr.mxu0 0.0
    %376 = vmatpush1.msra.mxu0 %v356
    %377 = vmatprep.subr.mxu0 0.0
    %378 = vmatpush1.msra.mxu0 %v357
    %379 = vmatprep.subr.mxu0 0.0
    %380 = vmatpush1.msra.mxu0 %v358
    %381 = vmatprep.subr.mxu0 0.0
    %382 = vmatpush1.msra.mxu0 %v359
    %383 = vmatprep.subr.mxu0 0.0
    %384 = vmatpush1.msra.mxu0 %v360
    %385 = vmatprep.subr.mxu0 0.0
    %386 = vmatpush1.msra.mxu0 0.0
    %387 = vmatprep.subr.mxu0 0.0
    %388 = vmatpush1.msra.mxu0 0.0
    %389 = vmatprep.subr.mxu0 0.0
    %390 = vmatpush1.msra.mxu0 0.0
    %391 = vmatprep.subr.mxu0 0.0
    %392 = vmatpush1.msra.mxu0 0.0
    %393 = vmatprep.subr.mxu0 0.0
    %394 = vmatpush1.msra.mxu0 0.0
    %395 = vmatprep.subr.mxu0 0.0
    %396 = vmatpush1.msra.mxu0 0.0
    %397 = vmatprep.subr.mxu0 0.0
    %398 = vmatpush1.msra.mxu0 0.0
    %399 = vmatprep.subr.mxu0 0.0
    %400 = vmatpush1.msra.mxu0 0.0
    %401 = vmatprep.subr.mxu0 0.0
    %402 = vmatpush1.msra.mxu0 0.0
    %403 = vmatprep.subr.mxu0 0.0
    %404 = vmatpush1.msra.mxu0 0.0
    %405 = vmatprep.subr.mxu0 0.0
    %406 = vmatpush1.msra.mxu0 0.0
    %407 = vmatprep.subr.mxu0 0.0
    %408 = vmatpush1.msra.mxu0 0.0
    %409 = vmatprep.subr.mxu0 0.0
    %410 = vmatpush1.msra.mxu0 0.0
    %411 = vmatprep.subr.mxu0 0.0
    %412 = vmatpush1.msra.mxu0 0.0
    %413 = vmatprep.subr.mxu0 0.0
    %414 = vmatpush1.msra.mxu0 0.0
    %415 = vmatprep.subr.mxu0 0.0
    %416 = vmatpush1.msra.mxu0 0.0
    %417 = vmatprep.subr.mxu0 0.0
    %418 = vmatpush1.msra.mxu0 0.0
    %419 = vmatprep.subr.mxu0 0.0
    %420 = vmatpush1.msra.mxu0 0.0
    %421 = vmatprep.subr.mxu0 0.0
    %422 = vmatpush1.msra.mxu0 0.0
    %423 = vmatprep.subr.mxu0 0.0
    %424 = vmatpush1.msra.mxu0 0.0
    %425 = vmatprep.subr.mxu0 0.0
    %426 = vmatpush1.msra.mxu0 0.0
    %427 = vmatprep.subr.mxu0 0.0
    %428 = vmatpush1.msra.mxu0 0.0
    %429 = vmatprep.subr.mxu0 0.0
    %430 = vmatpush1.msra.mxu0 0.0
    %431 = vmatprep.subr.mxu0 0.0
    %432 = vmatpush1.msra.mxu0 0.0
    %433 = vmatprep.mubr.f32.mxu0 0.0
    %434 = vmatmul.mubr.f32.gmra.mrb[0].mxu0 %v180
    %v435 = vpop.f32.mrb[0].mxu0
    %v436 = vadd.f32 %v367, %v435
    %v437 = vpop.f32.mrb[0].mxu0
    %438 = vmatprep.mubr.f32.mxu0 0.0
    %439 = vmatmul.mubr.f32.gmra.mrb[0].mxu0 %v183
    %v440 = vpop.f32.mrb[0].mxu0
    %v441 = vadd.f32 %v367, %v440
    %v442 = vpop.f32.mrb[0].mxu0
    %443 = vdwg.mxu0
    %v445 = vsel %vm65, %v252, 0
    %v448 = vsel %vm65, %v257, 0
    %v451 = vsel %vm65, %v344, 0
    %v454 = vsel %vm65, %v349, 0
    %456 = vmatprep.subr.mxu0 0.0
    %457 = vmatpush1.xpose.msra.mxu0 %v451
    %458 = vmatprep.subr.mxu0 0.0
    %459 = vmatpush1.xpose.msra.mxu0 %v454
    %460 = vmatprep.subr.mxu0 0.0
    %461 = vmatpush1.xpose.msra.mxu0 0.0
    %462 = vmatprep.subr.mxu0 0.0
    %463 = vmatpush1.xpose.msra.mxu0 0.0
    %464 = vmatprep.subr.mxu0 0.0
    %465 = vmatpush1.xpose.msra.mxu0 0.0
    %466 = vmatprep.subr.mxu0 0.0
    %467 = vmatpush1.xpose.msra.mxu0 0.0
    %468 = vmatprep.subr.mxu0 0.0
    %469 = vmatpush1.xpose.msra.mxu0 0.0
    %470 = vmatprep.subr.mxu0 0.0
    %471 = vmatpush1.xpose.msra.mxu0 0.0
    %472 = vmatprep.subr.mxu0 0.0
    %473 = vmatpush1.xpose.msra.mxu0 0.0
    %474 = vmatprep.subr.mxu0 0.0
    %475 = vmatpush1.xpose.msra.mxu0 0.0
    %476 = vmatprep.subr.mxu0 0.0
    %477 = vmatpush1.xpose.msra.mxu0 0.0
    %478 = vmatprep.subr.mxu0 0.0
    %479 = vmatpush1.xpose.msra.mxu0 0.0
    %480 = vmatprep.subr.mxu0 0.0
    %481 = vmatpush1.xpose.msra.mxu0 0.0
    %482 = vmatprep.subr.mxu0 0.0
    %483 = vmatpush1.xpose.msra.mxu0 0.0
    %484 = vmatprep.subr.mxu0 0.0
    %485 = vmatpush1.xpose.msra.mxu0 0.0
    %486 = vmatprep.subr.mxu0 0.0
    %487 = vmatpush1.xpose.msra.mxu0 0.0
    %488 = vmatprep.subr.mxu0 0.0
    %489 = vmatpush1.xpose.msra.mxu0 0.0
    %490 = vmatprep.subr.mxu0 0.0
    %491 = vmatpush1.xpose.msra.mxu0 0.0
    %492 = vmatprep.subr.mxu0 0.0
    %493 = vmatpush1.xpose.msra.mxu0 0.0
    %494 = vmatprep.subr.mxu0 0.0
    %495 = vmatpush1.xpose.msra.mxu0 0.0
    %496 = vmatprep.subr.mxu0 0.0
    %497 = vmatpush1.xpose.msra.mxu0 0.0
    %498 = vmatprep.subr.mxu0 0.0
    %499 = vmatpush1.xpose.msra.mxu0 0.0
    %500 = vmatprep.subr.mxu0 0.0
    %501 = vmatpush1.xpose.msra.mxu0 0.0
    %502 = vmatprep.subr.mxu0 0.0
    %503 = vmatpush1.xpose.msra.mxu0 0.0
    %504 = vmatprep.subr.mxu0 0.0
    %505 = vmatpush1.xpose.msra.mxu0 0.0
    %506 = vmatprep.subr.mxu0 0.0
    %507 = vmatpush1.xpose.msra.mxu0 0.0
    %508 = vmatprep.subr.mxu0 0.0
    %509 = vmatpush1.xpose.msra.mxu0 0.0
    %510 = vmatprep.subr.mxu0 0.0
    %511 = vmatpush1.xpose.msra.mxu0 0.0
    %512 = vmatprep.subr.mxu0 0.0
    %513 = vmatpush1.xpose.msra.mxu0 0.0
    %514 = vmatprep.subr.mxu0 0.0
    %515 = vmatpush1.xpose.msra.mxu0 0.0
    %516 = vmatprep.subr.mxu0 0.0
    %517 = vmatpush1.xpose.msra.mxu0 0.0
    %518 = vmatprep.subr.mxu0 0.0
    %519 = vmatpush1.xpose.msra.mxu0 0.0
    %520 = vmatprep.mubr.f32.mxu0 0.0
    %521 = vmatmul.mubr.f32.gmra.mrb[0].mxu0 %v445
    %v522 = vpop.f32.mrb[0].mxu0
    %v523 = vadd.f32 %v161, %v522
    %v524 = vpop.f32.mrb[0].mxu0
    %525 = vmatprep.mubr.f32.mxu0 0.0
    %526 = vmatmul.mubr.f32.gmra.mrb[0].mxu0 %v448
    %v527 = vpop.f32.mrb[0].mxu0
    %v528 = vadd.f32 %v162, %v527
    %v529 = vpop.f32.mrb[0].mxu0
    %530 = vdwg.mxu0
    %vm531 = vcmask 130048
    %v532 = vsel %vm531, %v523, -inf
    %533 = vmax.xlane.f32.xlu0 %v532
    %v534 = vpop.xlane.xlu0 %533
    %v535 = vsel %vm531, %v528, -inf
    %536 = vmax.xlane.f32.xlu0 %v535
    %v537 = vpop.xlane.xlu0 %536
    %v538 = vsub.f32 %v523, %v534
    %v539 = vsub.f32 %v528, %v537
    %v540 = vmul.f32 %v538, 1.442695
    %v541 = vpow.pop %v540
    %v542 = vmul.f32 %v539, 1.442695
    %v543 = vpow.pop %v542
    %v544 = vsel %vm531, %v541, 0.0
    %545 = vadd.xlane.f32.xlu0 %v544
    %v546 = vpop.xlane.xlu0 %545
    %v547 = vsel %vm531, %v543, 0.0
    %548 = vadd.xlane.f32.xlu0 %v547
    %v549 = vpop.xlane.xlu0 %548
    %v550 = vrcp.pop %v546
    %v551 = vrcp.pop %v549
    %v552 = vmul.f32 %v541, %v550
    %v553 = vmul.f32 %v543, %v551
    %v555 = vsel %vm531, %v552, 0
    %v558 = vsel %vm531, %v553, 0
    %560 = vmatprep.subr.mxu0 0.0
    %561 = vmatpush1.msra.mxu0 %v436
    %562 = vmatprep.subr.mxu0 0.0
    %563 = vmatpush1.msra.mxu0 %v441
    %564 = vmatprep.subr.mxu0 0.0
    %565 = vmatpush1.msra.mxu0 0.0
    %566 = vmatprep.subr.mxu0 0.0
    %567 = vmatpush1.msra.mxu0 0.0
    %568 = vmatprep.subr.mxu0 0.0
    %569 = vmatpush1.msra.mxu0 0.0
    %570 = vmatprep.subr.mxu0 0.0
    %571 = vmatpush1.msra.mxu0 0.0
    %572 = vmatprep.subr.mxu0 0.0
    %573 = vmatpush1.msra.mxu0 0.0
    %574 = vmatprep.subr.mxu0 0.0
    %575 = vmatpush1.msra.mxu0 0.0
    %576 = vmatprep.subr.mxu0 0.0
    %577 = vmatpush1.msra.mxu0 0.0
    %578 = vmatprep.subr.mxu0 0.0
    %579 = vmatpush1.msra.mxu0 0.0
    %580 = vmatprep.subr.mxu0 0.0
    %581 = vmatpush1.msra.mxu0 0.0
    %582 = vmatprep.subr.mxu0 0.0
    %583 = vmatpush1.msra.mxu0 0.0
    %584 = vmatprep.subr.mxu0 0.0
    %585 = vmatpush1.msra.mxu0 0.0
    %586 = vmatprep.subr.mxu0 0.0
    %587 = vmatpush1.msra.mxu0 0.0
    %588 = vmatprep.subr.mxu0 0.0
    %589 = vmatpush1.msra.mxu0 0.0
    %590 = vmatprep.subr.mxu0 0.0
    %591 = vmatpush1.msra.mxu0 0.0
    %592 = vmatprep.subr.mxu0 0.0
    %593 = vmatpush1.msra.mxu0 0.0
    %594 = vmatprep.subr.mxu0 0.0
    %595 = vmatpush1.msra.mxu0 0.0
    %596 = vmatprep.subr.mxu0 0.0
    %597 = vmatpush1.msra.mxu0 0.0
    %598 = vmatprep.subr.mxu0 0.0
    %599 = vmatpush1.msra.mxu0 0.0
    %600 = vmatprep.subr.mxu0 0.0
    %601 = vmatpush1.msra.mxu0 0.0
    %602 = vmatprep.subr.mxu0 0.0
    %603 = vmatpush1.msra.mxu0 0.0
    %604 = vmatprep.subr.mxu0 0.0
    %605 = vmatpush1.msra.mxu0 0.0
    %606 = vmatprep.subr.mxu0 0.0
    %607 = vmatpush1.msra.mxu0 0.0
    %608 = vmatprep.subr.mxu0 0.0
    %609 = vmatpush1.msra.mxu0 0.0
    %610 = vmatprep.subr.mxu0 0.0
    %611 = vmatpush1.msra.mxu0 0.0
    %612 = vmatprep.subr.mxu0 0.0
    %613 = vmatpush1.msra.mxu0 0.0
    %614 = vmatprep.subr.mxu0 0.0
    %615 = vmatpush1.msra.mxu0 0.0
    %616 = vmatprep.subr.mxu0 0.0
    %617 = vmatpush1.msra.mxu0 0.0
    %618 = vmatprep.subr.mxu0 0.0
    %619 = vmatpush1.msra.mxu0 0.0
    %620 = vmatprep.subr.mxu0 0.0
    %621 = vmatpush1.msra.mxu0 0.0
    %622 = vmatprep.subr.mxu0 0.0
    %623 = vmatpush1.msra.mxu0 0.0
    %624 = vmatprep.mubr.f32.mxu0 0.0
    %625 = vmatmul.mubr.f32.gmra.mrb[0].mxu0 %v555
    %v626 = vpop.f32.mrb[0].mxu0
    %v627 = vadd.f32 0.0, %v626
    %v628 = vpop.f32.mrb[0].mxu0
    %629 = vmatprep.mubr.f32.mxu0 0.0
    %630 = vmatmul.mubr.f32.gmra.mrb[0].mxu0 %v558
    %v631 = vpop.f32.mrb[0].mxu0
    %v632 = vadd.f32 0.0, %v631
    %v633 = vpop.f32.mrb[0].mxu0
    %634 = vdwg.mxu0
    %v635 = vld [vmem:[%s5] sm:$0xff]
    %v636 = vld [vmem:[%s5 + $0x8] sm:$0xff]
    %v637 = vld [vmem:[%s5 + $0x10] sm:$0xff]
    %v638 = vld [vmem:[%s5 + $0x18] sm:$0xff]
    %s639 = scalar_lea.vmem %s3, 64
    %v640 = vld [vmem:[%s639] sm:$0xff]
    %v641 = vld [vmem:[%s639 + $0x8] sm:$0xff]
    %v642 = vld [vmem:[%s639 + $0x10] sm:$0xff]
    %v643 = vld [vmem:[%s639 + $0x18] sm:$0xff]
    %v644 = vld [vmem:[%s639 + $0x20] sm:$0xff]
    %v645 = vld [vmem:[%s639 + $0x28] sm:$0xff]
    %v646 = vld [vmem:[%s639 + $0x30] sm:$0xff]
    %v647 = vld [vmem:[%s639 + $0x38] sm:$0xff]
    %s648 = scalar_lea.vmem %s4, 1
    %v649 = vld [vmem:[%s648] sm:$0x1]
    %v651 = vlaneseq
    %v652 = vshrl.u32 %v651, 7
    %v653 = vsub.s32 0, %v652
    %v654 = vrot.slane %v649, %v653
    %656 = vmatprep.subr.mxu0 0.0
    %657 = vmatpush1.msra.mxu0 %v640
    %658 = vmatprep.subr.mxu0 0.0
    %659 = vmatpush1.msra.mxu0 %v641
    %660 = vmatprep.subr.mxu0 0.0
    %661 = vmatpush1.msra.mxu0 %v642
    %662 = vmatprep.subr.mxu0 0.0
    %663 = vmatpush1.msra.mxu0 %v643
    %664 = vmatprep.subr.mxu0 0.0
    %665 = vmatpush1.msra.mxu0 %v644
    %666 = vmatprep.subr.mxu0 0.0
    %667 = vmatpush1.msra.mxu0 %v645
    %668 = vmatprep.subr.mxu0 0.0
    %669 = vmatpush1.msra.mxu0 %v646
    %670 = vmatprep.subr.mxu0 0.0
    %671 = vmatpush1.msra.mxu0 %v647
    %672 = vmatprep.subr.mxu0 0.0
    %673 = vmatpush1.msra.mxu0 0.0
    %674 = vmatprep.subr.mxu0 0.0
    %675 = vmatpush1.msra.mxu0 0.0
    %676 = vmatprep.subr.mxu0 0.0
    %677 = vmatpush1.msra.mxu0 0.0
    %678 = vmatprep.subr.mxu0 0.0
    %679 = vmatpush1.msra.mxu0 0.0
    %680 = vmatprep.subr.mxu0 0.0
    %681 = vmatpush1.msra.mxu0 0.0
    %682 = vmatprep.subr.mxu0 0.0
    %683 = vmatpush1.msra.mxu0 0.0
    %684 = vmatprep.subr.mxu0 0.0
    %685 = vmatpush1.msra.mxu0 0.0
    %686 = vmatprep.subr.mxu0 0.0
    %687 = vmatpush1.msra.mxu0 0.0
    %688 = vmatprep.subr.mxu0 0.0
    %689 = vmatpush1.msra.mxu0 0.0
    %690 = vmatprep.subr.mxu0 0.0
    %691 = vmatpush1.msra.mxu0 0.0
    %692 = vmatprep.subr.mxu0 0.0
    %693 = vmatpush1.msra.mxu0 0.0
    %694 = vmatprep.subr.mxu0 0.0
    %695 = vmatpush1.msra.mxu0 0.0
    %696 = vmatprep.subr.mxu0 0.0
    %697 = vmatpush1.msra.mxu0 0.0
    %698 = vmatprep.subr.mxu0 0.0
    %699 = vmatpush1.msra.mxu0 0.0
    %700 = vmatprep.subr.mxu0 0.0
    %701 = vmatpush1.msra.mxu0 0.0
    %702 = vmatprep.subr.mxu0 0.0
    %703 = vmatpush1.msra.mxu0 0.0
    %704 = vmatprep.subr.mxu0 0.0
    %705 = vmatpush1.msra.mxu0 0.0
    %706 = vmatprep.subr.mxu0 0.0
    %707 = vmatpush1.msra.mxu0 0.0
    %708 = vmatprep.subr.mxu0 0.0
    %709 = vmatpush1.msra.mxu0 0.0
    %710 = vmatprep.subr.mxu0 0.0
    %711 = vmatpush1.msra.mxu0 0.0
    %712 = vmatprep.subr.mxu0 0.0
    %713 = vmatpush1.msra.mxu0 0.0
    %714 = vmatprep.subr.mxu0 0.0
    %715 = vmatpush1.msra.mxu0 0.0
    %716 = vmatprep.subr.mxu0 0.0
    %717 = vmatpush1.msra.mxu0 0.0
    %718 = vmatprep.subr.mxu0 0.0
    %719 = vmatpush1.msra.mxu0 0.0
    %720 = vmatprep.mubr.f32.mxu0 0.0
    %721 = vmatmul.mubr.f32.gmra.mrb[0].mxu0 %v180
    %v722 = vpop.f32.mrb[0].mxu0
    %v723 = vadd.f32 %v654, %v722
    %v724 = vpop.f32.mrb[0].mxu0
    %725 = vmatprep.mubr.f32.mxu0 0.0
    %726 = vmatmul.mubr.f32.gmra.mrb[0].mxu0 %v183
    %v727 = vpop.f32.mrb[0].mxu0
    %v728 = vadd.f32 %v654, %v727
    %v729 = vpop.f32.mrb[0].mxu0
    %730 = vdwg.mxu0
    %s731 = scalar_lea.vmem %s3, 192
    %v732 = vld [vmem:[%s731] sm:$0xff]
    %v733 = vld [vmem:[%s731 + $0x8] sm:$0xff]
    %v734 = vld [vmem:[%s731 + $0x10] sm:$0xff]
    %v735 = vld [vmem:[%s731 + $0x18] sm:$0xff]
    %v736 = vld [vmem:[%s731 + $0x20] sm:$0xff]
    %v737 = vld [vmem:[%s731 + $0x28] sm:$0xff]
    %v738 = vld [vmem:[%s731 + $0x30] sm:$0xff]
    %v739 = vld [vmem:[%s731 + $0x38] sm:$0xff]
    %s740 = scalar_lea.vmem %s4, 3
    %v741 = vld [vmem:[%s740] sm:$0x1]
    %v743 = vlaneseq
    %v744 = vshrl.u32 %v743, 7
    %v745 = vsub.s32 0, %v744
    %v746 = vrot.slane %v741, %v745
    %748 = vmatprep.subr.mxu0 0.0
    %749 = vmatpush1.msra.mxu0 %v732
    %750 = vmatprep.subr.mxu0 0.0
    %751 = vmatpush1.msra.mxu0 %v733
    %752 = vmatprep.subr.mxu0 0.0
    %753 = vmatpush1.msra.mxu0 %v734
    %754 = vmatprep.subr.mxu0 0.0
    %755 = vmatpush1.msra.mxu0 %v735
    %756 = vmatprep.subr.mxu0 0.0
    %757 = vmatpush1.msra.mxu0 %v736
    %758 = vmatprep.subr.mxu0 0.0
    %759 = vmatpush1.msra.mxu0 %v737
    %760 = vmatprep.subr.mxu0 0.0
    %761 = vmatpush1.msra.mxu0 %v738
    %762 = vmatprep.subr.mxu0 0.0
    %763 = vmatpush1.msra.mxu0 %v739
    %764 = vmatprep.subr.mxu0 0.0
    %765 = vmatpush1.msra.mxu0 0.0
    %766 = vmatprep.subr.mxu0 0.0
    %767 = vmatpush1.msra.mxu0 0.0
    %768 = vmatprep.subr.mxu0 0.0
    %769 = vmatpush1.msra.mxu0 0.0
    %770 = vmatprep.subr.mxu0 0.0
    %771 = vmatpush1.msra.mxu0 0.0
    %772 = vmatprep.subr.mxu0 0.0
    %773 = vmatpush1.msra.mxu0 0.0
    %774 = vmatprep.subr.mxu0 0.0
    %775 = vmatpush1.msra.mxu0 0.0
    %776 = vmatprep.subr.mxu0 0.0
    %777 = vmatpush1.msra.mxu0 0.0
    %778 = vmatprep.subr.mxu0 0.0
    %779 = vmatpush1.msra.mxu0 0.0
    %780 = vmatprep.subr.mxu0 0.0
    %781 = vmatpush1.msra.mxu0 0.0
    %782 = vmatprep.subr.mxu0 0.0
    %783 = vmatpush1.msra.mxu0 0.0
    %784 = vmatprep.subr.mxu0 0.0
    %785 = vmatpush1.msra.mxu0 0.0
    %786 = vmatprep.subr.mxu0 0.0
    %787 = vmatpush1.msra.mxu0 0.0
    %788 = vmatprep.subr.mxu0 0.0
    %789 = vmatpush1.msra.mxu0 0.0
    %790 = vmatprep.subr.mxu0 0.0
    %791 = vmatpush1.msra.mxu0 0.0
    %792 = vmatprep.subr.mxu0 0.0
    %793 = vmatpush1.msra.mxu0 0.0
    %794 = vmatprep.subr.mxu0 0.0
    %795 = vmatpush1.msra.mxu0 0.0
    %796 = vmatprep.subr.mxu0 0.0
    %797 = vmatpush1.msra.mxu0 0.0
    %798 = vmatprep.subr.mxu0 0.0
    %799 = vmatpush1.msra.mxu0 0.0
    %800 = vmatprep.subr.mxu0 0.0
    %801 = vmatpush1.msra.mxu0 0.0
    %802 = vmatprep.subr.mxu0 0.0
    %803 = vmatpush1.msra.mxu0 0.0
    %804 = vmatprep.subr.mxu0 0.0
    %805 = vmatpush1.msra.mxu0 0.0
    %806 = vmatprep.subr.mxu0 0.0
    %807 = vmatpush1.msra.mxu0 0.0
    %808 = vmatprep.subr.mxu0 0.0
    %809 = vmatpush1.msra.mxu0 0.0
    %810 = vmatprep.subr.mxu0 0.0
    %811 = vmatpush1.msra.mxu0 0.0
    %812 = vmatprep.mubr.f32.mxu0 0.0
    %813 = vmatmul.mubr.f32.gmra.mrb[0].mxu0 %v180
    %v814 = vpop.f32.mrb[0].mxu0
    %v815 = vadd.f32 %v746, %v814
    %v816 = vpop.f32.mrb[0].mxu0
    %817 = vmatprep.mubr.f32.mxu0 0.0
    %818 = vmatmul.mubr.f32.gmra.mrb[0].mxu0 %v183
    %v819 = vpop.f32.mrb[0].mxu0
    %v820 = vadd.f32 %v746, %v819
    %v821 = vpop.f32.mrb[0].mxu0
    %822 = vdwg.mxu0
    %s823 = scalar_lea.vmem %s3, 320
    %v824 = vld [vmem:[%s823] sm:$0xff]
    %v825 = vld [vmem:[%s823 + $0x8] sm:$0xff]
    %v826 = vld [vmem:[%s823 + $0x10] sm:$0xff]
    %v827 = vld [vmem:[%s823 + $0x18] sm:$0xff]
    %v828 = vld [vmem:[%s823 + $0x20] sm:$0xff]
    %v829 = vld [vmem:[%s823 + $0x28] sm:$0xff]
    %v830 = vld [vmem:[%s823 + $0x30] sm:$0xff]
    %v831 = vld [vmem:[%s823 + $0x38] sm:$0xff]
    %s832 = scalar_lea.vmem %s4, 5
    %v833 = vld [vmem:[%s832] sm:$0x1]
    %v835 = vlaneseq
    %v836 = vshrl.u32 %v835, 7
    %v837 = vsub.s32 0, %v836
    %v838 = vrot.slane %v833, %v837
    %840 = vmatprep.subr.mxu0 0.0
    %841 = vmatpush1.msra.mxu0 %v824
    %842 = vmatprep.subr.mxu0 0.0
    %843 = vmatpush1.msra.mxu0 %v825
    %844 = vmatprep.subr.mxu0 0.0
    %845 = vmatpush1.msra.mxu0 %v826
    %846 = vmatprep.subr.mxu0 0.0
    %847 = vmatpush1.msra.mxu0 %v827
    %848 = vmatprep.subr.mxu0 0.0
    %849 = vmatpush1.msra.mxu0 %v828
    %850 = vmatprep.subr.mxu0 0.0
    %851 = vmatpush1.msra.mxu0 %v829
    %852 = vmatprep.subr.mxu0 0.0
    %853 = vmatpush1.msra.mxu0 %v830
    %854 = vmatprep.subr.mxu0 0.0
    %855 = vmatpush1.msra.mxu0 %v831
    %856 = vmatprep.subr.mxu0 0.0
    %857 = vmatpush1.msra.mxu0 0.0
    %858 = vmatprep.subr.mxu0 0.0
    %859 = vmatpush1.msra.mxu0 0.0
    %860 = vmatprep.subr.mxu0 0.0
    %861 = vmatpush1.msra.mxu0 0.0
    %862 = vmatprep.subr.mxu0 0.0
    %863 = vmatpush1.msra.mxu0 0.0
    %864 = vmatprep.subr.mxu0 0.0
    %865 = vmatpush1.msra.mxu0 0.0
    %866 = vmatprep.subr.mxu0 0.0
    %867 = vmatpush1.msra.mxu0 0.0
    %868 = vmatprep.subr.mxu0 0.0
    %869 = vmatpush1.msra.mxu0 0.0
    %870 = vmatprep.subr.mxu0 0.0
    %871 = vmatpush1.msra.mxu0 0.0
    %872 = vmatprep.subr.mxu0 0.0
    %873 = vmatpush1.msra.mxu0 0.0
    %874 = vmatprep.subr.mxu0 0.0
    %875 = vmatpush1.msra.mxu0 0.0
    %876 = vmatprep.subr.mxu0 0.0
    %877 = vmatpush1.msra.mxu0 0.0
    %878 = vmatprep.subr.mxu0 0.0
    %879 = vmatpush1.msra.mxu0 0.0
    %880 = vmatprep.subr.mxu0 0.0
    %881 = vmatpush1.msra.mxu0 0.0
    %882 = vmatprep.subr.mxu0 0.0
    %883 = vmatpush1.msra.mxu0 0.0
    %884 = vmatprep.subr.mxu0 0.0
    %885 = vmatpush1.msra.mxu0 0.0
    %886 = vmatprep.subr.mxu0 0.0
    %887 = vmatpush1.msra.mxu0 0.0
    %888 = vmatprep.subr.mxu0 0.0
    %889 = vmatpush1.msra.mxu0 0.0
    %890 = vmatprep.subr.mxu0 0.0
    %891 = vmatpush1.msra.mxu0 0.0
    %892 = vmatprep.subr.mxu0 0.0
    %893 = vmatpush1.msra.mxu0 0.0
    %894 = vmatprep.subr.mxu0 0.0
    %895 = vmatpush1.msra.mxu0 0.0
    %896 = vmatprep.subr.mxu0 0.0
    %897 = vmatpush1.msra.mxu0 0.0
    %898 = vmatprep.subr.mxu0 0.0
    %899 = vmatpush1.msra.mxu0 0.0
    %900 = vmatprep.subr.mxu0 0.0
    %901 = vmatpush1.msra.mxu0 0.0
    %902 = vmatprep.subr.mxu0 0.0
    %903 = vmatpush1.msra.mxu0 0.0
    %904 = vmatprep.mubr.f32.mxu0 0.0
    %905 = vmatmul.mubr.f32.gmra.mrb[0].mxu0 %v180
    %v906 = vpop.f32.mrb[0].mxu0
    %v907 = vadd.f32 %v838, %v906
    %v908 = vpop.f32.mrb[0].mxu0
    %909 = vmatprep.mubr.f32.mxu0 0.0
    %910 = vmatmul.mubr.f32.gmra.mrb[0].mxu0 %v183
    %v911 = vpop.f32.mrb[0].mxu0
    %v912 = vadd.f32 %v838, %v911
    %v913 = vpop.f32.mrb[0].mxu0
    %914 = vdwg.mxu0
    %v916 = vsel %vm65, %v723, 0
    %v919 = vsel %vm65, %v728, 0
    %v922 = vsel %vm65, %v815, 0
    %v925 = vsel %vm65, %v820, 0
    %927 = vmatprep.subr.mxu0 0.0
    %928 = vmatpush1.xpose.msra.mxu0 %v922
    %929 = vmatprep.subr.mxu0 0.0
    %930 = vmatpush1.xpose.msra.mxu0 %v925
    %931 = vmatprep.subr.mxu0 0.0
    %932 = vmatpush1.xpose.msra.mxu0 0.0
    %933 = vmatprep.subr.mxu0 0.0
    %934 = vmatpush1.xpose.msra.mxu0 0.0
    %935 = vmatprep.subr.mxu0 0.0
    %936 = vmatpush1.xpose.msra.mxu0 0.0
    %937 = vmatprep.subr.mxu0 0.0
    %938 = vmatpush1.xpose.msra.mxu0 0.0
    %939 = vmatprep.subr.mxu0 0.0
    %940 = vmatpush1.xpose.msra.mxu0 0.0
    %941 = vmatprep.subr.mxu0 0.0
    %942 = vmatpush1.xpose.msra.mxu0 0.0
    %943 = vmatprep.subr.mxu0 0.0
    %944 = vmatpush1.xpose.msra.mxu0 0.0
    %945 = vmatprep.subr.mxu0 0.0
    %946 = vmatpush1.xpose.msra.mxu0 0.0
    %947 = vmatprep.subr.mxu0 0.0
    %948 = vmatpush1.xpose.msra.mxu0 0.0
    %949 = vmatprep.subr.mxu0 0.0
    %950 = vmatpush1.xpose.msra.mxu0 0.0
    %951 = vmatprep.subr.mxu0 0.0
    %952 = vmatpush1.xpose.msra.mxu0 0.0
    %953 = vmatprep.subr.mxu0 0.0
    %954 = vmatpush1.xpose.msra.mxu0 0.0
    %955 = vmatprep.subr.mxu0 0.0
    %956 = vmatpush1.xpose.msra.mxu0 0.0
    %957 = vmatprep.subr.mxu0 0.0
    %958 = vmatpush1.xpose.msra.mxu0 0.0
    %959 = vmatprep.subr.mxu0 0.0
    %960 = vmatpush1.xpose.msra.mxu0 0.0
    %961 = vmatprep.subr.mxu0 0.0
    %962 = vmatpush1.xpose.msra.mxu0 0.0
    %963 = vmatprep.subr.mxu0 0.0
    %964 = vmatpush1.xpose.msra.mxu0 0.0
    %965 = vmatprep.subr.mxu0 0.0
    %966 = vmatpush1.xpose.msra.mxu0 0.0
    %967 = vmatprep.subr.mxu0 0.0
    %968 = vmatpush1.xpose.msra.mxu0 0.0
    %969 = vmatprep.subr.mxu0 0.0
    %970 = vmatpush1.xpose.msra.mxu0 0.0
    %971 = vmatprep.subr.mxu0 0.0
    %972 = vmatpush1.xpose.msra.mxu0 0.0
    %973 = vmatprep.subr.mxu0 0.0
    %974 = vmatpush1.xpose.msra.mxu0 0.0
    %975 = vmatprep.subr.mxu0 0.0
    %976 = vmatpush1.xpose.msra.mxu0 0.0
    %977 = vmatprep.subr.mxu0 0.0
    %978 = vmatpush1.xpose.msra.mxu0 0.0
    %979 = vmatprep.subr.mxu0 0.0
    %980 = vmatpush1.xpose.msra.mxu0 0.0
    %981 = vmatprep.subr.mxu0 0.0
    %982 = vmatpush1.xpose.msra.mxu0 0.0
    %983 = vmatprep.subr.mxu0 0.0
    %984 = vmatpush1.xpose.msra.mxu0 0.0
    %985 = vmatprep.subr.mxu0 0.0
    %986 = vmatpush1.xpose.msra.mxu0 0.0
    %987 = vmatprep.subr.mxu0 0.0
    %988 = vmatpush1.xpose.msra.mxu0 0.0
    %989 = vmatprep.subr.mxu0 0.0
    %990 = vmatpush1.xpose.msra.mxu0 0.0
    %991 = vmatprep.mubr.f32.mxu0 0.0
    %992 = vmatmul.mubr.f32.gmra.mrb[0].mxu0 %v916
    %v993 = vpop.f32.mrb[0].mxu0
    %v994 = vadd.f32 %v161, %v993
    %v995 = vpop.f32.mrb[0].mxu0
    %996 = vmatprep.mubr.f32.mxu0 0.0
    %997 = vmatmul.mubr.f32.gmra.mrb[0].mxu0 %v919
    %v998 = vpop.f32.mrb[0].mxu0
    %v999 = vadd.f32 %v162, %v998
    %v1000 = vpop.f32.mrb[0].mxu0
    %1001 = vdwg.mxu0
    %v1002 = vsel %vm531, %v994, -inf
    %1003 = vmax.xlane.f32.xlu0 %v1002
    %v1004 = vpop.xlane.xlu0 %1003
    %v1005 = vsel %vm531, %v999, -inf
    %1006 = vmax.xlane.f32.xlu0 %v1005
    %v1007 = vpop.xlane.xlu0 %1006
    %v1008 = vsub.f32 %v994, %v1004
    %v1009 = vsub.f32 %v999, %v1007
    %v1010 = vmul.f32 %v1008, 1.442695
    %v1011 = vpow.pop %v1010
    %v1012 = vmul.f32 %v1009, 1.442695
    %v1013 = vpow.pop %v1012
    %v1014 = vsel %vm531, %v1011, 0.0
    %1015 = vadd.xlane.f32.xlu0 %v1014
    %v1016 = vpop.xlane.xlu0 %1015
    %v1017 = vsel %vm531, %v1013, 0.0
    %1018 = vadd.xlane.f32.xlu0 %v1017
    %v1019 = vpop.xlane.xlu0 %1018
    %v1020 = vrcp.pop %v1016
    %v1021 = vrcp.pop %v1019
    %v1022 = vmul.f32 %v1011, %v1020
    %v1023 = vmul.f32 %v1013, %v1021
    %v1025 = vsel %vm531, %v1022, 0
    %v1028 = vsel %vm531, %v1023, 0
    %1030 = vmatprep.subr.mxu0 0.0
    %1031 = vmatpush1.msra.mxu0 %v907
    %1032 = vmatprep.subr.mxu0 0.0
    %1033 = vmatpush1.msra.mxu0 %v912
    %1034 = vmatprep.subr.mxu0 0.0
    %1035 = vmatpush1.msra.mxu0 0.0
    %1036 = vmatprep.subr.mxu0 0.0
    %1037 = vmatpush1.msra.mxu0 0.0
    %1038 = vmatprep.subr.mxu0 0.0
    %1039 = vmatpush1.msra.mxu0 0.0
    %1040 = vmatprep.subr.mxu0 0.0
    %1041 = vmatpush1.msra.mxu0 0.0
    %1042 = vmatprep.subr.mxu0 0.0
    %1043 = vmatpush1.msra.mxu0 0.0
    %1044 = vmatprep.subr.mxu0 0.0
    %1045 = vmatpush1.msra.mxu0 0.0
    %1046 = vmatprep.subr.mxu0 0.0
    %1047 = vmatpush1.msra.mxu0 0.0
    %1048 = vmatprep.subr.mxu0 0.0
    %1049 = vmatpush1.msra.mxu0 0.0
    %1050 = vmatprep.subr.mxu0 0.0
    %1051 = vmatpush1.msra.mxu0 0.0
    %1052 = vmatprep.subr.mxu0 0.0
    %1053 = vmatpush1.msra.mxu0 0.0
    %1054 = vmatprep.subr.mxu0 0.0
    %1055 = vmatpush1.msra.mxu0 0.0
    %1056 = vmatprep.subr.mxu0 0.0
    %1057 = vmatpush1.msra.mxu0 0.0
    %1058 = vmatprep.subr.mxu0 0.0
    %1059 = vmatpush1.msra.mxu0 0.0
    %1060 = vmatprep.subr.mxu0 0.0
    %1061 = vmatpush1.msra.mxu0 0.0
    %1062 = vmatprep.subr.mxu0 0.0
    %1063 = vmatpush1.msra.mxu0 0.0
    %1064 = vmatprep.subr.mxu0 0.0
    %1065 = vmatpush1.msra.mxu0 0.0
    %1066 = vmatprep.subr.mxu0 0.0
    %1067 = vmatpush1.msra.mxu0 0.0
    %1068 = vmatprep.subr.mxu0 0.0
    %1069 = vmatpush1.msra.mxu0 0.0
    %1070 = vmatprep.subr.mxu0 0.0
    %1071 = vmatpush1.msra.mxu0 0.0
    %1072 = vmatprep.subr.mxu0 0.0
    %1073 = vmatpush1.msra.mxu0 0.0
    %1074 = vmatprep.subr.mxu0 0.0
    %1075 = vmatpush1.msra.mxu0 0.0
    %1076 = vmatprep.subr.mxu0 0.0
    %1077 = vmatpush1.msra.mxu0 0.0
    %1078 = vmatprep.subr.mxu0 0.0
    %1079 = vmatpush1.msra.mxu0 0.0
    %1080 = vmatprep.subr.mxu0 0.0
    %1081 = vmatpush1.msra.mxu0 0.0
    %1082 = vmatprep.subr.mxu0 0.0
    %1083 = vmatpush1.msra.mxu0 0.0
    %1084 = vmatprep.subr.mxu0 0.0
    %1085 = vmatpush1.msra.mxu0 0.0
    %1086 = vmatprep.subr.mxu0 0.0
    %1087 = vmatpush1.msra.mxu0 0.0
    %1088 = vmatprep.subr.mxu0 0.0
    %1089 = vmatpush1.msra.mxu0 0.0
    %1090 = vmatprep.subr.mxu0 0.0
    %1091 = vmatpush1.msra.mxu0 0.0
    %1092 = vmatprep.subr.mxu0 0.0
    %1093 = vmatpush1.msra.mxu0 0.0
    %1094 = vmatprep.mubr.f32.mxu0 0.0
    %1095 = vmatmul.mubr.f32.gmra.mrb[0].mxu0 %v1025
    %v1096 = vpop.f32.mrb[0].mxu0
    %v1097 = vadd.f32 0.0, %v1096
    %v1098 = vpop.f32.mrb[0].mxu0
    %1099 = vmatprep.mubr.f32.mxu0 0.0
    %1100 = vmatmul.mubr.f32.gmra.mrb[0].mxu0 %v1028
    %v1101 = vpop.f32.mrb[0].mxu0
    %v1102 = vadd.f32 0.0, %v1101
    %v1103 = vpop.f32.mrb[0].mxu0
    %1104 = vdwg.mxu0
    %s1105 = scalar_lea.vmem %s5, 32
    %v1106 = vld [vmem:[%s1105] sm:$0xff]
    %v1107 = vld [vmem:[%s1105 + $0x8] sm:$0xff]
    %v1108 = vld [vmem:[%s1105 + $0x10] sm:$0xff]
    %v1109 = vld [vmem:[%s1105 + $0x18] sm:$0xff]
    %v1111 = vsel %vm65, %v1097, 0
    %v1114 = vsel %vm65, %v1102, 0
    %1116 = vmatprep.subr.mxu0 0.0
    %1117 = vmatpush1.msra.mxu0 %v1106
    %1118 = vmatprep.subr.mxu0 0.0
    %1119 = vmatpush1.msra.mxu0 %v1107
    %1120 = vmatprep.subr.mxu0 0.0
    %1121 = vmatpush1.msra.mxu0 %v1108
    %1122 = vmatprep.subr.mxu0 0.0
    %1123 = vmatpush1.msra.mxu0 %v1109
    %1124 = vmatprep.subr.mxu0 0.0
    %1125 = vmatpush1.msra.mxu0 0.0
    %1126 = vmatprep.subr.mxu0 0.0
    %1127 = vmatpush1.msra.mxu0 0.0
    %1128 = vmatprep.subr.mxu0 0.0
    %1129 = vmatpush1.msra.mxu0 0.0
    %1130 = vmatprep.subr.mxu0 0.0
    %1131 = vmatpush1.msra.mxu0 0.0
    %1132 = vmatprep.subr.mxu0 0.0
    %1133 = vmatpush1.msra.mxu0 0.0
    %1134 = vmatprep.subr.mxu0 0.0
    %1135 = vmatpush1.msra.mxu0 0.0
    %1136 = vmatprep.subr.mxu0 0.0
    %1137 = vmatpush1.msra.mxu0 0.0
    %1138 = vmatprep.subr.mxu0 0.0
    %1139 = vmatpush1.msra.mxu0 0.0
    %1140 = vmatprep.subr.mxu0 0.0
    %1141 = vmatpush1.msra.mxu0 0.0
    %1142 = vmatprep.subr.mxu0 0.0
    %1143 = vmatpush1.msra.mxu0 0.0
    %1144 = vmatprep.subr.mxu0 0.0
    %1145 = vmatpush1.msra.mxu0 0.0
    %1146 = vmatprep.subr.mxu0 0.0
    %1147 = vmatpush1.msra.mxu0 0.0
    %1148 = vmatprep.subr.mxu0 0.0
    %1149 = vmatpush1.msra.mxu0 0.0
    %1150 = vmatprep.subr.mxu0 0.0
    %1151 = vmatpush1.msra.mxu0 0.0
    %1152 = vmatprep.subr.mxu0 0.0
    %1153 = vmatpush1.msra.mxu0 0.0
    %1154 = vmatprep.subr.mxu0 0.0
    %1155 = vmatpush1.msra.mxu0 0.0
    %1156 = vmatprep.subr.mxu0 0.0
    %1157 = vmatpush1.msra.mxu0 0.0
    %1158 = vmatprep.subr.mxu0 0.0
    %1159 = vmatpush1.msra.mxu0 0.0
    %1160 = vmatprep.subr.mxu0 0.0
    %1161 = vmatpush1.msra.mxu0 0.0
    %1162 = vmatprep.subr.mxu0 0.0
    %1163 = vmatpush1.msra.mxu0 0.0
    %1164 = vmatprep.subr.mxu0 0.0
    %1165 = vmatpush1.msra.mxu0 0.0
    %1166 = vmatprep.subr.mxu0 0.0
    %1167 = vmatpush1.msra.mxu0 0.0
    %1168 = vmatprep.subr.mxu0 0.0
    %1169 = vmatpush1.msra.mxu0 0.0
    %1170 = vmatprep.subr.mxu0 0.0
    %1171 = vmatpush1.msra.mxu0 0.0
    %1172 = vmatprep.subr.mxu0 0.0
    %1173 = vmatpush1.msra.mxu0 0.0
    %1174 = vmatprep.subr.mxu0 0.0
    %1175 = vmatpush1.msra.mxu0 0.0
    %1176 = vmatprep.subr.mxu0 0.0
    %1177 = vmatpush1.msra.mxu0 0.0
    %1178 = vmatprep.subr.mxu0 0.0
    %1179 = vmatpush1.msra.mxu0 0.0
    %1180 = vmatprep.mubr.f32.mxu0 0.0
    %1181 = vmatmul.mubr.f32.gmra.mrb[0].mxu0 %v1111
    %v1182 = vpop.f32.mrb[0].mxu0
    %v1183 = vadd.f32 0.0, %v1182
    %v1184 = vpop.f32.mrb[0].mxu0
    %1185 = vmatprep.mubr.f32.mxu0 0.0
    %1186 = vmatmul.mubr.f32.gmra.mrb[0].mxu0 %v1114
    %v1187 = vpop.f32.mrb[0].mxu0
    %v1188 = vadd.f32 0.0, %v1187
    %v1189 = vpop.f32.mrb[0].mxu0
    %1190 = vdwg.mxu0
    %v1192 = vsel %vm65, %v627, 0
    %v1195 = vsel %vm65, %v632, 0
    %1197 = vmatprep.subr.mxu0 0.0
    %1198 = vmatpush1.msra.mxu0 %v635
    %1199 = vmatprep.subr.mxu0 0.0
    %1200 = vmatpush1.msra.mxu0 %v636
    %1201 = vmatprep.subr.mxu0 0.0
    %1202 = vmatpush1.msra.mxu0 %v637
    %1203 = vmatprep.subr.mxu0 0.0
    %1204 = vmatpush1.msra.mxu0 %v638
    %1205 = vmatprep.subr.mxu0 0.0
    %1206 = vmatpush1.msra.mxu0 0.0
    %1207 = vmatprep.subr.mxu0 0.0
    %1208 = vmatpush1.msra.mxu0 0.0
    %1209 = vmatprep.subr.mxu0 0.0
    %1210 = vmatpush1.msra.mxu0 0.0
    %1211 = vmatprep.subr.mxu0 0.0
    %1212 = vmatpush1.msra.mxu0 0.0
    %1213 = vmatprep.subr.mxu0 0.0
    %1214 = vmatpush1.msra.mxu0 0.0
    %1215 = vmatprep.subr.mxu0 0.0
    %1216 = vmatpush1.msra.mxu0 0.0
    %1217 = vmatprep.subr.mxu0 0.0
    %1218 = vmatpush1.msra.mxu0 0.0
    %1219 = vmatprep.subr.mxu0 0.0
    %1220 = vmatpush1.msra.mxu0 0.0
    %1221 = vmatprep.subr.mxu0 0.0
    %1222 = vmatpush1.msra.mxu0 0.0
    %1223 = vmatprep.subr.mxu0 0.0
    %1224 = vmatpush1.msra.mxu0 0.0
    %1225 = vmatprep.subr.mxu0 0.0
    %1226 = vmatpush1.msra.mxu0 0.0
    %1227 = vmatprep.subr.mxu0 0.0
    %1228 = vmatpush1.msra.mxu0 0.0
    %1229 = vmatprep.subr.mxu0 0.0
    %1230 = vmatpush1.msra.mxu0 0.0
    %1231 = vmatprep.subr.mxu0 0.0
    %1232 = vmatpush1.msra.mxu0 0.0
    %1233 = vmatprep.subr.mxu0 0.0
    %1234 = vmatpush1.msra.mxu0 0.0
    %1235 = vmatprep.subr.mxu0 0.0
    %1236 = vmatpush1.msra.mxu0 0.0
    %1237 = vmatprep.subr.mxu0 0.0
    %1238 = vmatpush1.msra.mxu0 0.0
    %1239 = vmatprep.subr.mxu0 0.0
    %1240 = vmatpush1.msra.mxu0 0.0
    %1241 = vmatprep.subr.mxu0 0.0
    %1242 = vmatpush1.msra.mxu0 0.0
    %1243 = vmatprep.subr.mxu0 0.0
    %1244 = vmatpush1.msra.mxu0 0.0
    %1245 = vmatprep.subr.mxu0 0.0
    %1246 = vmatpush1.msra.mxu0 0.0
    %1247 = vmatprep.subr.mxu0 0.0
    %1248 = vmatpush1.msra.mxu0 0.0
    %1249 = vmatprep.subr.mxu0 0.0
    %1250 = vmatpush1.msra.mxu0 0.0
    %1251 = vmatprep.subr.mxu0 0.0
    %1252 = vmatpush1.msra.mxu0 0.0
    %1253 = vmatprep.subr.mxu0 0.0
    %1254 = vmatpush1.msra.mxu0 0.0
    %1255 = vmatprep.subr.mxu0 0.0
    %1256 = vmatpush1.msra.mxu0 0.0
    %1257 = vmatprep.subr.mxu0 0.0
    %1258 = vmatpush1.msra.mxu0 0.0
    %1259 = vmatprep.subr.mxu0 0.0
    %1260 = vmatpush1.msra.mxu0 0.0
    %1261 = vmatprep.mubr.f32.mxu0 0.0
    %1262 = vmatmul.mubr.f32.gmra.mrb[0].mxu0 %v1192
    %v1263 = vpop.f32.mrb[0].mxu0
    %v1264 = vadd.f32 %v1183, %v1263
    %v1265 = vpop.f32.mrb[0].mxu0
    %1266 = vmatprep.mubr.f32.mxu0 0.0
    %1267 = vmatmul.mubr.f32.gmra.mrb[0].mxu0 %v1195
    %v1268 = vpop.f32.mrb[0].mxu0
    %v1269 = vadd.f32 %v1188, %v1268
    %v1270 = vpop.f32.mrb[0].mxu0
    %1271 = vdwg.mxu0
    %v1272 = vld [vmem:[%s6] sm:$0x1]
    %v1274 = vlaneseq
    %v1275 = vshrl.u32 %v1274, 7
    %v1276 = vsub.s32 0, %v1275
    %v1277 = vrot.slane %v1272, %v1276
    %v1279 = vadd.f32 %v1264, %v1277
    %v1280 = vadd.f32 %v1269, %v1277
    %v1281 = vadd.f32 %v151, %v1279
    %v1282 = vadd.f32 %v152, %v1280
    %s1283 = scalar_lea.vmem %s6, 1
    %v1284 = vld [vmem:[%s1283] sm:$0x1]
    %s1285 = scalar_lea.vmem %s6, 2
    %v1286 = vld [vmem:[%s1285] sm:$0x1]
    %v1287 = vsel %vm178, %v1281, 0.0
    %1288 = vadd.xlane.f32.xlu0 %v1287
    %v1289 = vpop.xlane.xlu0 %1288
    %v1290 = vsel %vm178, %v1282, 0.0
    %1291 = vadd.xlane.f32.xlu0 %v1290
    %v1292 = vpop.xlane.xlu0 %1291
    %v1293 = vrcp.pop 64.0
    %v1294 = vmul.f32 %v1289, %v1293
    %v1295 = vmul.f32 %v1292, %v1293
    %v1296 = vsub.f32 %v1281, %v1294
    %v1297 = vsub.f32 %v1282, %v1295
    %v1298 = vmul.f32 %v1296, %v1296
    %v1299 = vmul.f32 %v1297, %v1297
    %v1300 = vsel %vm178, %v1298, 0.0
    %1301 = vadd.xlane.f32.xlu0 %v1300
    %v1302 = vpop.xlane.xlu0 %1301
    %v1303 = vsel %vm178, %v1299, 0.0
    %1304 = vadd.xlane.f32.xlu0 %v1303
    %v1305 = vpop.xlane.xlu0 %1304
    %v1306 = vmul.f32 %v1302, %v1293
    %v1307 = vmul.f32 %v1305, %v1293
    %v1308 = vadd.f32 %v1306, 1e-05
    %v1309 = vadd.f32 %v1307, 1e-05
    %v1310 = vrsqrt.pop %v1308
    %v1311 = vrsqrt.pop %v1309
    %v1312 = vmul.f32 %v1296, %v1310
    %v1313 = vmul.f32 %v1297, %v1311
    %v1315 = vlaneseq
    %v1316 = vshrl.u32 %v1315, 7
    %v1317 = vsub.s32 0, %v1316
    %v1318 = vrot.slane %v1284, %v1317
    %v1320 = vmul.f32 %v1312, %v1318
    %v1321 = vmul.f32 %v1313, %v1318
    %v1323 = vlaneseq
    %v1324 = vshrl.u32 %v1323, 7
    %v1325 = vsub.s32 0, %v1324
    %v1326 = vrot.slane %v1286, %v1325
    %v1328 = vadd.f32 %v1320, %v1326
    %v1329 = vadd.f32 %v1321, %v1326
    %v1330 = vld [vmem:[%s7] sm:$0xff]
    %v1331 = vld [vmem:[%s7 + $0x8] sm:$0xff]
    %v1332 = vld [vmem:[%s7 + $0x10] sm:$0xff]
    %v1333 = vld [vmem:[%s7 + $0x18] sm:$0xff]
    %v1334 = vld [vmem:[%s7 + $0x20] sm:$0xff]
    %v1335 = vld [vmem:[%s7 + $0x28] sm:$0xff]
    %v1336 = vld [vmem:[%s7 + $0x30] sm:$0xff]
    %v1337 = vld [vmem:[%s7 + $0x38] sm:$0xff]
    %v1338 = vld [vmem:[%s8] sm:$0x1]
    %v1340 = vlaneseq
    %v1341 = vshrl.u32 %v1340, 7
    %v1342 = vsub.s32 0, %v1341
    %v1343 = vrot.slane %v1338, %v1342
    %v1346 = vsel %vm178, %v1328, 0
    %v1349 = vsel %vm178, %v1329, 0
    %1351 = vmatprep.subr.mxu0 0.0
    %1352 = vmatpush1.msra.mxu0 %v1330
    %1353 = vmatprep.subr.mxu0 0.0
    %1354 = vmatpush1.msra.mxu0 %v1331
    %1355 = vmatprep.subr.mxu0 0.0
    %1356 = vmatpush1.msra.mxu0 %v1332
    %1357 = vmatprep.subr.mxu0 0.0
    %1358 = vmatpush1.msra.mxu0 %v1333
    %1359 = vmatprep.subr.mxu0 0.0
    %1360 = vmatpush1.msra.mxu0 %v1334
    %1361 = vmatprep.subr.mxu0 0.0
    %1362 = vmatpush1.msra.mxu0 %v1335
    %1363 = vmatprep.subr.mxu0 0.0
    %1364 = vmatpush1.msra.mxu0 %v1336
    %1365 = vmatprep.subr.mxu0 0.0
    %1366 = vmatpush1.msra.mxu0 %v1337
    %1367 = vmatprep.subr.mxu0 0.0
    %1368 = vmatpush1.msra.mxu0 0.0
    %1369 = vmatprep.subr.mxu0 0.0
    %1370 = vmatpush1.msra.mxu0 0.0
    %1371 = vmatprep.subr.mxu0 0.0
    %1372 = vmatpush1.msra.mxu0 0.0
    %1373 = vmatprep.subr.mxu0 0.0
    %1374 = vmatpush1.msra.mxu0 0.0
    %1375 = vmatprep.subr.mxu0 0.0
    %1376 = vmatpush1.msra.mxu0 0.0
    %1377 = vmatprep.subr.mxu0 0.0
    %1378 = vmatpush1.msra.mxu0 0.0
    %1379 = vmatprep.subr.mxu0 0.0
    %1380 = vmatpush1.msra.mxu0 0.0
    %1381 = vmatprep.subr.mxu0 0.0
    %1382 = vmatpush1.msra.mxu0 0.0
    %1383 = vmatprep.subr.mxu0 0.0
    %1384 = vmatpush1.msra.mxu0 0.0
    %1385 = vmatprep.subr.mxu0 0.0
    %1386 = vmatpush1.msra.mxu0 0.0
    %1387 = vmatprep.subr.mxu0 0.0
    %1388 = vmatpush1.msra.mxu0 0.0
    %1389 = vmatprep.subr.mxu0 0.0
    %1390 = vmatpush1.msra.mxu0 0.0
    %1391 = vmatprep.subr.mxu0 0.0
    %1392 = vmatpush1.msra.mxu0 0.0
    %1393 = vmatprep.subr.mxu0 0.0
    %1394 = vmatpush1.msra.mxu0 0.0
    %1395 = vmatprep.subr.mxu0 0.0
    %1396 = vmatpush1.msra.mxu0 0.0
    %1397 = vmatprep.subr.mxu0 0.0
    %1398 = vmatpush1.msra.mxu0 0.0
    %1399 = vmatprep.subr.mxu0 0.0
    %1400 = vmatpush1.msra.mxu0 0.0
    %1401 = vmatprep.subr.mxu0 0.0
    %1402 = vmatpush1.msra.mxu0 0.0
    %1403 = vmatprep.subr.mxu0 0.0
    %1404 = vmatpush1.msra.mxu0 0.0
    %1405 = vmatprep.subr.mxu0 0.0
    %1406 = vmatpush1.msra.mxu0 0.0
    %1407 = vmatprep.subr.mxu0 0.0
    %1408 = vmatpush1.msra.mxu0 0.0
    %1409 = vmatprep.subr.mxu0 0.0
    %1410 = vmatpush1.msra.mxu0 0.0
    %1411 = vmatprep.subr.mxu0 0.0
    %1412 = vmatpush1.msra.mxu0 0.0
    %1413 = vmatprep.subr.mxu0 0.0
    %1414 = vmatpush1.msra.mxu0 0.0
    %1415 = vmatprep.mubr.f32.mxu0 0.0
    %1416 = vmatmul.mubr.f32.gmra.mrb[0].mxu0 %v1346
    %v1417 = vpop.f32.mrb[0].mxu0
    %v1418 = vadd.f32 %v1343, %v1417
    %v1419 = vpop.f32.mrb[0].mxu0
    %1420 = vmatprep.mubr.f32.mxu0 0.0
    %1421 = vmatmul.mubr.f32.gmra.mrb[0].mxu0 %v1349
    %v1422 = vpop.f32.mrb[0].mxu0
    %v1423 = vadd.f32 %v1343, %v1422
    %v1424 = vpop.f32.mrb[0].mxu0
    %1425 = vdwg.mxu0
    %v1426 = vmax.f32 %v1418, 0.0
    %v1427 = vmax.f32 %v1423, 0.0
    %v1428 = vld [vmem:[%s9] sm:$0xff]
    %v1429 = vld [vmem:[%s9 + $0x8] sm:$0xff]
    %v1430 = vld [vmem:[%s9 + $0x10] sm:$0xff]
    %v1431 = vld [vmem:[%s9 + $0x18] sm:$0xff]
    %v1432 = vld [vmem:[%s9 + $0x20] sm:$0xff]
    %v1433 = vld [vmem:[%s9 + $0x28] sm:$0xff]
    %v1434 = vld [vmem:[%s9 + $0x30] sm:$0xff]
    %v1435 = vld [vmem:[%s9 + $0x38] sm:$0xff]
    %v1436 = vld [vmem:[%s9 + $0x40] sm:$0xff]
    %v1437 = vld [vmem:[%s9 + $0x48] sm:$0xff]
    %v1438 = vld [vmem:[%s9 + $0x50] sm:$0xff]
    %v1439 = vld [vmem:[%s9 + $0x58] sm:$0xff]
    %v1440 = vld [vmem:[%s9 + $0x60] sm:$0xff]
    %v1441 = vld [vmem:[%s9 + $0x68] sm:$0xff]
    %v1442 = vld [vmem:[%s9 + $0x70] sm:$0xff]
    %v1443 = vld [vmem:[%s9 + $0x78] sm:$0xff]
    %s1444 = scalar_lea.vmem %s6, 3
    %v1445 = vld [vmem:[%s1444] sm:$0x1]
    %v1447 = vlaneseq
    %v1448 = vshrl.u32 %v1447, 7
    %v1449 = vsub.s32 0, %v1448
    %v1450 = vrot.slane %v1445, %v1449
    %1452 = vmatprep.subr.mxu0 0.0
    %1453 = vmatpush1.msra.mxu0 %v1428
    %1454 = vmatprep.subr.mxu0 0.0
    %1455 = vmatpush1.msra.mxu0 %v1429
    %1456 = vmatprep.subr.mxu0 0.0
    %1457 = vmatpush1.msra.mxu0 %v1430
    %1458 = vmatprep.subr.mxu0 0.0
    %1459 = vmatpush1.msra.mxu0 %v1431
    %1460 = vmatprep.subr.mxu0 0.0
    %1461 = vmatpush1.msra.mxu0 %v1432
    %1462 = vmatprep.subr.mxu0 0.0
    %1463 = vmatpush1.msra.mxu0 %v1433
    %1464 = vmatprep.subr.mxu0 0.0
    %1465 = vmatpush1.msra.mxu0 %v1434
    %1466 = vmatprep.subr.mxu0 0.0
    %1467 = vmatpush1.msra.mxu0 %v1435
    %1468 = vmatprep.subr.mxu0 0.0
    %1469 = vmatpush1.msra.mxu0 %v1436
    %1470 = vmatprep.subr.mxu0 0.0
    %1471 = vmatpush1.msra.mxu0 %v1437
    %1472 = vmatprep.subr.mxu0 0.0
    %1473 = vmatpush1.msra.mxu0 %v1438
    %1474 = vmatprep.subr.mxu0 0.0
    %1475 = vmatpush1.msra.mxu0 %v1439
    %1476 = vmatprep.subr.mxu0 0.0
    %1477 = vmatpush1.msra.mxu0 %v1440
    %1478 = vmatprep.subr.mxu0 0.0
    %1479 = vmatpush1.msra.mxu0 %v1441
    %1480 = vmatprep.subr.mxu0 0.0
    %1481 = vmatpush1.msra.mxu0 %v1442
    %1482 = vmatprep.subr.mxu0 0.0
    %1483 = vmatpush1.msra.mxu0 %v1443
    %1484 = vmatprep.subr.mxu0 0.0
    %1485 = vmatpush1.msra.mxu0 0.0
    %1486 = vmatprep.subr.mxu0 0.0
    %1487 = vmatpush1.msra.mxu0 0.0
    %1488 = vmatprep.subr.mxu0 0.0
    %1489 = vmatpush1.msra.mxu0 0.0
    %1490 = vmatprep.subr.mxu0 0.0
    %1491 = vmatpush1.msra.mxu0 0.0
    %1492 = vmatprep.subr.mxu0 0.0
    %1493 = vmatpush1.msra.mxu0 0.0
    %1494 = vmatprep.subr.mxu0 0.0
    %1495 = vmatpush1.msra.mxu0 0.0
    %1496 = vmatprep.subr.mxu0 0.0
    %1497 = vmatpush1.msra.mxu0 0.0
    %1498 = vmatprep.subr.mxu0 0.0
    %1499 = vmatpush1.msra.mxu0 0.0
    %1500 = vmatprep.subr.mxu0 0.0
    %1501 = vmatpush1.msra.mxu0 0.0
    %1502 = vmatprep.subr.mxu0 0.0
    %1503 = vmatpush1.msra.mxu0 0.0
    %1504 = vmatprep.subr.mxu0 0.0
    %1505 = vmatpush1.msra.mxu0 0.0
    %1506 = vmatprep.subr.mxu0 0.0
    %1507 = vmatpush1.msra.mxu0 0.0
    %1508 = vmatprep.subr.mxu0 0.0
    %1509 = vmatpush1.msra.mxu0 0.0
    %1510 = vmatprep.subr.mxu0 0.0
    %1511 = vmatpush1.msra.mxu0 0.0
    %1512 = vmatprep.subr.mxu0 0.0
    %1513 = vmatpush1.msra.mxu0 0.0
    %1514 = vmatprep.subr.mxu0 0.0
    %1515 = vmatpush1.msra.mxu0 0.0
    %1516 = vmatprep.mubr.f32.mxu0 0.0
    %1517 = vmatmul.mubr.f32.gmra.mrb[0].mxu0 %v1426
    %v1518 = vpop.f32.mrb[0].mxu0
    %v1519 = vadd.f32 %v1450, %v1518
    %v1520 = vpop.f32.mrb[0].mxu0
    %1521 = vmatprep.mubr.f32.mxu0 0.0
    %1522 = vmatmul.mubr.f32.gmra.mrb[0].mxu0 %v1427
    %v1523 = vpop.f32.mrb[0].mxu0
    %v1524 = vadd.f32 %v1450, %v1523
    %v1525 = vpop.f32.mrb[0].mxu0
    %1526 = vdwg.mxu0
    %v1527 = vadd.f32 %v1328, %v1519
    %v1528 = vadd.f32 %v1329, %v1524
    %s1529 = scalar_lea.vmem %s6, 4
    %v1530 = vld [vmem:[%s1529] sm:$0x1]
    %s1531 = scalar_lea.vmem %s6, 5
    %v1532 = vld [vmem:[%s1531] sm:$0x1]
    %v1533 = vsel %vm178, %v1527, 0.0
    %1534 = vadd.xlane.f32.xlu0 %v1533
    %v1535 = vpop.xlane.xlu0 %1534
    %v1536 = vsel %vm178, %v1528, 0.0
    %1537 = vadd.xlane.f32.xlu0 %v1536
    %v1538 = vpop.xlane.xlu0 %1537
    %v1539 = vmul.f32 %v1535, %v1293
    %v1540 = vmul.f32 %v1538, %v1293
    %v1541 = vsub.f32 %v1527, %v1539
    %v1542 = vsub.f32 %v1528, %v1540
    %v1543 = vmul.f32 %v1541, %v1541
    %v1544 = vmul.f32 %v1542, %v1542
    %v1545 = vsel %vm178, %v1543, 0.0
    %1546 = vadd.xlane.f32.xlu0 %v1545
    %v1547 = vpop.xlane.xlu0 %1546
    %v1548 = vsel %vm178, %v1544, 0.0
    %1549 = vadd.xlane.f32.xlu0 %v1548
    %v1550 = vpop.xlane.xlu0 %1549
    %v1551 = vmul.f32 %v1547, %v1293
    %v1552 = vmul.f32 %v1550, %v1293
    %v1553 = vadd.f32 %v1551, 1e-05
    %v1554 = vadd.f32 %v1552, 1e-05
    %v1555 = vrsqrt.pop %v1553
    %v1556 = vrsqrt.pop %v1554
    %v1557 = vmul.f32 %v1541, %v1555
    %v1558 = vmul.f32 %v1542, %v1556
    %v1560 = vlaneseq
    %v1561 = vshrl.u32 %v1560, 7
    %v1562 = vsub.s32 0, %v1561
    %v1563 = vrot.slane %v1530, %v1562
    %v1565 = vmul.f32 %v1557, %v1563
    %v1566 = vmul.f32 %v1558, %v1563
    %v1568 = vlaneseq
    %v1569 = vshrl.u32 %v1568, 7
    %v1570 = vsub.s32 0, %v1569
    %v1571 = vrot.slane %v1532, %v1570
    %v1573 = vadd.f32 %v1565, %v1571
    %v1574 = vadd.f32 %v1566, %v1571
    %s1575 = scalar_lea.vmem %s3, 384
    %v1576 = vld [vmem:[%s1575] sm:$0xff]
    %v1577 = vld [vmem:[%s1575 + $0x8] sm:$0xff]
    %v1578 = vld [vmem:[%s1575 + $0x10] sm:$0xff]
    %v1579 = vld [vmem:[%s1575 + $0x18] sm:$0xff]
    %v1580 = vld [vmem:[%s1575 + $0x20] sm:$0xff]
    %v1581 = vld [vmem:[%s1575 + $0x28] sm:$0xff]
    %v1582 = vld [vmem:[%s1575 + $0x30] sm:$0xff]
    %v1583 = vld [vmem:[%s1575 + $0x38] sm:$0xff]
    %s1584 = scalar_lea.vmem %s4, 6
    %v1585 = vld [vmem:[%s1584] sm:$0x1]
    %v1587 = vlaneseq
    %v1588 = vshrl.u32 %v1587, 7
    %v1589 = vsub.s32 0, %v1588
    %v1590 = vrot.slane %v1585, %v1589
    %v1593 = vsel %vm178, %v1573, 0
    %v1596 = vsel %vm178, %v1574, 0
    %1598 = vmatprep.subr.mxu0 0.0
    %1599 = vmatpush1.msra.mxu0 %v1576
    %1600 = vmatprep.subr.mxu0 0.0
    %1601 = vmatpush1.msra.mxu0 %v1577
    %1602 = vmatprep.subr.mxu0 0.0
    %1603 = vmatpush1.msra.mxu0 %v1578
    %1604 = vmatprep.subr.mxu0 0.0
    %1605 = vmatpush1.msra.mxu0 %v1579
    %1606 = vmatprep.subr.mxu0 0.0
    %1607 = vmatpush1.msra.mxu0 %v1580
    %1608 = vmatprep.subr.mxu0 0.0
    %1609 = vmatpush1.msra.mxu0 %v1581
    %1610 = vmatprep.subr.mxu0 0.0
    %1611 = vmatpush1.msra.mxu0 %v1582
    %1612 = vmatprep.subr.mxu0 0.0
    %1613 = vmatpush1.msra.mxu0 %v1583
    %1614 = vmatprep.subr.mxu0 0.0
    %1615 = vmatpush1.msra.mxu0 0.0
    %1616 = vmatprep.subr.mxu0 0.0
    %1617 = vmatpush1.msra.mxu0 0.0
    %1618 = vmatprep.subr.mxu0 0.0
    %1619 = vmatpush1.msra.mxu0 0.0
    %1620 = vmatprep.subr.mxu0 0.0
    %1621 = vmatpush1.msra.mxu0 0.0
    %1622 = vmatprep.subr.mxu0 0.0
    %1623 = vmatpush1.msra.mxu0 0.0
    %1624 = vmatprep.subr.mxu0 0.0
    %1625 = vmatpush1.msra.mxu0 0.0
    %1626 = vmatprep.subr.mxu0 0.0
    %1627 = vmatpush1.msra.mxu0 0.0
    %1628 = vmatprep.subr.mxu0 0.0
    %1629 = vmatpush1.msra.mxu0 0.0
    %1630 = vmatprep.subr.mxu0 0.0
    %1631 = vmatpush1.msra.mxu0 0.0
    %1632 = vmatprep.subr.mxu0 0.0
    %1633 = vmatpush1.msra.mxu0 0.0
    %1634 = vmatprep.subr.mxu0 0.0
    %1635 = vmatpush1.msra.mxu0 0.0
    %1636 = vmatprep.subr.mxu0 0.0
    %1637 = vmatpush1.msra.mxu0 0.0
    %1638 = vmatprep.subr.mxu0 0.0
    %1639 = vmatpush1.msra.mxu0 0.0
    %1640 = vmatprep.subr.mxu0 0.0
    %1641 = vmatpush1.msra.mxu0 0.0
    %1642 = vmatprep.subr.mxu0 0.0
    %1643 = vmatpush1.msra.mxu0 0.0
    %1644 = vmatprep.subr.mxu0 0.0
    %1645 = vmatpush1.msra.mxu0 0.0
    %1646 = vmatprep.subr.mxu0 0.0
    %1647 = vmatpush1.msra.mxu0 0.0
    %1648 = vmatprep.subr.mxu0 0.0
    %1649 = vmatpush1.msra.mxu0 0.0
    %1650 = vmatprep.subr.mxu0 0.0
    %1651 = vmatpush1.msra.mxu0 0.0
    %1652 = vmatprep.subr.mxu0 0.0
    %1653 = vmatpush1.msra.mxu0 0.0
    %1654 = vmatprep.subr.mxu0 0.0
    %1655 = vmatpush1.msra.mxu0 0.0
    %1656 = vmatprep.subr.mxu0 0.0
    %1657 = vmatpush1.msra.mxu0 0.0
    %1658 = vmatprep.subr.mxu0 0.0
    %1659 = vmatpush1.msra.mxu0 0.0
    %1660 = vmatprep.subr.mxu0 0.0
    %1661 = vmatpush1.msra.mxu0 0.0
    %1662 = vmatprep.mubr.f32.mxu0 0.0
    %1663 = vmatmul.mubr.f32.gmra.mrb[0].mxu0 %v1593
    %v1664 = vpop.f32.mrb[0].mxu0
    %v1665 = vadd.f32 %v1590, %v1664
    %v1666 = vpop.f32.mrb[0].mxu0
    %1667 = vmatprep.mubr.f32.mxu0 0.0
    %1668 = vmatmul.mubr.f32.gmra.mrb[0].mxu0 %v1596
    %v1669 = vpop.f32.mrb[0].mxu0
    %v1670 = vadd.f32 %v1590, %v1669
    %v1671 = vpop.f32.mrb[0].mxu0
    %1672 = vdwg.mxu0
    %s1673 = scalar_lea.vmem %s3, 512
    %v1674 = vld [vmem:[%s1673] sm:$0xff]
    %v1675 = vld [vmem:[%s1673 + $0x8] sm:$0xff]
    %v1676 = vld [vmem:[%s1673 + $0x10] sm:$0xff]
    %v1677 = vld [vmem:[%s1673 + $0x18] sm:$0xff]
    %v1678 = vld [vmem:[%s1673 + $0x20] sm:$0xff]
    %v1679 = vld [vmem:[%s1673 + $0x28] sm:$0xff]
    %v1680 = vld [vmem:[%s1673 + $0x30] sm:$0xff]
    %v1681 = vld [vmem:[%s1673 + $0x38] sm:$0xff]
    %s1682 = scalar_lea.vmem %s4, 8
    %v1683 = vld [vmem:[%s1682] sm:$0x1]
    %v1685 = vlaneseq
    %v1686 = vshrl.u32 %v1685, 7
    %v1687 = vsub.s32 0, %v1686
    %v1688 = vrot.slane %v1683, %v1687
    %1690 = vmatprep.subr.mxu0 0.0
    %1691 = vmatpush1.msra.mxu0 %v1674
    %1692 = vmatprep.subr.mxu0 0.0
    %1693 = vmatpush1.msra.mxu0 %v1675
    %1694 = vmatprep.subr.mxu0 0.0
    %1695 = vmatpush1.msra.mxu0 %v1676
    %1696 = vmatprep.subr.mxu0 0.0
    %1697 = vmatpush1.msra.mxu0 %v1677
    %1698 = vmatprep.subr.mxu0 0.0
    %1699 = vmatpush1.msra.mxu0 %v1678
    %1700 = vmatprep.subr.mxu0 0.0
    %1701 = vmatpush1.msra.mxu0 %v1679
    %1702 = vmatprep.subr.mxu0 0.0
    %1703 = vmatpush1.msra.mxu0 %v1680
    %1704 = vmatprep.subr.mxu0 0.0
    %1705 = vmatpush1.msra.mxu0 %v1681
    %1706 = vmatprep.subr.mxu0 0.0
    %1707 = vmatpush1.msra.mxu0 0.0
    %1708 = vmatprep.subr.mxu0 0.0
    %1709 = vmatpush1.msra.mxu0 0.0
    %1710 = vmatprep.subr.mxu0 0.0
    %1711 = vmatpush1.msra.mxu0 0.0
    %1712 = vmatprep.subr.mxu0 0.0
    %1713 = vmatpush1.msra.mxu0 0.0
    %1714 = vmatprep.subr.mxu0 0.0
    %1715 = vmatpush1.msra.mxu0 0.0
    %1716 = vmatprep.subr.mxu0 0.0
    %1717 = vmatpush1.msra.mxu0 0.0
    %1718 = vmatprep.subr.mxu0 0.0
    %1719 = vmatpush1.msra.mxu0 0.0
    %1720 = vmatprep.subr.mxu0 0.0
    %1721 = vmatpush1.msra.mxu0 0.0
    %1722 = vmatprep.subr.mxu0 0.0
    %1723 = vmatpush1.msra.mxu0 0.0
    %1724 = vmatprep.subr.mxu0 0.0
    %1725 = vmatpush1.msra.mxu0 0.0
    %1726 = vmatprep.subr.mxu0 0.0
    %1727 = vmatpush1.msra.mxu0 0.0
    %1728 = vmatprep.subr.mxu0 0.0
    %1729 = vmatpush1.msra.mxu0 0.0
    %1730 = vmatprep.subr.mxu0 0.0
    %1731 = vmatpush1.msra.mxu0 0.0
    %1732 = vmatprep.subr.mxu0 0.0
    %1733 = vmatpush1.msra.mxu0 0.0
    %1734 = vmatprep.subr.mxu0 0.0
    %1735 = vmatpush1.msra.mxu0 0.0
    %1736 = vmatprep.subr.mxu0 0.0
    %1737 = vmatpush1.msra.mxu0 0.0
    %1738 = vmatprep.subr.mxu0 0.0
    %1739 = vmatpush1.msra.mxu0 0.0
    %1740 = vmatprep.subr.mxu0 0.0
    %1741 = vmatpush1.msra.mxu0 0.0
    %1742 = vmatprep.subr.mxu0 0.0
    %1743 = vmatpush1.msra.mxu0 0.0
    %1744 = vmatprep.subr.mxu0 0.0
    %1745 = vmatpush1.msra.mxu0 0.0
    %1746 = vmatprep.subr.mxu0 0.0
    %1747 = vmatpush1.msra.mxu0 0.0
    %1748 = vmatprep.subr.mxu0 0.0
    %1749 = vmatpush1.msra.mxu0 0.0
    %1750 = vmatprep.subr.mxu0 0.0
    %1751 = vmatpush1.msra.mxu0 0.0
    %1752 = vmatprep.subr.mxu0 0.0
    %1753 = vmatpush1.msra.mxu0 0.0
    %1754 = vmatprep.mubr.f32.mxu0 0.0
    %1755 = vmatmul.mubr.f32.gmra.mrb[0].mxu0 %v1593
    %v1756 = vpop.f32.mrb[0].mxu0
    %v1757 = vadd.f32 %v1688, %v1756
    %v1758 = vpop.f32.mrb[0].mxu0
    %1759 = vmatprep.mubr.f32.mxu0 0.0
    %1760 = vmatmul.mubr.f32.gmra.mrb[0].mxu0 %v1596
    %v1761 = vpop.f32.mrb[0].mxu0
    %v1762 = vadd.f32 %v1688, %v1761
    %v1763 = vpop.f32.mrb[0].mxu0
    %1764 = vdwg.mxu0
    %s1765 = scalar_lea.vmem %s3, 640
    %v1766 = vld [vmem:[%s1765] sm:$0xff]
    %v1767 = vld [vmem:[%s1765 + $0x8] sm:$0xff]
    %v1768 = vld [vmem:[%s1765 + $0x10] sm:$0xff]
    %v1769 = vld [vmem:[%s1765 + $0x18] sm:$0xff]
    %v1770 = vld [vmem:[%s1765 + $0x20] sm:$0xff]
    %v1771 = vld [vmem:[%s1765 + $0x28] sm:$0xff]
    %v1772 = vld [vmem:[%s1765 + $0x30] sm:$0xff]
    %v1773 = vld [vmem:[%s1765 + $0x38] sm:$0xff]
    %s1774 = scalar_lea.vmem %s4, 10
    %v1775 = vld [vmem:[%s1774] sm:$0x1]
    %v1777 = vlaneseq
    %v1778 = vshrl.u32 %v1777, 7
    %v1779 = vsub.s32 0, %v1778
    %v1780 = vrot.slane %v1775, %v1779
    %1782 = vmatprep.subr.mxu0 0.0
    %1783 = vmatpush1.msra.mxu0 %v1766
    %1784 = vmatprep.subr.mxu0 0.0
    %1785 = vmatpush1.msra.mxu0 %v1767
    %1786 = vmatprep.subr.mxu0 0.0
    %1787 = vmatpush1.msra.mxu0 %v1768
    %1788 = vmatprep.subr.mxu0 0.0
    %1789 = vmatpush1.msra.mxu0 %v1769
    %1790 = vmatprep.subr.mxu0 0.0
    %1791 = vmatpush1.msra.mxu0 %v1770
    %1792 = vmatprep.subr.mxu0 0.0
    %1793 = vmatpush1.msra.mxu0 %v1771
    %1794 = vmatprep.subr.mxu0 0.0
    %1795 = vmatpush1.msra.mxu0 %v1772
    %1796 = vmatprep.subr.mxu0 0.0
    %1797 = vmatpush1.msra.mxu0 %v1773
    %1798 = vmatprep.subr.mxu0 0.0
    %1799 = vmatpush1.msra.mxu0 0.0
    %1800 = vmatprep.subr.mxu0 0.0
    %1801 = vmatpush1.msra.mxu0 0.0
    %1802 = vmatprep.subr.mxu0 0.0
    %1803 = vmatpush1.msra.mxu0 0.0
    %1804 = vmatprep.subr.mxu0 0.0
    %1805 = vmatpush1.msra.mxu0 0.0
    %1806 = vmatprep.subr.mxu0 0.0
    %1807 = vmatpush1.msra.mxu0 0.0
    %1808 = vmatprep.subr.mxu0 0.0
    %1809 = vmatpush1.msra.mxu0 0.0
    %1810 = vmatprep.subr.mxu0 0.0
    %1811 = vmatpush1.msra.mxu0 0.0
    %1812 = vmatprep.subr.mxu0 0.0
    %1813 = vmatpush1.msra.mxu0 0.0
    %1814 = vmatprep.subr.mxu0 0.0
    %1815 = vmatpush1.msra.mxu0 0.0
    %1816 = vmatprep.subr.mxu0 0.0
    %1817 = vmatpush1.msra.mxu0 0.0
    %1818 = vmatprep.subr.mxu0 0.0
    %1819 = vmatpush1.msra.mxu0 0.0
    %1820 = vmatprep.subr.mxu0 0.0
    %1821 = vmatpush1.msra.mxu0 0.0
    %1822 = vmatprep.subr.mxu0 0.0
    %1823 = vmatpush1.msra.mxu0 0.0
    %1824 = vmatprep.subr.mxu0 0.0
    %1825 = vmatpush1.msra.mxu0 0.0
    %1826 = vmatprep.subr.mxu0 0.0
    %1827 = vmatpush1.msra.mxu0 0.0
    %1828 = vmatprep.subr.mxu0 0.0
    %1829 = vmatpush1.msra.mxu0 0.0
    %1830 = vmatprep.subr.mxu0 0.0
    %1831 = vmatpush1.msra.mxu0 0.0
    %1832 = vmatprep.subr.mxu0 0.0
    %1833 = vmatpush1.msra.mxu0 0.0
    %1834 = vmatprep.subr.mxu0 0.0
    %1835 = vmatpush1.msra.mxu0 0.0
    %1836 = vmatprep.subr.mxu0 0.0
    %1837 = vmatpush1.msra.mxu0 0.0
    %1838 = vmatprep.subr.mxu0 0.0
    %1839 = vmatpush1.msra.mxu0 0.0
    %1840 = vmatprep.subr.mxu0 0.0
    %1841 = vmatpush1.msra.mxu0 0.0
    %1842 = vmatprep.subr.mxu0 0.0
    %1843 = vmatpush1.msra.mxu0 0.0
    %1844 = vmatprep.subr.mxu0 0.0
    %1845 = vmatpush1.msra.mxu0 0.0
    %1846 = vmatprep.mubr.f32.mxu0 0.0
    %1847 = vmatmul.mubr.f32.gmra.mrb[0].mxu0 %v1593
    %v1848 = vpop.f32.mrb[0].mxu0
    %v1849 = vadd.f32 %v1780, %v1848
    %v1850 = vpop.f32.mrb[0].mxu0
    %1851 = vmatprep.mubr.f32.mxu0 0.0
    %1852 = vmatmul.mubr.f32.gmra.mrb[0].mxu0 %v1596
    %v1853 = vpop.f32.mrb[0].mxu0
    %v1854 = vadd.f32 %v1780, %v1853
    %v1855 = vpop.f32.mrb[0].mxu0
    %1856 = vdwg.mxu0
    %v1858 = vsel %vm65, %v1665, 0
    %v1861 = vsel %vm65, %v1670, 0
    %v1864 = vsel %vm65, %v1757, 0
    %v1867 = vsel %vm65, %v1762, 0
    %1869 = vmatprep.subr.mxu0 0.0
    %1870 = vmatpush1.xpose.msra.mxu0 %v1864
    %1871 = vmatprep.subr.mxu0 0.0
    %1872 = vmatpush1.xpose.msra.mxu0 %v1867
    %1873 = vmatprep.subr.mxu0 0.0
    %1874 = vmatpush1.xpose.msra.mxu0 0.0
    %1875 = vmatprep.subr.mxu0 0.0
    %1876 = vmatpush1.xpose.msra.mxu0 0.0
    %1877 = vmatprep.subr.mxu0 0.0
    %1878 = vmatpush1.xpose.msra.mxu0 0.0
    %1879 = vmatprep.subr.mxu0 0.0
    %1880 = vmatpush1.xpose.msra.mxu0 0.0
    %1881 = vmatprep.subr.mxu0 0.0
    %1882 = vmatpush1.xpose.msra.mxu0 0.0
    %1883 = vmatprep.subr.mxu0 0.0
    %1884 = vmatpush1.xpose.msra.mxu0 0.0
    %1885 = vmatprep.subr.mxu0 0.0
    %1886 = vmatpush1.xpose.msra.mxu0 0.0
    %1887 = vmatprep.subr.mxu0 0.0
    %1888 = vmatpush1.xpose.msra.mxu0 0.0
    %1889 = vmatprep.subr.mxu0 0.0
    %1890 = vmatpush1.xpose.msra.mxu0 0.0
    %1891 = vmatprep.subr.mxu0 0.0
    %1892 = vmatpush1.xpose.msra.mxu0 0.0
    %1893 = vmatprep.subr.mxu0 0.0
    %1894 = vmatpush1.xpose.msra.mxu0 0.0
    %1895 = vmatprep.subr.mxu0 0.0
    %1896 = vmatpush1.xpose.msra.mxu0 0.0
    %1897 = vmatprep.subr.mxu0 0.0
    %1898 = vmatpush1.xpose.msra.mxu0 0.0
    %1899 = vmatprep.subr.mxu0 0.0
    %1900 = vmatpush1.xpose.msra.mxu0 0.0
    %1901 = vmatprep.subr.mxu0 0.0
    %1902 = vmatpush1.xpose.msra.mxu0 0.0
    %1903 = vmatprep.subr.mxu0 0.0
    %1904 = vmatpush1.xpose.msra.mxu0 0.0
    %1905 = vmatprep.subr.mxu0 0.0
    %1906 = vmatpush1.xpose.msra.mxu0 0.0
    %1907 = vmatprep.subr.mxu0 0.0
    %1908 = vmatpush1.xpose.msra.mxu0 0.0
    %1909 = vmatprep.subr.mxu0 0.0
    %1910 = vmatpush1.xpose.msra.mxu0 0.0
    %1911 = vmatprep.subr.mxu0 0.0
    %1912 = vmatpush1.xpose.msra.mxu0 0.0
    %1913 = vmatprep.subr.mxu0 0.0
    %1914 = vmatpush1.xpose.msra.mxu0 0.0
    %1915 = vmatprep.subr.mxu0 0.0
    %1916 = vmatpush1.xpose.msra.mxu0 0.0
    %1917 = vmatprep.subr.mxu0 0.0
    %1918 = vmatpush1.xpose.msra.mxu0 0.0
    %1919 = vmatprep.subr.mxu0 0.0
    %1920 = vmatpush1.xpose.msra.mxu0 0.0
    %1921 = vmatprep.subr.mxu0 0.0
    %1922 = vmatpush1.xpose.msra.mxu0 0.0
    %1923 = vmatprep.subr.mxu0 0.0
    %1924 = vmatpush1.xpose.msra.mxu0 0.0
    %1925 = vmatprep.subr.mxu0 0.0
    %1926 = vmatpush1.xpose.msra.mxu0 0.0
    %1927 = vmatprep.subr.mxu0 0.0
    %1928 = vmatpush1.xpose.msra.mxu0 0.0
    %1929 = vmatprep.subr.mxu0 0.0
    %1930 = vmatpush1.xpose.msra.mxu0 0.0
    %1931 = vmatprep.subr.mxu0 0.0
    %1932 = vmatpush1.xpose.msra.mxu0 0.0
    %1933 = vmatprep.mubr.f32.mxu0 0.0
    %1934 = vmatmul.mubr.f32.gmra.mrb[0].mxu0 %v1858
    %v1935 = vpop.f32.mrb[0].mxu0
    %v1936 = vadd.f32 %v161, %v1935
    %v1937 = vpop.f32.mrb[0].mxu0
    %1938 = vmatprep.mubr.f32.mxu0 0.0
    %1939 = vmatmul.mubr.f32.gmra.mrb[0].mxu0 %v1861
    %v1940 = vpop.f32.mrb[0].mxu0
    %v1941 = vadd.f32 %v162, %v1940
    %v1942 = vpop.f32.mrb[0].mxu0
    %1943 = vdwg.mxu0
    %v1944 = vsel %vm531, %v1936, -inf
    %1945 = vmax.xlane.f32.xlu0 %v1944
    %v1946 = vpop.xlane.xlu0 %1945
    %v1947 = vsel %vm531, %v1941, -inf
    %1948 = vmax.xlane.f32.xlu0 %v1947
    %v1949 = vpop.xlane.xlu0 %1948
    %v1950 = vsub.f32 %v1936, %v1946
    %v1951 = vsub.f32 %v1941, %v1949
    %v1952 = vmul.f32 %v1950, 1.442695
    %v1953 = vpow.pop %v1952
    %v1954 = vmul.f32 %v1951, 1.442695
    %v1955 = vpow.pop %v1954
    %v1956 = vsel %vm531, %v1953, 0.0
    %1957 = vadd.xlane.f32.xlu0 %v1956
    %v1958 = vpop.xlane.xlu0 %1957
    %v1959 = vsel %vm531, %v1955, 0.0
    %1960 = vadd.xlane.f32.xlu0 %v1959
    %v1961 = vpop.xlane.xlu0 %1960
    %v1962 = vrcp.pop %v1958
    %v1963 = vrcp.pop %v1961
    %v1964 = vmul.f32 %v1953, %v1962
    %v1965 = vmul.f32 %v1955, %v1963
    %v1967 = vsel %vm531, %v1964, 0
    %v1970 = vsel %vm531, %v1965, 0
    %1972 = vmatprep.subr.mxu0 0.0
    %1973 = vmatpush1.msra.mxu0 %v1849
    %1974 = vmatprep.subr.mxu0 0.0
    %1975 = vmatpush1.msra.mxu0 %v1854
    %1976 = vmatprep.subr.mxu0 0.0
    %1977 = vmatpush1.msra.mxu0 0.0
    %1978 = vmatprep.subr.mxu0 0.0
    %1979 = vmatpush1.msra.mxu0 0.0
    %1980 = vmatprep.subr.mxu0 0.0
    %1981 = vmatpush1.msra.mxu0 0.0
    %1982 = vmatprep.subr.mxu0 0.0
    %1983 = vmatpush1.msra.mxu0 0.0
    %1984 = vmatprep.subr.mxu0 0.0
    %1985 = vmatpush1.msra.mxu0 0.0
    %1986 = vmatprep.subr.mxu0 0.0
    %1987 = vmatpush1.msra.mxu0 0.0
    %1988 = vmatprep.subr.mxu0 0.0
    %1989 = vmatpush1.msra.mxu0 0.0
    %1990 = vmatprep.subr.mxu0 0.0
    %1991 = vmatpush1.msra.mxu0 0.0
    %1992 = vmatprep.subr.mxu0 0.0
    %1993 = vmatpush1.msra.mxu0 0.0
    %1994 = vmatprep.subr.mxu0 0.0
    %1995 = vmatpush1.msra.mxu0 0.0
    %1996 = vmatprep.subr.mxu0 0.0
    %1997 = vmatpush1.msra.mxu0 0.0
    %1998 = vmatprep.subr.mxu0 0.0
    %1999 = vmatpush1.msra.mxu0 0.0
    %2000 = vmatprep.subr.mxu0 0.0
    %2001 = vmatpush1.msra.mxu0 0.0
    %2002 = vmatprep.subr.mxu0 0.0
    %2003 = vmatpush1.msra.mxu0 0.0
    %2004 = vmatprep.subr.mxu0 0.0
    %2005 = vmatpush1.msra.mxu0 0.0
    %2006 = vmatprep.subr.mxu0 0.0
    %2007 = vmatpush1.msra.mxu0 0.0
    %2008 = vmatprep.subr.mxu0 0.0
    %2009 = vmatpush1.msra.mxu0 0.0
    %2010 = vmatprep.subr.mxu0 0.0
    %2011 = vmatpush1.msra.mxu0 0.0
    %2012 = vmatprep.subr.mxu0 0.0
    %2013 = vmatpush1.msra.mxu0 0.0
    %2014 = vmatprep.subr.mxu0 0.0
    %2015 = vmatpush1.msra.mxu0 0.0
    %2016 = vmatprep.subr.mxu0 0.0
    %2017 = vmatpush1.msra.mxu0 0.0
    %2018 = vmatprep.subr.mxu0 0.0
    %2019 = vmatpush1.msra.mxu0 0.0
    %2020 = vmatprep.subr.mxu0 0.0
    %2021 = vmatpush1.msra.mxu0 0.0
    %2022 = vmatprep.subr.mxu0 0.0
    %2023 = vmatpush1.msra.mxu0 0.0
    %2024 = vmatprep.subr.mxu0 0.0
    %2025 = vmatpush1.msra.mxu0 0.0
    %2026 = vmatprep.subr.mxu0 0.0
    %2027 = vmatpush1.msra.mxu0 0.0
    %2028 = vmatprep.subr.mxu0 0.0
    %2029 = vmatpush1.msra.mxu0 0.0
    %2030 = vmatprep.subr.mxu0 0.0
    %2031 = vmatpush1.msra.mxu0 0.0
    %2032 = vmatprep.subr.mxu0 0.0
    %2033 = vmatpush1.msra.mxu0 0.0
    %2034 = vmatprep.subr.mxu0 0.0
    %2035 = vmatpush1.msra.mxu0 0.0
    %2036 = vmatprep.mubr.f32.mxu0 0.0
    %2037 = vmatmul.mubr.f32.gmra.mrb[0].mxu0 %v1967
    %v2038 = vpop.f32.mrb[0].mxu0
    %v2039 = vadd.f32 0.0, %v2038
    %v2040 = vpop.f32.mrb[0].mxu0
    %2041 = vmatprep.mubr.f32.mxu0 0.0
    %2042 = vmatmul.mubr.f32.gmra.mrb[0].mxu0 %v1970
    %v2043 = vpop.f32.mrb[0].mxu0
    %v2044 = vadd.f32 0.0, %v2043
    %v2045 = vpop.f32.mrb[0].mxu0
    %2046 = vdwg.mxu0
    %s2047 = scalar_lea.vmem %s5, 64
    %v2048 = vld [vmem:[%s2047] sm:$0xff]
    %v2049 = vld [vmem:[%s2047 + $0x8] sm:$0xff]
    %v2050 = vld [vmem:[%s2047 + $0x10] sm:$0xff]
    %v2051 = vld [vmem:[%s2047 + $0x18] sm:$0xff]
    %s2052 = scalar_lea.vmem %s3, 448
    %v2053 = vld [vmem:[%s2052] sm:$0xff]
    %v2054 = vld [vmem:[%s2052 + $0x8] sm:$0xff]
    %v2055 = vld [vmem:[%s2052 + $0x10] sm:$0xff]
    %v2056 = vld [vmem:[%s2052 + $0x18] sm:$0xff]
    %v2057 = vld [vmem:[%s2052 + $0x20] sm:$0xff]
    %v2058 = vld [vmem:[%s2052 + $0x28] sm:$0xff]
    %v2059 = vld [vmem:[%s2052 + $0x30] sm:$0xff]
    %v2060 = vld [vmem:[%s2052 + $0x38] sm:$0xff]
    %s2061 = scalar_lea.vmem %s4, 7
    %v2062 = vld [vmem:[%s2061] sm:$0x1]
    %v2064 = vlaneseq
    %v2065 = vshrl.u32 %v2064, 7
    %v2066 = vsub.s32 0, %v2065
    %v2067 = vrot.slane %v2062, %v2066
    %2069 = vmatprep.subr.mxu0 0.0
    %2070 = vmatpush1.msra.mxu0 %v2053
    %2071 = vmatprep.subr.mxu0 0.0
    %2072 = vmatpush1.msra.mxu0 %v2054
    %2073 = vmatprep.subr.mxu0 0.0
    %2074 = vmatpush1.msra.mxu0 %v2055
    %2075 = vmatprep.subr.mxu0 0.0
    %2076 = vmatpush1.msra.mxu0 %v2056
    %2077 = vmatprep.subr.mxu0 0.0
    %2078 = vmatpush1.msra.mxu0 %v2057
    %2079 = vmatprep.subr.mxu0 0.0
    %2080 = vmatpush1.msra.mxu0 %v2058
    %2081 = vmatprep.subr.mxu0 0.0
    %2082 = vmatpush1.msra.mxu0 %v2059
    %2083 = vmatprep.subr.mxu0 0.0
    %2084 = vmatpush1.msra.mxu0 %v2060
    %2085 = vmatprep.subr.mxu0 0.0
    %2086 = vmatpush1.msra.mxu0 0.0
    %2087 = vmatprep.subr.mxu0 0.0
    %2088 = vmatpush1.msra.mxu0 0.0
    %2089 = vmatprep.subr.mxu0 0.0
    %2090 = vmatpush1.msra.mxu0 0.0
    %2091 = vmatprep.subr.mxu0 0.0
    %2092 = vmatpush1.msra.mxu0 0.0
    %2093 = vmatprep.subr.mxu0 0.0
    %2094 = vmatpush1.msra.mxu0 0.0
    %2095 = vmatprep.subr.mxu0 0.0
    %2096 = vmatpush1.msra.mxu0 0.0
    %2097 = vmatprep.subr.mxu0 0.0
    %2098 = vmatpush1.msra.mxu0 0.0
    %2099 = vmatprep.subr.mxu0 0.0
    %2100 = vmatpush1.msra.mxu0 0.0
    %2101 = vmatprep.subr.mxu0 0.0
    %2102 = vmatpush1.msra.mxu0 0.0
    %2103 = vmatprep.subr.mxu0 0.0
    %2104 = vmatpush1.msra.mxu0 0.0
    %2105 = vmatprep.subr.mxu0 0.0
    %2106 = vmatpush1.msra.mxu0 0.0
    %2107 = vmatprep.subr.mxu0 0.0
    %2108 = vmatpush1.msra.mxu0 0.0
    %2109 = vmatprep.subr.mxu0 0.0
    %2110 = vmatpush1.msra.mxu0 0.0
    %2111 = vmatprep.subr.mxu0 0.0
    %2112 = vmatpush1.msra.mxu0 0.0
    %2113 = vmatprep.subr.mxu0 0.0
    %2114 = vmatpush1.msra.mxu0 0.0
    %2115 = vmatprep.subr.mxu0 0.0
    %2116 = vmatpush1.msra.mxu0 0.0
    %2117 = vmatprep.subr.mxu0 0.0
    %2118 = vmatpush1.msra.mxu0 0.0
    %2119 = vmatprep.subr.mxu0 0.0
    %2120 = vmatpush1.msra.mxu0 0.0
    %2121 = vmatprep.subr.mxu0 0.0
    %2122 = vmatpush1.msra.mxu0 0.0
    %2123 = vmatprep.subr.mxu0 0.0
    %2124 = vmatpush1.msra.mxu0 0.0
    %2125 = vmatprep.subr.mxu0 0.0
    %2126 = vmatpush1.msra.mxu0 0.0
    %2127 = vmatprep.subr.mxu0 0.0
    %2128 = vmatpush1.msra.mxu0 0.0
    %2129 = vmatprep.subr.mxu0 0.0
    %2130 = vmatpush1.msra.mxu0 0.0
    %2131 = vmatprep.subr.mxu0 0.0
    %2132 = vmatpush1.msra.mxu0 0.0
    %2133 = vmatprep.mubr.f32.mxu0 0.0
    %2134 = vmatmul.mubr.f32.gmra.mrb[0].mxu0 %v1593
    %v2135 = vpop.f32.mrb[0].mxu0
    %v2136 = vadd.f32 %v2067, %v2135
    %v2137 = vpop.f32.mrb[0].mxu0
    %2138 = vmatprep.mubr.f32.mxu0 0.0
    %2139 = vmatmul.mubr.f32.gmra.mrb[0].mxu0 %v1596
    %v2140 = vpop.f32.mrb[0].mxu0
    %v2141 = vadd.f32 %v2067, %v2140
    %v2142 = vpop.f32.mrb[0].mxu0
    %2143 = vdwg.mxu0
    %s2144 = scalar_lea.vmem %s3, 576
    %v2145 = vld [vmem:[%s2144] sm:$0xff]
    %v2146 = vld [vmem:[%s2144 + $0x8] sm:$0xff]
    %v2147 = vld [vmem:[%s2144 + $0x10] sm:$0xff]
    %v2148 = vld [vmem:[%s2144 + $0x18] sm:$0xff]
    %v2149 = vld [vmem:[%s2144 + $0x20] sm:$0xff]
    %v2150 = vld [vmem:[%s2144 + $0x28] sm:$0xff]
    %v2151 = vld [vmem:[%s2144 + $0x30] sm:$0xff]
    %v2152 = vld [vmem:[%s2144 + $0x38] sm:$0xff]
    %s2153 = scalar_lea.vmem %s4, 9
    %v2154 = vld [vmem:[%s2153] sm:$0x1]
    %v2156 = vlaneseq
    %v2157 = vshrl.u32 %v2156, 7
    %v2158 = vsub.s32 0, %v2157
    %v2159 = vrot.slane %v2154, %v2158
    %2161 = vmatprep.subr.mxu0 0.0
    %2162 = vmatpush1.msra.mxu0 %v2145
    %2163 = vmatprep.subr.mxu0 0.0
    %2164 = vmatpush1.msra.mxu0 %v2146
    %2165 = vmatprep.subr.mxu0 0.0
    %2166 = vmatpush1.msra.mxu0 %v2147
    %2167 = vmatprep.subr.mxu0 0.0
    %2168 = vmatpush1.msra.mxu0 %v2148
    %2169 = vmatprep.subr.mxu0 0.0
    %2170 = vmatpush1.msra.mxu0 %v2149
    %2171 = vmatprep.subr.mxu0 0.0
    %2172 = vmatpush1.msra.mxu0 %v2150
    %2173 = vmatprep.subr.mxu0 0.0
    %2174 = vmatpush1.msra.mxu0 %v2151
    %2175 = vmatprep.subr.mxu0 0.0
    %2176 = vmatpush1.msra.mxu0 %v2152
    %2177 = vmatprep.subr.mxu0 0.0
    %2178 = vmatpush1.msra.mxu0 0.0
    %2179 = vmatprep.subr.mxu0 0.0
    %2180 = vmatpush1.msra.mxu0 0.0
    %2181 = vmatprep.subr.mxu0 0.0
    %2182 = vmatpush1.msra.mxu0 0.0
    %2183 = vmatprep.subr.mxu0 0.0
    %2184 = vmatpush1.msra.mxu0 0.0
    %2185 = vmatprep.subr.mxu0 0.0
    %2186 = vmatpush1.msra.mxu0 0.0
    %2187 = vmatprep.subr.mxu0 0.0
    %2188 = vmatpush1.msra.mxu0 0.0
    %2189 = vmatprep.subr.mxu0 0.0
    %2190 = vmatpush1.msra.mxu0 0.0
    %2191 = vmatprep.subr.mxu0 0.0
    %2192 = vmatpush1.msra.mxu0 0.0
    %2193 = vmatprep.subr.mxu0 0.0
    %2194 = vmatpush1.msra.mxu0 0.0
    %2195 = vmatprep.subr.mxu0 0.0
    %2196 = vmatpush1.msra.mxu0 0.0
    %2197 = vmatprep.subr.mxu0 0.0
    %2198 = vmatpush1.msra.mxu0 0.0
    %2199 = vmatprep.subr.mxu0 0.0
    %2200 = vmatpush1.msra.mxu0 0.0
    %2201 = vmatprep.subr.mxu0 0.0
    %2202 = vmatpush1.msra.mxu0 0.0
    %2203 = vmatprep.subr.mxu0 0.0
    %2204 = vmatpush1.msra.mxu0 0.0
    %2205 = vmatprep.subr.mxu0 0.0
    %2206 = vmatpush1.msra.mxu0 0.0
    %2207 = vmatprep.subr.mxu0 0.0
    %2208 = vmatpush1.msra.mxu0 0.0
    %2209 = vmatprep.subr.mxu0 0.0
    %2210 = vmatpush1.msra.mxu0 0.0
    %2211 = vmatprep.subr.mxu0 0.0
    %2212 = vmatpush1.msra.mxu0 0.0
    %2213 = vmatprep.subr.mxu0 0.0
    %2214 = vmatpush1.msra.mxu0 0.0
    %2215 = vmatprep.subr.mxu0 0.0
    %2216 = vmatpush1.msra.mxu0 0.0
    %2217 = vmatprep.subr.mxu0 0.0
    %2218 = vmatpush1.msra.mxu0 0.0
    %2219 = vmatprep.subr.mxu0 0.0
    %2220 = vmatpush1.msra.mxu0 0.0
    %2221 = vmatprep.subr.mxu0 0.0
    %2222 = vmatpush1.msra.mxu0 0.0
    %2223 = vmatprep.subr.mxu0 0.0
    %2224 = vmatpush1.msra.mxu0 0.0
    %2225 = vmatprep.mubr.f32.mxu0 0.0
    %2226 = vmatmul.mubr.f32.gmra.mrb[0].mxu0 %v1593
    %v2227 = vpop.f32.mrb[0].mxu0
    %v2228 = vadd.f32 %v2159, %v2227
    %v2229 = vpop.f32.mrb[0].mxu0
    %2230 = vmatprep.mubr.f32.mxu0 0.0
    %2231 = vmatmul.mubr.f32.gmra.mrb[0].mxu0 %v1596
    %v2232 = vpop.f32.mrb[0].mxu0
    %v2233 = vadd.f32 %v2159, %v2232
    %v2234 = vpop.f32.mrb[0].mxu0
    %2235 = vdwg.mxu0
    %s2236 = scalar_lea.vmem %s3, 704
    %v2237 = vld [vmem:[%s2236] sm:$0xff]
    %v2238 = vld [vmem:[%s2236 + $0x8] sm:$0xff]
    %v2239 = vld [vmem:[%s2236 + $0x10] sm:$0xff]
    %v2240 = vld [vmem:[%s2236 + $0x18] sm:$0xff]
    %v2241 = vld [vmem:[%s2236 + $0x20] sm:$0xff]
    %v2242 = vld [vmem:[%s2236 + $0x28] sm:$0xff]
    %v2243 = vld [vmem:[%s2236 + $0x30] sm:$0xff]
    %v2244 = vld [vmem:[%s2236 + $0x38] sm:$0xff]
    %s2245 = scalar_lea.vmem %s4, 11
    %v2246 = vld [vmem:[%s2245] sm:$0x1]
    %v2248 = vlaneseq
    %v2249 = vshrl.u32 %v2248, 7
    %v2250 = vsub.s32 0, %v2249
    %v2251 = vrot.slane %v2246, %v2250
    %2253 = vmatprep.subr.mxu0 0.0
    %2254 = vmatpush1.msra.mxu0 %v2237
    %2255 = vmatprep.subr.mxu0 0.0
    %2256 = vmatpush1.msra.mxu0 %v2238
    %2257 = vmatprep.subr.mxu0 0.0
    %2258 = vmatpush1.msra.mxu0 %v2239
    %2259 = vmatprep.subr.mxu0 0.0
    %2260 = vmatpush1.msra.mxu0 %v2240
    %2261 = vmatprep.subr.mxu0 0.0
    %2262 = vmatpush1.msra.mxu0 %v2241
    %2263 = vmatprep.subr.mxu0 0.0
    %2264 = vmatpush1.msra.mxu0 %v2242
    %2265 = vmatprep.subr.mxu0 0.0
    %2266 = vmatpush1.msra.mxu0 %v2243
    %2267 = vmatprep.subr.mxu0 0.0
    %2268 = vmatpush1.msra.mxu0 %v2244
    %2269 = vmatprep.subr.mxu0 0.0
    %2270 = vmatpush1.msra.mxu0 0.0
    %2271 = vmatprep.subr.mxu0 0.0
    %2272 = vmatpush1.msra.mxu0 0.0
    %2273 = vmatprep.subr.mxu0 0.0
    %2274 = vmatpush1.msra.mxu0 0.0
    %2275 = vmatprep.subr.mxu0 0.0
    %2276 = vmatpush1.msra.mxu0 0.0
    %2277 = vmatprep.subr.mxu0 0.0
    %2278 = vmatpush1.msra.mxu0 0.0
    %2279 = vmatprep.subr.mxu0 0.0
    %2280 = vmatpush1.msra.mxu0 0.0
    %2281 = vmatprep.subr.mxu0 0.0
    %2282 = vmatpush1.msra.mxu0 0.0
    %2283 = vmatprep.subr.mxu0 0.0
    %2284 = vmatpush1.msra.mxu0 0.0
    %2285 = vmatprep.subr.mxu0 0.0
    %2286 = vmatpush1.msra.mxu0 0.0
    %2287 = vmatprep.subr.mxu0 0.0
    %2288 = vmatpush1.msra.mxu0 0.0
    %2289 = vmatprep.subr.mxu0 0.0
    %2290 = vmatpush1.msra.mxu0 0.0
    %2291 = vmatprep.subr.mxu0 0.0
    %2292 = vmatpush1.msra.mxu0 0.0
    %2293 = vmatprep.subr.mxu0 0.0
    %2294 = vmatpush1.msra.mxu0 0.0
    %2295 = vmatprep.subr.mxu0 0.0
    %2296 = vmatpush1.msra.mxu0 0.0
    %2297 = vmatprep.subr.mxu0 0.0
    %2298 = vmatpush1.msra.mxu0 0.0
    %2299 = vmatprep.subr.mxu0 0.0
    %2300 = vmatpush1.msra.mxu0 0.0
    %2301 = vmatprep.subr.mxu0 0.0
    %2302 = vmatpush1.msra.mxu0 0.0
    %2303 = vmatprep.subr.mxu0 0.0
    %2304 = vmatpush1.msra.mxu0 0.0
    %2305 = vmatprep.subr.mxu0 0.0
    %2306 = vmatpush1.msra.mxu0 0.0
    %2307 = vmatprep.subr.mxu0 0.0
    %2308 = vmatpush1.msra.mxu0 0.0
    %2309 = vmatprep.subr.mxu0 0.0
    %2310 = vmatpush1.msra.mxu0 0.0
    %2311 = vmatprep.subr.mxu0 0.0
    %2312 = vmatpush1.msra.mxu0 0.0
    %2313 = vmatprep.subr.mxu0 0.0
    %2314 = vmatpush1.msra.mxu0 0.0
    %2315 = vmatprep.subr.mxu0 0.0
    %2316 = vmatpush1.msra.mxu0 0.0
    %2317 = vmatprep.mubr.f32.mxu0 0.0
    %2318 = vmatmul.mubr.f32.gmra.mrb[0].mxu0 %v1593
    %v2319 = vpop.f32.mrb[0].mxu0
    %v2320 = vadd.f32 %v2251, %v2319
    %v2321 = vpop.f32.mrb[0].mxu0
    %2322 = vmatprep.mubr.f32.mxu0 0.0
    %2323 = vmatmul.mubr.f32.gmra.mrb[0].mxu0 %v1596
    %v2324 = vpop.f32.mrb[0].mxu0
    %v2325 = vadd.f32 %v2251, %v2324
    %v2326 = vpop.f32.mrb[0].mxu0
    %2327 = vdwg.mxu0
    %v2329 = vsel %vm65, %v2136, 0
    %v2332 = vsel %vm65, %v2141, 0
    %v2335 = vsel %vm65, %v2228, 0
    %v2338 = vsel %vm65, %v2233, 0
    %2340 = vmatprep.subr.mxu0 0.0
    %2341 = vmatpush1.xpose.msra.mxu0 %v2335
    %2342 = vmatprep.subr.mxu0 0.0
    %2343 = vmatpush1.xpose.msra.mxu0 %v2338
    %2344 = vmatprep.subr.mxu0 0.0
    %2345 = vmatpush1.xpose.msra.mxu0 0.0
    %2346 = vmatprep.subr.mxu0 0.0
    %2347 = vmatpush1.xpose.msra.mxu0 0.0
    %2348 = vmatprep.subr.mxu0 0.0
    %2349 = vmatpush1.xpose.msra.mxu0 0.0
    %2350 = vmatprep.subr.mxu0 0.0
    %2351 = vmatpush1.xpose.msra.mxu0 0.0
    %2352 = vmatprep.subr.mxu0 0.0
    %2353 = vmatpush1.xpose.msra.mxu0 0.0
    %2354 = vmatprep.subr.mxu0 0.0
    %2355 = vmatpush1.xpose.msra.mxu0 0.0
    %2356 = vmatprep.subr.mxu0 0.0
    %2357 = vmatpush1.xpose.msra.mxu0 0.0
    %2358 = vmatprep.subr.mxu0 0.0
    %2359 = vmatpush1.xpose.msra.mxu0 0.0
    %2360 = vmatprep.subr.mxu0 0.0
    %2361 = vmatpush1.xpose.msra.mxu0 0.0
    %2362 = vmatprep.subr.mxu0 0.0
    %2363 = vmatpush1.xpose.msra.mxu0 0.0
    %2364 = vmatprep.subr.mxu0 0.0
    %2365 = vmatpush1.xpose.msra.mxu0 0.0
    %2366 = vmatprep.subr.mxu0 0.0
    %2367 = vmatpush1.xpose.msra.mxu0 0.0
    %2368 = vmatprep.subr.mxu0 0.0
    %2369 = vmatpush1.xpose.msra.mxu0 0.0
    %2370 = vmatprep.subr.mxu0 0.0
    %2371 = vmatpush1.xpose.msra.mxu0 0.0
    %2372 = vmatprep.subr.mxu0 0.0
    %2373 = vmatpush1.xpose.msra.mxu0 0.0
    %2374 = vmatprep.subr.mxu0 0.0
    %2375 = vmatpush1.xpose.msra.mxu0 0.0
    %2376 = vmatprep.subr.mxu0 0.0
    %2377 = vmatpush1.xpose.msra.mxu0 0.0
    %2378 = vmatprep.subr.mxu0 0.0
    %2379 = vmatpush1.xpose.msra.mxu0 0.0
    %2380 = vmatprep.subr.mxu0 0.0
    %2381 = vmatpush1.xpose.msra.mxu0 0.0
    %2382 = vmatprep.subr.mxu0 0.0
    %2383 = vmatpush1.xpose.msra.mxu0 0.0
    %2384 = vmatprep.subr.mxu0 0.0
    %2385 = vmatpush1.xpose.msra.mxu0 0.0
    %2386 = vmatprep.subr.mxu0 0.0
    %2387 = vmatpush1.xpose.msra.mxu0 0.0
    %2388 = vmatprep.subr.mxu0 0.0
    %2389 = vmatpush1.xpose.msra.mxu0 0.0
    %2390 = vmatprep.subr.mxu0 0.0
    %2391 = vmatpush1.xpose.msra.mxu0 0.0
    %2392 = vmatprep.subr.mxu0 0.0
    %2393 = vmatpush1.xpose.msra.mxu0 0.0
    %2394 = vmatprep.subr.mxu0 0.0
    %2395 = vmatpush1.xpose.msra.mxu0 0.0
    %2396 = vmatprep.subr.mxu0 0.0
    %2397 = vmatpush1.xpose.msra.mxu0 0.0
    %2398 = vmatprep.subr.mxu0 0.0
    %2399 = vmatpush1.xpose.msra.mxu0 0.0
    %2400 = vmatprep.subr.mxu0 0.0
    %2401 = vmatpush1.xpose.msra.mxu0 0.0
    %2402 = vmatprep.subr.mxu0 0.0
    %2403 = vmatpush1.xpose.msra.mxu0 0.0
    %2404 = vmatprep.mubr.f32.mxu0 0.0
    %2405 = vmatmul.mubr.f32.gmra.mrb[0].mxu0 %v2329
    %v2406 = vpop.f32.mrb[0].mxu0
    %v2407 = vadd.f32 %v161, %v2406
    %v2408 = vpop.f32.mrb[0].mxu0
    %2409 = vmatprep.mubr.f32.mxu0 0.0
    %2410 = vmatmul.mubr.f32.gmra.mrb[0].mxu0 %v2332
    %v2411 = vpop.f32.mrb[0].mxu0
    %v2412 = vadd.f32 %v162, %v2411
    %v2413 = vpop.f32.mrb[0].mxu0
    %2414 = vdwg.mxu0
    %v2415 = vsel %vm531, %v2407, -inf
    %2416 = vmax.xlane.f32.xlu0 %v2415
    %v2417 = vpop.xlane.xlu0 %2416
    %v2418 = vsel %vm531, %v2412, -inf
    %2419 = vmax.xlane.f32.xlu0 %v2418
    %v2420 = vpop.xlane.xlu0 %2419
    %v2421 = vsub.f32 %v2407, %v2417
    %v2422 = vsub.f32 %v2412, %v2420
    %v2423 = vmul.f32 %v2421, 1.442695
    %v2424 = vpow.pop %v2423
    %v2425 = vmul.f32 %v2422, 1.442695
    %v2426 = vpow.pop %v2425
    %v2427 = vsel %vm531, %v2424, 0.0
    %2428 = vadd.xlane.f32.xlu0 %v2427
    %v2429 = vpop.xlane.xlu0 %2428
    %v2430 = vsel %vm531, %v2426, 0.0
    %2431 = vadd.xlane.f32.xlu0 %v2430
    %v2432 = vpop.xlane.xlu0 %2431
    %v2433 = vrcp.pop %v2429
    %v2434 = vrcp.pop %v2432
    %v2435 = vmul.f32 %v2424, %v2433
    %v2436 = vmul.f32 %v2426, %v2434
    %v2438 = vsel %vm531, %v2435, 0
    %v2441 = vsel %vm531, %v2436, 0
    %2443 = vmatprep.subr.mxu0 0.0
    %2444 = vmatpush1.msra.mxu0 %v2320
    %2445 = vmatprep.subr.mxu0 0.0
    %2446 = vmatpush1.msra.mxu0 %v2325
    %2447 = vmatprep.subr.mxu0 0.0
    %2448 = vmatpush1.msra.mxu0 0.0
    %2449 = vmatprep.subr.mxu0 0.0
    %2450 = vmatpush1.msra.mxu0 0.0
    %2451 = vmatprep.subr.mxu0 0.0
    %2452 = vmatpush1.msra.mxu0 0.0
    %2453 = vmatprep.subr.mxu0 0.0
    %2454 = vmatpush1.msra.mxu0 0.0
    %2455 = vmatprep.subr.mxu0 0.0
    %2456 = vmatpush1.msra.mxu0 0.0
    %2457 = vmatprep.subr.mxu0 0.0
    %2458 = vmatpush1.msra.mxu0 0.0
    %2459 = vmatprep.subr.mxu0 0.0
    %2460 = vmatpush1.msra.mxu0 0.0
    %2461 = vmatprep.subr.mxu0 0.0
    %2462 = vmatpush1.msra.mxu0 0.0
    %2463 = vmatprep.subr.mxu0 0.0
    %2464 = vmatpush1.msra.mxu0 0.0
    %2465 = vmatprep.subr.mxu0 0.0
    %2466 = vmatpush1.msra.mxu0 0.0
    %2467 = vmatprep.subr.mxu0 0.0
    %2468 = vmatpush1.msra.mxu0 0.0
    %2469 = vmatprep.subr.mxu0 0.0
    %2470 = vmatpush1.msra.mxu0 0.0
    %2471 = vmatprep.subr.mxu0 0.0
    %2472 = vmatpush1.msra.mxu0 0.0
    %2473 = vmatprep.subr.mxu0 0.0
    %2474 = vmatpush1.msra.mxu0 0.0
    %2475 = vmatprep.subr.mxu0 0.0
    %2476 = vmatpush1.msra.mxu0 0.0
    %2477 = vmatprep.subr.mxu0 0.0
    %2478 = vmatpush1.msra.mxu0 0.0
    %2479 = vmatprep.subr.mxu0 0.0
    %2480 = vmatpush1.msra.mxu0 0.0
    %2481 = vmatprep.subr.mxu0 0.0
    %2482 = vmatpush1.msra.mxu0 0.0
    %2483 = vmatprep.subr.mxu0 0.0
    %2484 = vmatpush1.msra.mxu0 0.0
    %2485 = vmatprep.subr.mxu0 0.0
    %2486 = vmatpush1.msra.mxu0 0.0
    %2487 = vmatprep.subr.mxu0 0.0
    %2488 = vmatpush1.msra.mxu0 0.0
    %2489 = vmatprep.subr.mxu0 0.0
    %2490 = vmatpush1.msra.mxu0 0.0
    %2491 = vmatprep.subr.mxu0 0.0
    %2492 = vmatpush1.msra.mxu0 0.0
    %2493 = vmatprep.subr.mxu0 0.0
    %2494 = vmatpush1.msra.mxu0 0.0
    %2495 = vmatprep.subr.mxu0 0.0
    %2496 = vmatpush1.msra.mxu0 0.0
    %2497 = vmatprep.subr.mxu0 0.0
    %2498 = vmatpush1.msra.mxu0 0.0
    %2499 = vmatprep.subr.mxu0 0.0
    %2500 = vmatpush1.msra.mxu0 0.0
    %2501 = vmatprep.subr.mxu0 0.0
    %2502 = vmatpush1.msra.mxu0 0.0
    %2503 = vmatprep.subr.mxu0 0.0
    %2504 = vmatpush1.msra.mxu0 0.0
    %2505 = vmatprep.subr.mxu0 0.0
    %2506 = vmatpush1.msra.mxu0 0.0
    %2507 = vmatprep.mubr.f32.mxu0 0.0
    %2508 = vmatmul.mubr.f32.gmra.mrb[0].mxu0 %v2438
    %v2509 = vpop.f32.mrb[0].mxu0
    %v2510 = vadd.f32 0.0, %v2509
    %v2511 = vpop.f32.mrb[0].mxu0
    %2512 = vmatprep.mubr.f32.mxu0 0.0
    %2513 = vmatmul.mubr.f32.gmra.mrb[0].mxu0 %v2441
    %v2514 = vpop.f32.mrb[0].mxu0
    %v2515 = vadd.f32 0.0, %v2514
    %v2516 = vpop.f32.mrb[0].mxu0
    %2517 = vdwg.mxu0
    %s2518 = scalar_lea.vmem %s5, 96
    %v2519 = vld [vmem:[%s2518] sm:$0xff]
    %v2520 = vld [vmem:[%s2518 + $0x8] sm:$0xff]
    %v2521 = vld [vmem:[%s2518 + $0x10] sm:$0xff]
    %v2522 = vld [vmem:[%s2518 + $0x18] sm:$0xff]
    %v2524 = vsel %vm65, %v2510, 0
    %v2527 = vsel %vm65, %v2515, 0
    %2529 = vmatprep.subr.mxu0 0.0
    %2530 = vmatpush1.msra.mxu0 %v2519
    %2531 = vmatprep.subr.mxu0 0.0
    %2532 = vmatpush1.msra.mxu0 %v2520
    %2533 = vmatprep.subr.mxu0 0.0
    %2534 = vmatpush1.msra.mxu0 %v2521
    %2535 = vmatprep.subr.mxu0 0.0
    %2536 = vmatpush1.msra.mxu0 %v2522
    %2537 = vmatprep.subr.mxu0 0.0
    %2538 = vmatpush1.msra.mxu0 0.0
    %2539 = vmatprep.subr.mxu0 0.0
    %2540 = vmatpush1.msra.mxu0 0.0
    %2541 = vmatprep.subr.mxu0 0.0
    %2542 = vmatpush1.msra.mxu0 0.0
    %2543 = vmatprep.subr.mxu0 0.0
    %2544 = vmatpush1.msra.mxu0 0.0
    %2545 = vmatprep.subr.mxu0 0.0
    %2546 = vmatpush1.msra.mxu0 0.0
    %2547 = vmatprep.subr.mxu0 0.0
    %2548 = vmatpush1.msra.mxu0 0.0
    %2549 = vmatprep.subr.mxu0 0.0
    %2550 = vmatpush1.msra.mxu0 0.0
    %2551 = vmatprep.subr.mxu0 0.0
    %2552 = vmatpush1.msra.mxu0 0.0
    %2553 = vmatprep.subr.mxu0 0.0
    %2554 = vmatpush1.msra.mxu0 0.0
    %2555 = vmatprep.subr.mxu0 0.0
    %2556 = vmatpush1.msra.mxu0 0.0
    %2557 = vmatprep.subr.mxu0 0.0
    %2558 = vmatpush1.msra.mxu0 0.0
    %2559 = vmatprep.subr.mxu0 0.0
    %2560 = vmatpush1.msra.mxu0 0.0
    %2561 = vmatprep.subr.mxu0 0.0
    %2562 = vmatpush1.msra.mxu0 0.0
    %2563 = vmatprep.subr.mxu0 0.0
    %2564 = vmatpush1.msra.mxu0 0.0
    %2565 = vmatprep.subr.mxu0 0.0
    %2566 = vmatpush1.msra.mxu0 0.0
    %2567 = vmatprep.subr.mxu0 0.0
    %2568 = vmatpush1.msra.mxu0 0.0
    %2569 = vmatprep.subr.mxu0 0.0
    %2570 = vmatpush1.msra.mxu0 0.0
    %2571 = vmatprep.subr.mxu0 0.0
    %2572 = vmatpush1.msra.mxu0 0.0
    %2573 = vmatprep.subr.mxu0 0.0
    %2574 = vmatpush1.msra.mxu0 0.0
    %2575 = vmatprep.subr.mxu0 0.0
    %2576 = vmatpush1.msra.mxu0 0.0
    %2577 = vmatprep.subr.mxu0 0.0
    %2578 = vmatpush1.msra.mxu0 0.0
    %2579 = vmatprep.subr.mxu0 0.0
    %2580 = vmatpush1.msra.mxu0 0.0
    %2581 = vmatprep.subr.mxu0 0.0
    %2582 = vmatpush1.msra.mxu0 0.0
    %2583 = vmatprep.subr.mxu0 0.0
    %2584 = vmatpush1.msra.mxu0 0.0
    %2585 = vmatprep.subr.mxu0 0.0
    %2586 = vmatpush1.msra.mxu0 0.0
    %2587 = vmatprep.subr.mxu0 0.0
    %2588 = vmatpush1.msra.mxu0 0.0
    %2589 = vmatprep.subr.mxu0 0.0
    %2590 = vmatpush1.msra.mxu0 0.0
    %2591 = vmatprep.subr.mxu0 0.0
    %2592 = vmatpush1.msra.mxu0 0.0
    %2593 = vmatprep.mubr.f32.mxu0 0.0
    %2594 = vmatmul.mubr.f32.gmra.mrb[0].mxu0 %v2524
    %v2595 = vpop.f32.mrb[0].mxu0
    %v2596 = vadd.f32 0.0, %v2595
    %v2597 = vpop.f32.mrb[0].mxu0
    %2598 = vmatprep.mubr.f32.mxu0 0.0
    %2599 = vmatmul.mubr.f32.gmra.mrb[0].mxu0 %v2527
    %v2600 = vpop.f32.mrb[0].mxu0
    %v2601 = vadd.f32 0.0, %v2600
    %v2602 = vpop.f32.mrb[0].mxu0
    %2603 = vdwg.mxu0
    %v2605 = vsel %vm65, %v2039, 0
    %v2608 = vsel %vm65, %v2044, 0
    %2610 = vmatprep.subr.mxu0 0.0
    %2611 = vmatpush1.msra.mxu0 %v2048
    %2612 = vmatprep.subr.mxu0 0.0
    %2613 = vmatpush1.msra.mxu0 %v2049
    %2614 = vmatprep.subr.mxu0 0.0
    %2615 = vmatpush1.msra.mxu0 %v2050
    %2616 = vmatprep.subr.mxu0 0.0
    %2617 = vmatpush1.msra.mxu0 %v2051
    %2618 = vmatprep.subr.mxu0 0.0
    %2619 = vmatpush1.msra.mxu0 0.0
    %2620 = vmatprep.subr.mxu0 0.0
    %2621 = vmatpush1.msra.mxu0 0.0
    %2622 = vmatprep.subr.mxu0 0.0
    %2623 = vmatpush1.msra.mxu0 0.0
    %2624 = vmatprep.subr.mxu0 0.0
    %2625 = vmatpush1.msra.mxu0 0.0
    %2626 = vmatprep.subr.mxu0 0.0
    %2627 = vmatpush1.msra.mxu0 0.0
    %2628 = vmatprep.subr.mxu0 0.0
    %2629 = vmatpush1.msra.mxu0 0.0
    %2630 = vmatprep.subr.mxu0 0.0
    %2631 = vmatpush1.msra.mxu0 0.0
    %2632 = vmatprep.subr.mxu0 0.0
    %2633 = vmatpush1.msra.mxu0 0.0
    %2634 = vmatprep.subr.mxu0 0.0
    %2635 = vmatpush1.msra.mxu0 0.0
    %2636 = vmatprep.subr.mxu0 0.0
    %2637 = vmatpush1.msra.mxu0 0.0
    %2638 = vmatprep.subr.mxu0 0.0
    %2639 = vmatpush1.msra.mxu0 0.0
    %2640 = vmatprep.subr.mxu0 0.0
    %2641 = vmatpush1.msra.mxu0 0.0
    %2642 = vmatprep.subr.mxu0 0.0
    %2643 = vmatpush1.msra.mxu0 0.0
    %2644 = vmatprep.subr.mxu0 0.0
    %2645 = vmatpush1.msra.mxu0 0.0
    %2646 = vmatprep.subr.mxu0 0.0
    %2647 = vmatpush1.msra.mxu0 0.0
    %2648 = vmatprep.subr.mxu0 0.0
    %2649 = vmatpush1.msra.mxu0 0.0
    %2650 = vmatprep.subr.mxu0 0.0
    %2651 = vmatpush1.msra.mxu0 0.0
    %2652 = vmatprep.subr.mxu0 0.0
    %2653 = vmatpush1.msra.mxu0 0.0
    %2654 = vmatprep.subr.mxu0 0.0
    %2655 = vmatpush1.msra.mxu0 0.0
    %2656 = vmatprep.subr.mxu0 0.0
    %2657 = vmatpush1.msra.mxu0 0.0
    %2658 = vmatprep.subr.mxu0 0.0
    %2659 = vmatpush1.msra.mxu0 0.0
    %2660 = vmatprep.subr.mxu0 0.0
    %2661 = vmatpush1.msra.mxu0 0.0
    %2662 = vmatprep.subr.mxu0 0.0
    %2663 = vmatpush1.msra.mxu0 0.0
    %2664 = vmatprep.subr.mxu0 0.0
    %2665 = vmatpush1.msra.mxu0 0.0
    %2666 = vmatprep.subr.mxu0 0.0
    %2667 = vmatpush1.msra.mxu0 0.0
    %2668 = vmatprep.subr.mxu0 0.0
    %2669 = vmatpush1.msra.mxu0 0.0
    %2670 = vmatprep.subr.mxu0 0.0
    %2671 = vmatpush1.msra.mxu0 0.0
    %2672 = vmatprep.subr.mxu0 0.0
    %2673 = vmatpush1.msra.mxu0 0.0
    %2674 = vmatprep.mubr.f32.mxu0 0.0
    %2675 = vmatmul.mubr.f32.gmra.mrb[0].mxu0 %v2605
    %v2676 = vpop.f32.mrb[0].mxu0
    %v2677 = vadd.f32 %v2596, %v2676
    %v2678 = vpop.f32.mrb[0].mxu0
    %2679 = vmatprep.mubr.f32.mxu0 0.0
    %2680 = vmatmul.mubr.f32.gmra.mrb[0].mxu0 %v2608
    %v2681 = vpop.f32.mrb[0].mxu0
    %v2682 = vadd.f32 %v2601, %v2681
    %v2683 = vpop.f32.mrb[0].mxu0
    %2684 = vdwg.mxu0
    %s2685 = scalar_lea.vmem %s6, 6
    %v2686 = vld [vmem:[%s2685] sm:$0x1]
    %v2688 = vlaneseq
    %v2689 = vshrl.u32 %v2688, 7
    %v2690 = vsub.s32 0, %v2689
    %v2691 = vrot.slane %v2686, %v2690
    %v2693 = vadd.f32 %v2677, %v2691
    %v2694 = vadd.f32 %v2682, %v2691
    %v2695 = vadd.f32 %v1573, %v2693
    %v2696 = vadd.f32 %v1574, %v2694
    %s2697 = scalar_lea.vmem %s6, 7
    %v2698 = vld [vmem:[%s2697] sm:$0x1]
    %s2699 = scalar_lea.vmem %s6, 8
    %v2700 = vld [vmem:[%s2699] sm:$0x1]
    %v2701 = vsel %vm178, %v2695, 0.0
    %2702 = vadd.xlane.f32.xlu0 %v2701
    %v2703 = vpop.xlane.xlu0 %2702
    %v2704 = vsel %vm178, %v2696, 0.0
    %2705 = vadd.xlane.f32.xlu0 %v2704
    %v2706 = vpop.xlane.xlu0 %2705
    %v2707 = vmul.f32 %v2703, %v1293
    %v2708 = vmul.f32 %v2706, %v1293
    %v2709 = vsub.f32 %v2695, %v2707
    %v2710 = vsub.f32 %v2696, %v2708
    %v2711 = vmul.f32 %v2709, %v2709
    %v2712 = vmul.f32 %v2710, %v2710
    %v2713 = vsel %vm178, %v2711, 0.0
    %2714 = vadd.xlane.f32.xlu0 %v2713
    %v2715 = vpop.xlane.xlu0 %2714
    %v2716 = vsel %vm178, %v2712, 0.0
    %2717 = vadd.xlane.f32.xlu0 %v2716
    %v2718 = vpop.xlane.xlu0 %2717
    %v2719 = vmul.f32 %v2715, %v1293
    %v2720 = vmul.f32 %v2718, %v1293
    %v2721 = vadd.f32 %v2719, 1e-05
    %v2722 = vadd.f32 %v2720, 1e-05
    %v2723 = vrsqrt.pop %v2721
    %v2724 = vrsqrt.pop %v2722
    %v2725 = vmul.f32 %v2709, %v2723
    %v2726 = vmul.f32 %v2710, %v2724
    %v2728 = vlaneseq
    %v2729 = vshrl.u32 %v2728, 7
    %v2730 = vsub.s32 0, %v2729
    %v2731 = vrot.slane %v2698, %v2730
    %v2733 = vmul.f32 %v2725, %v2731
    %v2734 = vmul.f32 %v2726, %v2731
    %v2736 = vlaneseq
    %v2737 = vshrl.u32 %v2736, 7
    %v2738 = vsub.s32 0, %v2737
    %v2739 = vrot.slane %v2700, %v2738
    %v2741 = vadd.f32 %v2733, %v2739
    %v2742 = vadd.f32 %v2734, %v2739
    %s2743 = scalar_lea.vmem %s7, 64
    %v2744 = vld [vmem:[%s2743] sm:$0xff]
    %v2745 = vld [vmem:[%s2743 + $0x8] sm:$0xff]
    %v2746 = vld [vmem:[%s2743 + $0x10] sm:$0xff]
    %v2747 = vld [vmem:[%s2743 + $0x18] sm:$0xff]
    %v2748 = vld [vmem:[%s2743 + $0x20] sm:$0xff]
    %v2749 = vld [vmem:[%s2743 + $0x28] sm:$0xff]
    %v2750 = vld [vmem:[%s2743 + $0x30] sm:$0xff]
    %v2751 = vld [vmem:[%s2743 + $0x38] sm:$0xff]
    %s2752 = scalar_lea.vmem %s8, 1
    %v2753 = vld [vmem:[%s2752] sm:$0x1]
    %v2755 = vlaneseq
    %v2756 = vshrl.u32 %v2755, 7
    %v2757 = vsub.s32 0, %v2756
    %v2758 = vrot.slane %v2753, %v2757
    %v2761 = vsel %vm178, %v2741, 0
    %v2764 = vsel %vm178, %v2742, 0
    %2766 = vmatprep.subr.mxu0 0.0
    %2767 = vmatpush1.msra.mxu0 %v2744
    %2768 = vmatprep.subr.mxu0 0.0
    %2769 = vmatpush1.msra.mxu0 %v2745
    %2770 = vmatprep.subr.mxu0 0.0
    %2771 = vmatpush1.msra.mxu0 %v2746
    %2772 = vmatprep.subr.mxu0 0.0
    %2773 = vmatpush1.msra.mxu0 %v2747
    %2774 = vmatprep.subr.mxu0 0.0
    %2775 = vmatpush1.msra.mxu0 %v2748
    %2776 = vmatprep.subr.mxu0 0.0
    %2777 = vmatpush1.msra.mxu0 %v2749
    %2778 = vmatprep.subr.mxu0 0.0
    %2779 = vmatpush1.msra.mxu0 %v2750
    %2780 = vmatprep.subr.mxu0 0.0
    %2781 = vmatpush1.msra.mxu0 %v2751
    %2782 = vmatprep.subr.mxu0 0.0
    %2783 = vmatpush1.msra.mxu0 0.0
    %2784 = vmatprep.subr.mxu0 0.0
    %2785 = vmatpush1.msra.mxu0 0.0
    %2786 = vmatprep.subr.mxu0 0.0
    %2787 = vmatpush1.msra.mxu0 0.0
    %2788 = vmatprep.subr.mxu0 0.0
    %2789 = vmatpush1.msra.mxu0 0.0
    %2790 = vmatprep.subr.mxu0 0.0
    %2791 = vmatpush1.msra.mxu0 0.0
    %2792 = vmatprep.subr.mxu0 0.0
    %2793 = vmatpush1.msra.mxu0 0.0
    %2794 = vmatprep.subr.mxu0 0.0
    %2795 = vmatpush1.msra.mxu0 0.0
    %2796 = vmatprep.subr.mxu0 0.0
    %2797 = vmatpush1.msra.mxu0 0.0
    %2798 = vmatprep.subr.mxu0 0.0
    %2799 = vmatpush1.msra.mxu0 0.0
    %2800 = vmatprep.subr.mxu0 0.0
    %2801 = vmatpush1.msra.mxu0 0.0
    %2802 = vmatprep.subr.mxu0 0.0
    %2803 = vmatpush1.msra.mxu0 0.0
    %2804 = vmatprep.subr.mxu0 0.0
    %2805 = vmatpush1.msra.mxu0 0.0
    %2806 = vmatprep.subr.mxu0 0.0
    %2807 = vmatpush1.msra.mxu0 0.0
    %2808 = vmatprep.subr.mxu0 0.0
    %2809 = vmatpush1.msra.mxu0 0.0
    %2810 = vmatprep.subr.mxu0 0.0
    %2811 = vmatpush1.msra.mxu0 0.0
    %2812 = vmatprep.subr.mxu0 0.0
    %2813 = vmatpush1.msra.mxu0 0.0
    %2814 = vmatprep.subr.mxu0 0.0
    %2815 = vmatpush1.msra.mxu0 0.0
    %2816 = vmatprep.subr.mxu0 0.0
    %2817 = vmatpush1.msra.mxu0 0.0
    %2818 = vmatprep.subr.mxu0 0.0
    %2819 = vmatpush1.msra.mxu0 0.0
    %2820 = vmatprep.subr.mxu0 0.0
    %2821 = vmatpush1.msra.mxu0 0.0
    %2822 = vmatprep.subr.mxu0 0.0
    %2823 = vmatpush1.msra.mxu0 0.0
    %2824 = vmatprep.subr.mxu0 0.0
    %2825 = vmatpush1.msra.mxu0 0.0
    %2826 = vmatprep.subr.mxu0 0.0
    %2827 = vmatpush1.msra.mxu0 0.0
    %2828 = vmatprep.subr.mxu0 0.0
    %2829 = vmatpush1.msra.mxu0 0.0
    %2830 = vmatprep.mubr.f32.mxu0 0.0
    %2831 = vmatmul.mubr.f32.gmra.mrb[0].mxu0 %v2761
    %v2832 = vpop.f32.mrb[0].mxu0
    %v2833 = vadd.f32 %v2758, %v2832
    %v2834 = vpop.f32.mrb[0].mxu0
    %2835 = vmatprep.mubr.f32.mxu0 0.0
    %2836 = vmatmul.mubr.f32.gmra.mrb[0].mxu0 %v2764
    %v2837 = vpop.f32.mrb[0].mxu0
    %v2838 = vadd.f32 %v2758, %v2837
    %v2839 = vpop.f32.mrb[0].mxu0
    %2840 = vdwg.mxu0
    %v2841 = vmax.f32 %v2833, 0.0
    %v2842 = vmax.f32 %v2838, 0.0
    %s2843 = scalar_lea.vmem %s9, 128
    %v2844 = vld [vmem:[%s2843] sm:$0xff]
    %v2845 = vld [vmem:[%s2843 + $0x8] sm:$0xff]
    %v2846 = vld [vmem:[%s2843 + $0x10] sm:$0xff]
    %v2847 = vld [vmem:[%s2843 + $0x18] sm:$0xff]
    %v2848 = vld [vmem:[%s2843 + $0x20] sm:$0xff]
    %v2849 = vld [vmem:[%s2843 + $0x28] sm:$0xff]
    %v2850 = vld [vmem:[%s2843 + $0x30] sm:$0xff]
    %v2851 = vld [vmem:[%s2843 + $0x38] sm:$0xff]
    %v2852 = vld [vmem:[%s2843 + $0x40] sm:$0xff]
    %v2853 = vld [vmem:[%s2843 + $0x48] sm:$0xff]
    %v2854 = vld [vmem:[%s2843 + $0x50] sm:$0xff]
    %v2855 = vld [vmem:[%s2843 + $0x58] sm:$0xff]
    %v2856 = vld [vmem:[%s2843 + $0x60] sm:$0xff]
    %v2857 = vld [vmem:[%s2843 + $0x68] sm:$0xff]
    %v2858 = vld [vmem:[%s2843 + $0x70] sm:$0xff]
    %v2859 = vld [vmem:[%s2843 + $0x78] sm:$0xff]
    %s2860 = scalar_lea.vmem %s6, 9
    %v2861 = vld [vmem:[%s2860] sm:$0x1]
    %v2863 = vlaneseq
    %v2864 = vshrl.u32 %v2863, 7
    %v2865 = vsub.s32 0, %v2864
    %v2866 = vrot.slane %v2861, %v2865
    %2868 = vmatprep.subr.mxu0 0.0
    %2869 = vmatpush1.msra.mxu0 %v2844
    %2870 = vmatprep.subr.mxu0 0.0
    %2871 = vmatpush1.msra.mxu0 %v2845
    %2872 = vmatprep.subr.mxu0 0.0
    %2873 = vmatpush1.msra.mxu0 %v2846
    %2874 = vmatprep.subr.mxu0 0.0
    %2875 = vmatpush1.msra.mxu0 %v2847
    %2876 = vmatprep.subr.mxu0 0.0
    %2877 = vmatpush1.msra.mxu0 %v2848
    %2878 = vmatprep.subr.mxu0 0.0
    %2879 = vmatpush1.msra.mxu0 %v2849
    %2880 = vmatprep.subr.mxu0 0.0
    %2881 = vmatpush1.msra.mxu0 %v2850
    %2882 = vmatprep.subr.mxu0 0.0
    %2883 = vmatpush1.msra.mxu0 %v2851
    %2884 = vmatprep.subr.mxu0 0.0
    %2885 = vmatpush1.msra.mxu0 %v2852
    %2886 = vmatprep.subr.mxu0 0.0
    %2887 = vmatpush1.msra.mxu0 %v2853
    %2888 = vmatprep.subr.mxu0 0.0
    %2889 = vmatpush1.msra.mxu0 %v2854
    %2890 = vmatprep.subr.mxu0 0.0
    %2891 = vmatpush1.msra.mxu0 %v2855
    %2892 = vmatprep.subr.mxu0 0.0
    %2893 = vmatpush1.msra.mxu0 %v2856
    %2894 = vmatprep.subr.mxu0 0.0
    %2895 = vmatpush1.msra.mxu0 %v2857
    %2896 = vmatprep.subr.mxu0 0.0
    %2897 = vmatpush1.msra.mxu0 %v2858
    %2898 = vmatprep.subr.mxu0 0.0
    %2899 = vmatpush1.msra.mxu0 %v2859
    %2900 = vmatprep.subr.mxu0 0.0
    %2901 = vmatpush1.msra.mxu0 0.0
    %2902 = vmatprep.subr.mxu0 0.0
    %2903 = vmatpush1.msra.mxu0 0.0
    %2904 = vmatprep.subr.mxu0 0.0
    %2905 = vmatpush1.msra.mxu0 0.0
    %2906 = vmatprep.subr.mxu0 0.0
    %2907 = vmatpush1.msra.mxu0 0.0
    %2908 = vmatprep.subr.mxu0 0.0
    %2909 = vmatpush1.msra.mxu0 0.0
    %2910 = vmatprep.subr.mxu0 0.0
    %2911 = vmatpush1.msra.mxu0 0.0
    %2912 = vmatprep.subr.mxu0 0.0
    %2913 = vmatpush1.msra.mxu0 0.0
    %2914 = vmatprep.subr.mxu0 0.0
    %2915 = vmatpush1.msra.mxu0 0.0
    %2916 = vmatprep.subr.mxu0 0.0
    %2917 = vmatpush1.msra.mxu0 0.0
    %2918 = vmatprep.subr.mxu0 0.0
    %2919 = vmatpush1.msra.mxu0 0.0
    %2920 = vmatprep.subr.mxu0 0.0
    %2921 = vmatpush1.msra.mxu0 0.0
    %2922 = vmatprep.subr.mxu0 0.0
    %2923 = vmatpush1.msra.mxu0 0.0
    %2924 = vmatprep.subr.mxu0 0.0
    %2925 = vmatpush1.msra.mxu0 0.0
    %2926 = vmatprep.subr.mxu0 0.0
    %2927 = vmatpush1.msra.mxu0 0.0
    %2928 = vmatprep.subr.mxu0 0.0
    %2929 = vmatpush1.msra.mxu0 0.0
    %2930 = vmatprep.subr.mxu0 0.0
    %2931 = vmatpush1.msra.mxu0 0.0
    %2932 = vmatprep.mubr.f32.mxu0 0.0
    %2933 = vmatmul.mubr.f32.gmra.mrb[0].mxu0 %v2841
    %v2934 = vpop.f32.mrb[0].mxu0
    %v2935 = vadd.f32 %v2866, %v2934
    %v2936 = vpop.f32.mrb[0].mxu0
    %2937 = vmatprep.mubr.f32.mxu0 0.0
    %2938 = vmatmul.mubr.f32.gmra.mrb[0].mxu0 %v2842
    %v2939 = vpop.f32.mrb[0].mxu0
    %v2940 = vadd.f32 %v2866, %v2939
    %v2941 = vpop.f32.mrb[0].mxu0
    %2942 = vdwg.mxu0
    %v2943 = vadd.f32 %v2741, %v2935
    %v2944 = vadd.f32 %v2742, %v2940
    %s2945 = scalar_lea.vmem %s6, 10
    %v2946 = vld [vmem:[%s2945] sm:$0x1]
    %s2947 = scalar_lea.vmem %s6, 11
    %v2948 = vld [vmem:[%s2947] sm:$0x1]
    %v2949 = vsel %vm178, %v2943, 0.0
    %2950 = vadd.xlane.f32.xlu0 %v2949
    %v2951 = vpop.xlane.xlu0 %2950
    %v2952 = vsel %vm178, %v2944, 0.0
    %2953 = vadd.xlane.f32.xlu0 %v2952
    %v2954 = vpop.xlane.xlu0 %2953
    %v2955 = vmul.f32 %v2951, %v1293
    %v2956 = vmul.f32 %v2954, %v1293
    %v2957 = vsub.f32 %v2943, %v2955
    %v2958 = vsub.f32 %v2944, %v2956
    %v2959 = vmul.f32 %v2957, %v2957
    %v2960 = vmul.f32 %v2958, %v2958
    %v2961 = vsel %vm178, %v2959, 0.0
    %2962 = vadd.xlane.f32.xlu0 %v2961
    %v2963 = vpop.xlane.xlu0 %2962
    %v2964 = vsel %vm178, %v2960, 0.0
    %2965 = vadd.xlane.f32.xlu0 %v2964
    %v2966 = vpop.xlane.xlu0 %2965
    %v2967 = vmul.f32 %v2963, %v1293
    %v2968 = vmul.f32 %v2966, %v1293
    %v2969 = vadd.f32 %v2967, 1e-05
    %v2970 = vadd.f32 %v2968, 1e-05
    %v2971 = vrsqrt.pop %v2969
    %v2972 = vrsqrt.pop %v2970
    %v2973 = vmul.f32 %v2957, %v2971
    %v2974 = vmul.f32 %v2958, %v2972
    %v2976 = vlaneseq
    %v2977 = vshrl.u32 %v2976, 7
    %v2978 = vsub.s32 0, %v2977
    %v2979 = vrot.slane %v2946, %v2978
    %v2981 = vmul.f32 %v2973, %v2979
    %v2982 = vmul.f32 %v2974, %v2979
    %v2984 = vlaneseq
    %v2985 = vshrl.u32 %v2984, 7
    %v2986 = vsub.s32 0, %v2985
    %v2987 = vrot.slane %v2948, %v2986
    %v2989 = vadd.f32 %v2981, %v2987
    %v2990 = vadd.f32 %v2982, %v2987
    %v2991 = vld [vmem:[%s10] sm:$0x1]
    %s2992 = scalar_lea.vmem %s10, 1
    %v2993 = vld [vmem:[%s2992] sm:$0x1]
    %v2994 = vsel %vm178, %v2989, 0.0
    %2995 = vadd.xlane.f32.xlu0 %v2994
    %v2996 = vpop.xlane.xlu0 %2995
    %v2997 = vsel %vm178, %v2990, 0.0
    %2998 = vadd.xlane.f32.xlu0 %v2997
    %v2999 = vpop.xlane.xlu0 %2998
    %v3000 = vmul.f32 %v2996, %v1293
    %v3001 = vmul.f32 %v2999, %v1293
    %v3002 = vsub.f32 %v2989, %v3000
    %v3003 = vsub.f32 %v2990, %v3001
    %v3004 = vmul.f32 %v3002, %v3002
    %v3005 = vmul.f32 %v3003, %v3003
    %v3006 = vsel %vm178, %v3004, 0.0
    %3007 = vadd.xlane.f32.xlu0 %v3006
    %v3008 = vpop.xlane.xlu0 %3007
    %v3009 = vsel %vm178, %v3005, 0.0
    %3010 = vadd.xlane.f32.xlu0 %v3009
    %v3011 = vpop.xlane.xlu0 %3010
    %v3012 = vmul.f32 %v3008, %v1293
    %v3013 = vmul.f32 %v3011, %v1293
    %v3014 = vadd.f32 %v3012, 1e-05
    %v3015 = vadd.f32 %v3013, 1e-05
    %v3016 = vrsqrt.pop %v3014
    %v3017 = vrsqrt.pop %v3015
    %v3018 = vmul.f32 %v3002, %v3016
    %v3019 = vmul.f32 %v3003, %v3017
    %v3021 = vlaneseq
    %v3022 = vshrl.u32 %v3021, 7
    %v3023 = vsub.s32 0, %v3022
    %v3024 = vrot.slane %v2991, %v3023
    %v3026 = vmul.f32 %v3018, %v3024
    %v3027 = vmul.f32 %v3019, %v3024
    %v3029 = vlaneseq
    %v3030 = vshrl.u32 %v3029, 7
    %v3031 = vsub.s32 0, %v3030
    %v3032 = vrot.slane %v2993, %v3031
    %v3034 = vadd.f32 %v3026, %v3032
    %v3035 = vadd.f32 %v3027, %v3032
    %v3036 = vsel %vm178, %v3034, 0.0
    %v3037 = vrot.slane %v3036, 4
    %v3038 = vadd.f32 %v3036, %v3037
    %v3039 = vrot.slane %v3038, 2
    %v3040 = vadd.f32 %v3038, %v3039
    %v3041 = vrot.slane %v3040, 1
    %v3042 = vadd.f32 %v3040, %v3041
    %v3043 = vrcp.pop 8.0
    %v3044 = vmul.f32 %v3042, %v3043
    %v3045 = vsel %vm178, %v3035, 0.0
    %v3046 = vrot.slane %v3045, 4
    %v3047 = vadd.f32 %v3045, %v3046
    %v3048 = vrot.slane %v3047, 2
    %v3049 = vadd.f32 %v3047, %v3048
    %v3050 = vrot.slane %v3049, 1
    %v3051 = vadd.f32 %v3049, %v3050
    %v3052 = vmul.f32 %v3051, %v3043
    %vm3053 = vcmask 1040384
    %v3054 = vsel %vm3053, %v3044, %v3052
    %v3055 = vld [vmem:[%s11] sm:$0xff]
    %v3056 = vld [vmem:[%s11 + $0x8] sm:$0xff]
    %v3057 = vld [vmem:[%s11 + $0x10] sm:$0xff]
    %v3058 = vld [vmem:[%s11 + $0x18] sm:$0xff]
    %v3059 = vld [vmem:[%s11 + $0x20] sm:$0xff]
    %v3060 = vld [vmem:[%s11 + $0x28] sm:$0xff]
    %v3061 = vld [vmem:[%s11 + $0x30] sm:$0xff]
    %v3062 = vld [vmem:[%s11 + $0x38] sm:$0xff]
    %v3063 = vld [vmem:[%s12] sm:$0x1]
    %v3065 = vlaneseq
    %v3066 = vshrl.u32 %v3065, 7
    %v3067 = vsub.s32 0, %v3066
    %v3068 = vrot.slane %v3063, %v3067
    %v3071 = vsel %vm178, %v3054, 0
    %3073 = vmatprep.subr.mxu0 0.0
    %3074 = vmatpush1.msra.mxu0 %v3055
    %3075 = vmatprep.subr.mxu0 0.0
    %3076 = vmatpush1.msra.mxu0 %v3056
    %3077 = vmatprep.subr.mxu0 0.0
    %3078 = vmatpush1.msra.mxu0 %v3057
    %3079 = vmatprep.subr.mxu0 0.0
    %3080 = vmatpush1.msra.mxu0 %v3058
    %3081 = vmatprep.subr.mxu0 0.0
    %3082 = vmatpush1.msra.mxu0 %v3059
    %3083 = vmatprep.subr.mxu0 0.0
    %3084 = vmatpush1.msra.mxu0 %v3060
    %3085 = vmatprep.subr.mxu0 0.0
    %3086 = vmatpush1.msra.mxu0 %v3061
    %3087 = vmatprep.subr.mxu0 0.0
    %3088 = vmatpush1.msra.mxu0 %v3062
    %3089 = vmatprep.subr.mxu0 0.0
    %3090 = vmatpush1.msra.mxu0 0.0
    %3091 = vmatprep.subr.mxu0 0.0
    %3092 = vmatpush1.msra.mxu0 0.0
    %3093 = vmatprep.subr.mxu0 0.0
    %3094 = vmatpush1.msra.mxu0 0.0
    %3095 = vmatprep.subr.mxu0 0.0
    %3096 = vmatpush1.msra.mxu0 0.0
    %3097 = vmatprep.subr.mxu0 0.0
    %3098 = vmatpush1.msra.mxu0 0.0
    %3099 = vmatprep.subr.mxu0 0.0
    %3100 = vmatpush1.msra.mxu0 0.0
    %3101 = vmatprep.subr.mxu0 0.0
    %3102 = vmatpush1.msra.mxu0 0.0
    %3103 = vmatprep.subr.mxu0 0.0
    %3104 = vmatpush1.msra.mxu0 0.0
    %3105 = vmatprep.subr.mxu0 0.0
    %3106 = vmatpush1.msra.mxu0 0.0
    %3107 = vmatprep.subr.mxu0 0.0
    %3108 = vmatpush1.msra.mxu0 0.0
    %3109 = vmatprep.subr.mxu0 0.0
    %3110 = vmatpush1.msra.mxu0 0.0
    %3111 = vmatprep.subr.mxu0 0.0
    %3112 = vmatpush1.msra.mxu0 0.0
    %3113 = vmatprep.subr.mxu0 0.0
    %3114 = vmatpush1.msra.mxu0 0.0
    %3115 = vmatprep.subr.mxu0 0.0
    %3116 = vmatpush1.msra.mxu0 0.0
    %3117 = vmatprep.subr.mxu0 0.0
    %3118 = vmatpush1.msra.mxu0 0.0
    %3119 = vmatprep.subr.mxu0 0.0
    %3120 = vmatpush1.msra.mxu0 0.0
    %3121 = vmatprep.subr.mxu0 0.0
    %3122 = vmatpush1.msra.mxu0 0.0
    %3123 = vmatprep.subr.mxu0 0.0
    %3124 = vmatpush1.msra.mxu0 0.0
    %3125 = vmatprep.subr.mxu0 0.0
    %3126 = vmatpush1.msra.mxu0 0.0
    %3127 = vmatprep.subr.mxu0 0.0
    %3128 = vmatpush1.msra.mxu0 0.0
    %3129 = vmatprep.subr.mxu0 0.0
    %3130 = vmatpush1.msra.mxu0 0.0
    %3131 = vmatprep.subr.mxu0 0.0
    %3132 = vmatpush1.msra.mxu0 0.0
    %3133 = vmatprep.subr.mxu0 0.0
    %3134 = vmatpush1.msra.mxu0 0.0
    %3135 = vmatprep.subr.mxu0 0.0
    %3136 = vmatpush1.msra.mxu0 0.0
    %3137 = vmatprep.mubr.f32.mxu0 0.0
    %3138 = vmatmul.mubr.f32.gmra.mrb[0].mxu0 %v3071
    %v3139 = vpop.f32.mrb[0].mxu0
    %v3140 = vadd.f32 %v3068, %v3139
    %v3141 = vpop.f32.mrb[0].mxu0
    %3142 = vdwg.mxu0
    %vm3143 = vcmask 254976
    %3144 = vst.msk [vmem:[#allocation2] sm:$0x3] %vm3143, %v3140
    // Predicated region
    $region54: #{encoder_forward.1} parent=1 // pred_check
      _
    $region55: #{encoder_forward.1} parent=1 // pred_check_branch
      %3146 = sbr.rel (0) target = $region57
    $region56: #{encoder_forward.1} parent=1 // pred_region
      %s3148 = ssub.s32 32, 32
      %3149 = vsyncadd [#allocation3], %s3148
      %s3151 = sshll.u32 [#allocation2], 4
      %s3152 = int_to_ptr.vmem [resolvable:$true] %s3151
      %3154 = dma.vmem_to_hbm [thread:$0]  %s3152, 32, %s13, [#allocation3]
    $region57: #{encoder_forward.1} parent=1 // pred_fallthru
      _
    // Predicated region
    $region58: #{encoder_forward.1} parent=1 // pred_check
      _
    $region59: #{encoder_forward.1} parent=1 // pred_check_branch
      %3156 = sbr.rel (0) target = $region61
    $region60: #{encoder_forward.1} parent=1 // pred_region
      %3157 = dma.done [#allocation3], 32
    $region61: #{encoder_forward.1} parent=1 // pred_fallthru
      _
    %3158 = vsyncpa [#allocation3], 1

</llo_original>
